<compile_context>
chip_gen: v5e
topology: v5e:2x2
jax: 0.10.0
libtpu: 0.0.40
codegen_flags: <defaults>
</compile_context>

<pallas_src>
import functools

import jax
import jax.numpy as jnp
from jax.experimental import pallas as pl
from jax.experimental.pallas import tpu as pltpu


# ----------------------------------------------------------------------------
# Fused DecFCN kernel: one grid step = one batch element, everything in VMEM.
# ----------------------------------------------------------------------------
def _decfcn_kernel(e5p_ref, e4_ref, e3_ref,
                   w3_ref, bns_ref, bnb_ref, w1_ref, b1_ref,
                   wp4_ref, bp4_ref, wp3_ref, bp3_ref,
                   rh4_ref, rw4t_ref, rh3_ref, rw3t_ref, rhx_ref, rwxt_ref,
                   o_ref):
    H5 = e5p_ref.shape[1] - 2
    W5 = e5p_ref.shape[2] - 2
    C5 = e5p_ref.shape[3]
    NC = w1_ref.shape[1]
    _, H4, W4, C4 = e4_ref.shape
    _, H3, W3, C3 = e3_ref.shape

    # ----- _FCNHead(e5): Conv2d(512,128,3,pad=1,bias=False) + BN(eval) + ReLU
    #       (+ Dropout(0.1)==identity in eval) + Conv2d(128,NC,1) -------------
    xp = e5p_ref[0]                                            # (H5+2, W5+2, C5) bf16, zero padded
    # im2col built ONCE: 3 H-band slices (outer dim, cheap) concatenated on the
    # lane axis, then 3 W shifts concatenated -> one [H5*W5, 9*C5] patch, so
    # the whole 3x3 conv is a single wide-K MXU matmul instead of 9 taps.
    rows3 = jnp.concatenate([xp[0:H5], xp[1:H5 + 1], xp[2:H5 + 2]], axis=-1)   # (H5, W5+2, 3*C5)
    cols9 = jnp.concatenate([rows3[:, 0:W5], rows3[:, 1:W5 + 1],
                             rows3[:, 2:W5 + 2]], axis=-1)                     # (H5, W5, 9*C5)
    patch = cols9.reshape(H5 * W5, 9 * C5)                                     # bf16
    acc = jnp.dot(patch, w3_ref[...], preferred_element_type=jnp.float32)      # (H5*W5, Cmid) f32
    y = jnp.maximum(acc * bns_ref[...] + bnb_ref[...], 0.0)                    # folded BN + ReLU
    score_fr = (jnp.dot(y.astype(jnp.bfloat16), w1_ref[...],
                        preferred_element_type=jnp.float32)
                + b1_ref[...]).reshape(H5, W5, NC)                             # (H5, W5, NC) f32

    # ----- score_pool4 / score_pool3: 1x1 convs as single matmuls ------------
    sp4 = (jnp.dot(e4_ref[0].reshape(H4 * W4, C4), wp4_ref[...],
                   preferred_element_type=jnp.float32)
           + bp4_ref[...]).reshape(H4, W4, NC)
    sp3 = (jnp.dot(e3_ref[0].reshape(H3 * W3, C3), wp3_ref[...],
                   preferred_element_type=jnp.float32)
           + bp3_ref[...]).reshape(H3, W3, NC)

    # ----- bilinear (align_corners=True) upsample + skip-add chain -----------
    def up(img, rh, rwt):       # (Hin, Win) -> (Hout, Wout), separable matmuls
        t = jnp.dot(rh, img, preferred_element_type=jnp.float32)
        return jnp.dot(t, rwt, preferred_element_type=jnp.float32)

    for c in range(NC):         # NC (num_classes) is a small static int -> unrolled
        f4 = up(score_fr[:, :, c], rh4_ref[...], rw4t_ref[...]) + sp4[:, :, c]  # fuse_pool4
        f3 = up(f4, rh3_ref[...], rw3t_ref[...]) + sp3[:, :, c]                 # fuse_pool3
        # final upsample to x's spatial size; no zero "skip" tensor needed.
        o_ref[0, c] = up(f3, rhx_ref[...], rwxt_ref[...])


# ----------------------------------------------------------------------------
# align_corners=True 1-D linear interpolation matrix  [out_size, in_size]
# ----------------------------------------------------------------------------
def _bilinear_matrix(out_size, in_size):
    if in_size == 1:
        return jnp.ones((out_size, 1), jnp.float32)
    if out_size == 1:
        return jnp.zeros((1, in_size), jnp.float32).at[0, 0].set(1.0)
    coords = (jnp.arange(out_size, dtype=jnp.float32)
              * (in_size - 1) / (out_size - 1))
    i0 = jnp.clip(jnp.floor(coords).astype(jnp.int32), 0, in_size - 1)
    i1 = jnp.clip(i0 + 1, 0, in_size - 1)
    frac = coords - i0.astype(jnp.float32)
    return (jax.nn.one_hot(i0, in_size, dtype=jnp.float32) * (1.0 - frac)[:, None]
            + jax.nn.one_hot(i1, in_size, dtype=jnp.float32) * frac[:, None])


# ----------------------------------------------------------------------------
# DecFCN forward: one fused pallas_call over the batch.
# ----------------------------------------------------------------------------
def dec_fcn_forward(params, x, e3, e4, e5):
    # x, e3, e4, e5 are NCHW (PyTorch convention).
    N, C5, H5, W5 = e5.shape
    _, C4, H4, W4 = e4.shape
    _, C3, H3, W3 = e3.shape
    Hx, Wx = x.shape[2], x.shape[3]
    Cmid, NC = params["w1"].shape
    bf16 = jnp.bfloat16

    # Activations to NHWC (channels on the lane axis) and bf16 (halves input
    # HBM->VMEM DMA; matmul operands were bf16 anyway).  e5 is zero-padded so
    # the kernel needs no halo handling.
    e5p = jnp.pad(jnp.transpose(e5, (0, 2, 3, 1)).astype(bf16),
                  ((0, 0), (1, 1), (1, 1), (0, 0)))
    e4n = jnp.transpose(e4, (0, 2, 3, 1)).astype(bf16)
    e3n = jnp.transpose(e3, (0, 2, 3, 1)).astype(bf16)

    # 3x3 weight (HWIO) restacked to match the in-kernel im2col channel order:
    # patch channel k = dx*3*C5 + dy*C5 + cin  <->  w3[dy, dx, cin, :].
    w3m = jnp.transpose(params["w3"], (1, 0, 2, 3)).reshape(9 * C5, Cmid).astype(bf16)

    rh4, rw4t = _bilinear_matrix(H4, H5), _bilinear_matrix(W4, W5).T
    rh3, rw3t = _bilinear_matrix(H3, H4), _bilinear_matrix(W3, W4).T
    rhx, rwxt = _bilinear_matrix(Hx, H3), _bilinear_matrix(Wx, W3).T

    def _const(shape):
        zeros = (0,) * len(shape)
        return pl.BlockSpec(shape, lambda n, _z=zeros: _z)

    return pl.pallas_call(
        _decfcn_kernel,
        out_shape=jax.ShapeDtypeStruct((N, NC, Hx, Wx), jnp.float32),
        grid_spec=pltpu.PrefetchScalarGridSpec(
            num_scalar_prefetch=0,
            grid=(N,),
            in_specs=[
                pl.BlockSpec((1, H5 + 2, W5 + 2, C5), lambda n: (n, 0, 0, 0)),
                pl.BlockSpec((1, H4, W4, C4), lambda n: (n, 0, 0, 0)),
                pl.BlockSpec((1, H3, W3, C3), lambda n: (n, 0, 0, 0)),
                _const((9 * C5, Cmid)),
                _const((1, Cmid)), _const((1, Cmid)),
                _const((Cmid, NC)), _const((1, NC)),
                _const((C4, NC)), _const((1, NC)),
                _const((C3, NC)), _const((1, NC)),
                _const((H4, H5)), _const((W5, W4)),
                _const((H3, H4)), _const((W4, W3)),
                _const((Hx, H3)), _const((W3, Wx)),
            ],
            out_specs=pl.BlockSpec((1, NC, Hx, Wx), lambda n: (n, 0, 0, 0)),
        ),
        compiler_params=pltpu.CompilerParams(
            dimension_semantics=("parallel",)),
    )(e5p, e4n, e3n,
      w3m,
      params["bn_scale"].reshape(1, Cmid), params["bn_shift"].reshape(1, Cmid),
      params["w1"].astype(bf16), params["b1"].reshape(1, NC),
      params["wp4"].astype(bf16), params["bp4"].reshape(1, NC),
      params["wp3"].astype(bf16), params["bp3"].reshape(1, NC),
      rh4, rw4t, rh3, rw3t, rhx, rwxt)


# ----------------------------------------------------------------------------
# Deterministic parameter init (shapes from DecFCN.__init__; synthetic values)
# ----------------------------------------------------------------------------
def init_params(key, num_classes=1):
    C5, Cmid, C4, C3 = 512, 512 // 4, 512, 256
    ks = jax.random.split(key, 10)
    eps = 1e-5
    gamma = 1.0 + 0.1 * jax.random.normal(ks[1], (Cmid,), jnp.float32)
    beta = 0.1 * jax.random.normal(ks[2], (Cmid,), jnp.float32)
    rmean = 0.1 * jax.random.normal(ks[3], (Cmid,), jnp.float32)
    rvar = jax.random.uniform(ks[4], (Cmid,), jnp.float32, 0.5, 1.5)
    bn_scale = gamma / jnp.sqrt(rvar + eps)
    bn_shift = beta - rmean * bn_scale
    return {
        # head: Conv2d(512, 128, 3, padding=1, bias=False) in HWIO
        "w3": 0.02 * jax.random.normal(ks[0], (3, 3, C5, Cmid), jnp.float32),
        "bn_scale": bn_scale,
        "bn_shift": bn_shift,
        # head: Conv2d(128, num_classes, 1)
        "w1": 0.05 * jax.random.normal(ks[5], (Cmid, num_classes), jnp.float32),
        "b1": 0.01 * jax.random.normal(ks[6], (num_classes,), jnp.float32),
        # score_pool4: Conv2d(512, num_classes, 1)
        "wp4": 0.05 * jax.random.normal(ks[7], (C4, num_classes), jnp.float32),
        "bp4": 0.01 * jax.random.normal(ks[8], (num_classes,), jnp.float32),
        # score_pool3: Conv2d(256, num_classes, 1)
        "wp3": 0.05 * jax.random.normal(ks[9], (C3, num_classes), jnp.float32),
        "bp3": jnp.zeros((num_classes,), jnp.float32),
    }


if __name__ == "__main__":
    key = jax.random.PRNGKey(0)
    kx, k3, k4, k5, kp = jax.random.split(key, 5)

    # Small shapes consistent with the module: e3=256ch, e4=512ch, e5=512ch,
    # with the usual stride-2 spatial pyramid down from x.
    x = jax.random.normal(kx, (2, 3, 16, 16), jnp.float32)
    e3 = jax.random.normal(k3, (2, 256, 8, 8), jnp.float32)
    e4 = jax.random.normal(k4, (2, 512, 4, 4), jnp.float32)
    e5 = jax.random.normal(k5, (2, 512, 2, 2), jnp.float32)

    params = init_params(kp, num_classes=1)

    out = jax.jit(functools.partial(dec_fcn_forward, params))(x, e3, e4, e5)
    out = jax.block_until_ready(out)

    assert out.shape == (2, 1, 16, 16), out.shape
    assert bool(jnp.all(jnp.isfinite(out)))
    print("KERNEL_OK")
</pallas_src>

<mosaic_0001>
module attributes {stable_mosaic.version = 11 : i64} {
  func.func @_decfcn_kernel(%arg0: i32, %arg1: memref<1x4x4x512xbf16, #tpu.memory_space<vmem>>, %arg2: memref<1x4x4x512xbf16, #tpu.memory_space<vmem>>, %arg3: memref<1x8x8x256xbf16, #tpu.memory_space<vmem>>, %arg4: memref<4608x128xbf16, #tpu.memory_space<vmem>>, %arg5: memref<1x128xf32, #tpu.memory_space<vmem>>, %arg6: memref<1x128xf32, #tpu.memory_space<vmem>>, %arg7: memref<128x1xbf16, #tpu.memory_space<vmem>>, %arg8: memref<1x1xf32, #tpu.memory_space<vmem>>, %arg9: memref<512x1xbf16, #tpu.memory_space<vmem>>, %arg10: memref<1x1xf32, #tpu.memory_space<vmem>>, %arg11: memref<256x1xbf16, #tpu.memory_space<vmem>>, %arg12: memref<1x1xf32, #tpu.memory_space<vmem>>, %arg13: memref<4x2xf32, #tpu.memory_space<vmem>>, %arg14: memref<2x4xf32, #tpu.memory_space<vmem>>, %arg15: memref<8x4xf32, #tpu.memory_space<vmem>>, %arg16: memref<4x8xf32, #tpu.memory_space<vmem>>, %arg17: memref<16x8xf32, #tpu.memory_space<vmem>>, %arg18: memref<8x16xf32, #tpu.memory_space<vmem>>, %arg19: memref<1x1x16x16xf32, #tpu.memory_space<vmem>>) attributes {dimension_semantics = [#tpu.dimension_semantics<parallel>], iteration_bounds = array<i64: 2>, scalar_prefetch = 0 : i64, scratch_operands = 0 : i64, tpu.core_type = #tpu.core_type<tc>, window_params = [{transform_indices = @transform_0, window_bounds = array<i64: 1, 4, 4, 512>}, {transform_indices = @transform_1, window_bounds = array<i64: 1, 4, 4, 512>}, {transform_indices = @transform_2, window_bounds = array<i64: 1, 8, 8, 256>}, {pipeline_mode = #tpu.pipeline_mode<synchronous>, transform_indices = @transform_3, window_bounds = array<i64: 4608, 128>}, {pipeline_mode = #tpu.pipeline_mode<synchronous>, transform_indices = @transform_4, window_bounds = array<i64: 1, 128>}, {pipeline_mode = #tpu.pipeline_mode<synchronous>, transform_indices = @transform_5, window_bounds = array<i64: 1, 128>}, {pipeline_mode = #tpu.pipeline_mode<synchronous>, transform_indices = @transform_6, window_bounds = array<i64: 128, 1>}, {pipeline_mode = #tpu.pipeline_mode<synchronous>, transform_indices = @transform_7, window_bounds = array<i64: 1, 1>}, {pipeline_mode = #tpu.pipeline_mode<synchronous>, transform_indices = @transform_8, window_bounds = array<i64: 512, 1>}, {pipeline_mode = #tpu.pipeline_mode<synchronous>, transform_indices = @transform_9, window_bounds = array<i64: 1, 1>}, {pipeline_mode = #tpu.pipeline_mode<synchronous>, transform_indices = @transform_10, window_bounds = array<i64: 256, 1>}, {pipeline_mode = #tpu.pipeline_mode<synchronous>, transform_indices = @transform_11, window_bounds = array<i64: 1, 1>}, {pipeline_mode = #tpu.pipeline_mode<synchronous>, transform_indices = @transform_12, window_bounds = array<i64: 4, 2>}, {pipeline_mode = #tpu.pipeline_mode<synchronous>, transform_indices = @transform_13, window_bounds = array<i64: 2, 4>}, {pipeline_mode = #tpu.pipeline_mode<synchronous>, transform_indices = @transform_14, window_bounds = array<i64: 8, 4>}, {pipeline_mode = #tpu.pipeline_mode<synchronous>, transform_indices = @transform_15, window_bounds = array<i64: 4, 8>}, {pipeline_mode = #tpu.pipeline_mode<synchronous>, transform_indices = @transform_16, window_bounds = array<i64: 16, 8>}, {pipeline_mode = #tpu.pipeline_mode<synchronous>, transform_indices = @transform_17, window_bounds = array<i64: 8, 16>}, {transform_indices = @transform_18, window_bounds = array<i64: 1, 1, 16, 16>}]} {
    %c0 = arith.constant 0 : index
    %c0_0 = arith.constant 0 : index
    %c0_1 = arith.constant 0 : index
    %c0_2 = arith.constant 0 : index
    %0 = vector.load %arg1[%c0, %c0_0, %c0_1, %c0_2] : memref<1x4x4x512xbf16, #tpu.memory_space<vmem>>, vector<1x4x4x512xbf16>
    %1 = vector.shape_cast %0 : vector<1x4x4x512xbf16> to vector<4x4x512xbf16>
    %2 = vector.extract_strided_slice %1 {offsets = [0, 0, 0], sizes = [2, 4, 512], strides = [1, 1, 1]} : vector<4x4x512xbf16> to vector<2x4x512xbf16>
    %3 = vector.extract_strided_slice %1 {offsets = [1, 0, 0], sizes = [2, 4, 512], strides = [1, 1, 1]} : vector<4x4x512xbf16> to vector<2x4x512xbf16>
    %4 = vector.extract_strided_slice %1 {offsets = [2, 0, 0], sizes = [2, 4, 512], strides = [1, 1, 1]} : vector<4x4x512xbf16> to vector<2x4x512xbf16>
    %5 = tpu.concatenate %2, %3, %4 in 2 : vector<2x4x512xbf16>, vector<2x4x512xbf16>, vector<2x4x512xbf16> -> vector<2x4x1536xbf16>
    %6 = vector.extract_strided_slice %5 {offsets = [0, 0, 0], sizes = [2, 2, 1536], strides = [1, 1, 1]} : vector<2x4x1536xbf16> to vector<2x2x1536xbf16>
    %7 = vector.extract_strided_slice %5 {offsets = [0, 1, 0], sizes = [2, 2, 1536], strides = [1, 1, 1]} : vector<2x4x1536xbf16> to vector<2x2x1536xbf16>
    %8 = vector.extract_strided_slice %5 {offsets = [0, 2, 0], sizes = [2, 2, 1536], strides = [1, 1, 1]} : vector<2x4x1536xbf16> to vector<2x2x1536xbf16>
    %9 = tpu.concatenate %6, %7, %8 in 2 : vector<2x2x1536xbf16>, vector<2x2x1536xbf16>, vector<2x2x1536xbf16> -> vector<2x2x4608xbf16>
    %10 = vector.shape_cast %9 : vector<2x2x4608xbf16> to vector<4x4608xbf16>
    %c0_3 = arith.constant 0 : index
    %c0_4 = arith.constant 0 : index
    %11 = vector.load %arg4[%c0_3, %c0_4] : memref<4608x128xbf16, #tpu.memory_space<vmem>>, vector<4608x128xbf16>
    %cst = arith.constant dense<0.000000e+00> : vector<4x128xf32>
    %12 = tpu.matmul %10, %11, %cst {dimension_numbers = #tpu.dot_dimension_numbers<[1], [0], [0], [1], [0, 0, 1, 1], [], []>} : vector<4x4608xbf16>, vector<4608x128xbf16>, vector<4x128xf32> -> vector<4x128xf32>
    %c0_5 = arith.constant 0 : index
    %c0_6 = arith.constant 0 : index
    %13 = vector.load %arg5[%c0_5, %c0_6] : memref<1x128xf32, #tpu.memory_space<vmem>>, vector<1x128xf32>
    %14 = vector.broadcast %13 : vector<1x128xf32> to vector<4x128xf32>
    %15 = arith.mulf %12, %14 : vector<4x128xf32>
    %c0_7 = arith.constant 0 : index
    %c0_8 = arith.constant 0 : index
    %16 = vector.load %arg6[%c0_7, %c0_8] : memref<1x128xf32, #tpu.memory_space<vmem>>, vector<1x128xf32>
    %17 = vector.broadcast %16 : vector<1x128xf32> to vector<4x128xf32>
    %18 = arith.addf %15, %17 : vector<4x128xf32>
    %cst_9 = arith.constant 0.000000e+00 : f32
    %19 = vector.broadcast %cst_9 : f32 to vector<4x128xf32>
    %20 = arith.maximumf %18, %19 : vector<4x128xf32>
    %21 = arith.truncf %20 : vector<4x128xf32> to vector<4x128xbf16>
    %c0_10 = arith.constant 0 : index
    %c0_11 = arith.constant 0 : index
    %22 = vector.load %arg7[%c0_10, %c0_11] : memref<128x1xbf16, #tpu.memory_space<vmem>>, vector<128x1xbf16>
    %cst_12 = arith.constant dense<0.000000e+00> : vector<4x1xf32>
    %23 = tpu.matmul %21, %22, %cst_12 {dimension_numbers = #tpu.dot_dimension_numbers<[1], [0], [0], [1], [0, 0, 1, 1], [], []>} : vector<4x128xbf16>, vector<128x1xbf16>, vector<4x1xf32> -> vector<4x1xf32>
    %c0_13 = arith.constant 0 : index
    %c0_14 = arith.constant 0 : index
    %24 = vector.load %arg8[%c0_13, %c0_14] : memref<1x1xf32, #tpu.memory_space<vmem>>, vector<1x1xf32>
    %25 = vector.broadcast %24 : vector<1x1xf32> to vector<4x1xf32>
    %26 = arith.addf %23, %25 : vector<4x1xf32>
    %27 = vector.shape_cast %26 : vector<4x1xf32> to vector<2x2x1xf32>
    %c0_15 = arith.constant 0 : index
    %c0_16 = arith.constant 0 : index
    %c0_17 = arith.constant 0 : index
    %c0_18 = arith.constant 0 : index
    %28 = vector.load %arg2[%c0_15, %c0_16, %c0_17, %c0_18] : memref<1x4x4x512xbf16, #tpu.memory_space<vmem>>, vector<1x4x4x512xbf16>
    %29 = vector.shape_cast %28 : vector<1x4x4x512xbf16> to vector<4x4x512xbf16>
    %30 = vector.shape_cast %29 : vector<4x4x512xbf16> to vector<16x512xbf16>
    %c0_19 = arith.constant 0 : index
    %c0_20 = arith.constant 0 : index
    %31 = vector.load %arg9[%c0_19, %c0_20] : memref<512x1xbf16, #tpu.memory_space<vmem>>, vector<512x1xbf16>
    %cst_21 = arith.constant dense<0.000000e+00> : vector<16x1xf32>
    %32 = tpu.matmul %30, %31, %cst_21 {dimension_numbers = #tpu.dot_dimension_numbers<[1], [0], [0], [1], [0, 0, 1, 1], [], []>} : vector<16x512xbf16>, vector<512x1xbf16>, vector<16x1xf32> -> vector<16x1xf32>
    %c0_22 = arith.constant 0 : index
    %c0_23 = arith.constant 0 : index
    %33 = vector.load %arg10[%c0_22, %c0_23] : memref<1x1xf32, #tpu.memory_space<vmem>>, vector<1x1xf32>
    %34 = vector.broadcast %33 : vector<1x1xf32> to vector<16x1xf32>
    %35 = arith.addf %32, %34 : vector<16x1xf32>
    %36 = vector.shape_cast %35 : vector<16x1xf32> to vector<4x4x1xf32>
    %c0_24 = arith.constant 0 : index
    %c0_25 = arith.constant 0 : index
    %c0_26 = arith.constant 0 : index
    %c0_27 = arith.constant 0 : index
    %37 = vector.load %arg3[%c0_24, %c0_25, %c0_26, %c0_27] : memref<1x8x8x256xbf16, #tpu.memory_space<vmem>>, vector<1x8x8x256xbf16>
    %38 = vector.shape_cast %37 : vector<1x8x8x256xbf16> to vector<8x8x256xbf16>
    %39 = vector.shape_cast %38 : vector<8x8x256xbf16> to vector<64x256xbf16>
    %c0_28 = arith.constant 0 : index
    %c0_29 = arith.constant 0 : index
    %40 = vector.load %arg11[%c0_28, %c0_29] : memref<256x1xbf16, #tpu.memory_space<vmem>>, vector<256x1xbf16>
    %cst_30 = arith.constant dense<0.000000e+00> : vector<64x1xf32>
    %41 = tpu.matmul %39, %40, %cst_30 {dimension_numbers = #tpu.dot_dimension_numbers<[1], [0], [0], [1], [0, 0, 1, 1], [], []>} : vector<64x256xbf16>, vector<256x1xbf16>, vector<64x1xf32> -> vector<64x1xf32>
    %c0_31 = arith.constant 0 : index
    %c0_32 = arith.constant 0 : index
    %42 = vector.load %arg12[%c0_31, %c0_32] : memref<1x1xf32, #tpu.memory_space<vmem>>, vector<1x1xf32>
    %43 = vector.broadcast %42 : vector<1x1xf32> to vector<64x1xf32>
    %44 = arith.addf %41, %43 : vector<64x1xf32>
    %45 = vector.shape_cast %44 : vector<64x1xf32> to vector<8x8x1xf32>
    %46 = vector.shape_cast %27 : vector<2x2x1xf32> to vector<2x2xf32>
    %c0_33 = arith.constant 0 : index
    %c0_34 = arith.constant 0 : index
    %47 = vector.load %arg13[%c0_33, %c0_34] : memref<4x2xf32, #tpu.memory_space<vmem>>, vector<4x2xf32>
    %c0_35 = arith.constant 0 : index
    %c0_36 = arith.constant 0 : index
    %48 = vector.load %arg14[%c0_35, %c0_36] : memref<2x4xf32, #tpu.memory_space<vmem>>, vector<2x4xf32>
    %cst_37 = arith.constant dense<0.000000e+00> : vector<4x2xf32>
    %49 = tpu.matmul %47, %46, %cst_37 {dimension_numbers = #tpu.dot_dimension_numbers<[1], [0], [0], [1], [0, 0, 1, 1], [], []>} : vector<4x2xf32>, vector<2x2xf32>, vector<4x2xf32> -> vector<4x2xf32>
    %cst_38 = arith.constant dense<0.000000e+00> : vector<4x4xf32>
    %50 = tpu.matmul %49, %48, %cst_38 {dimension_numbers = #tpu.dot_dimension_numbers<[1], [0], [0], [1], [0, 0, 1, 1], [], []>} : vector<4x2xf32>, vector<2x4xf32>, vector<4x4xf32> -> vector<4x4xf32>
    %51 = vector.shape_cast %36 : vector<4x4x1xf32> to vector<4x4xf32>
    %52 = arith.addf %50, %51 : vector<4x4xf32>
    %c0_39 = arith.constant 0 : index
    %c0_40 = arith.constant 0 : index
    %53 = vector.load %arg15[%c0_39, %c0_40] : memref<8x4xf32, #tpu.memory_space<vmem>>, vector<8x4xf32>
    %c0_41 = arith.constant 0 : index
    %c0_42 = arith.constant 0 : index
    %54 = vector.load %arg16[%c0_41, %c0_42] : memref<4x8xf32, #tpu.memory_space<vmem>>, vector<4x8xf32>
    %cst_43 = arith.constant dense<0.000000e+00> : vector<8x4xf32>
    %55 = tpu.matmul %53, %52, %cst_43 {dimension_numbers = #tpu.dot_dimension_numbers<[1], [0], [0], [1], [0, 0, 1, 1], [], []>} : vector<8x4xf32>, vector<4x4xf32>, vector<8x4xf32> -> vector<8x4xf32>
    %cst_44 = arith.constant dense<0.000000e+00> : vector<8x8xf32>
    %56 = tpu.matmul %55, %54, %cst_44 {dimension_numbers = #tpu.dot_dimension_numbers<[1], [0], [0], [1], [0, 0, 1, 1], [], []>} : vector<8x4xf32>, vector<4x8xf32>, vector<8x8xf32> -> vector<8x8xf32>
    %57 = vector.shape_cast %45 : vector<8x8x1xf32> to vector<8x8xf32>
    %58 = arith.addf %56, %57 : vector<8x8xf32>
    %c0_45 = arith.constant 0 : index
    %c0_46 = arith.constant 0 : index
    %59 = vector.load %arg17[%c0_45, %c0_46] : memref<16x8xf32, #tpu.memory_space<vmem>>, vector<16x8xf32>
    %c0_47 = arith.constant 0 : index
    %c0_48 = arith.constant 0 : index
    %60 = vector.load %arg18[%c0_47, %c0_48] : memref<8x16xf32, #tpu.memory_space<vmem>>, vector<8x16xf32>
    %cst_49 = arith.constant dense<0.000000e+00> : vector<16x8xf32>
    %61 = tpu.matmul %59, %58, %cst_49 {dimension_numbers = #tpu.dot_dimension_numbers<[1], [0], [0], [1], [0, 0, 1, 1], [], []>} : vector<16x8xf32>, vector<8x8xf32>, vector<16x8xf32> -> vector<16x8xf32>
    %cst_50 = arith.constant dense<0.000000e+00> : vector<16x16xf32>
    %62 = tpu.matmul %61, %60, %cst_50 {dimension_numbers = #tpu.dot_dimension_numbers<[1], [0], [0], [1], [0, 0, 1, 1], [], []>} : vector<16x8xf32>, vector<8x16xf32>, vector<16x16xf32> -> vector<16x16xf32>
    %c0_51 = arith.constant 0 : index
    %c0_52 = arith.constant 0 : index
    %c0_53 = arith.constant 0 : index
    %c0_54 = arith.constant 0 : index
    %63 = vector.load %arg19[%c0_51, %c0_52, %c0_53, %c0_54] : memref<1x1x16x16xf32, #tpu.memory_space<vmem>>, vector<1x1x16x16xf32>
    %64 = vector.shape_cast %63 : vector<1x1x16x16xf32> to vector<16x16xf32>
    %65 = vector.shape_cast %62 : vector<16x16xf32> to vector<1x1x16x16xf32>
    tpu.vector_store %arg19[%c0_51, %c0_52, %c0_53, %c0_54], %65 {strides = array<i32>} : memref<1x1x16x16xf32, #tpu.memory_space<vmem>>, vector<1x1x16x16xf32>,
    return
  }
  func.func @transform_0(%arg0: i32) -> (i32, i32, i32, i32) {
    %c0_i32 = arith.constant 0 : i32
    %c0_i32_0 = arith.constant 0 : i32
    %c0_i32_1 = arith.constant 0 : i32
    %c0_i32_2 = arith.constant 0 : i32
    return %arg0, %c0_i32, %c0_i32_0, %c0_i32_1 : i32, i32, i32, i32
  }
  func.func @transform_1(%arg0: i32) -> (i32, i32, i32, i32) {
    %c0_i32 = arith.constant 0 : i32
    %c0_i32_0 = arith.constant 0 : i32
    %c0_i32_1 = arith.constant 0 : i32
    %c0_i32_2 = arith.constant 0 : i32
    return %arg0, %c0_i32, %c0_i32_0, %c0_i32_1 : i32, i32, i32, i32
  }
  func.func @transform_2(%arg0: i32) -> (i32, i32, i32, i32) {
    %c0_i32 = arith.constant 0 : i32
    %c0_i32_0 = arith.constant 0 : i32
    %c0_i32_1 = arith.constant 0 : i32
    %c0_i32_2 = arith.constant 0 : i32
    return %arg0, %c0_i32, %c0_i32_0, %c0_i32_1 : i32, i32, i32, i32
  }
  func.func @transform_3(%arg0: i32) -> (i32, i32) {
    %c0_i32 = arith.constant 0 : i32
    %c0_i32_0 = arith.constant 0 : i32
    %c0_i32_1 = arith.constant 0 : i32
    return %c0_i32, %c0_i32_0 : i32, i32
  }
  func.func @transform_4(%arg0: i32) -> (i32, i32) {
    %c0_i32 = arith.constant 0 : i32
    %c0_i32_0 = arith.constant 0 : i32
    %c0_i32_1 = arith.constant 0 : i32
    return %c0_i32, %c0_i32_0 : i32, i32
  }
  func.func @transform_5(%arg0: i32) -> (i32, i32) {
    %c0_i32 = arith.constant 0 : i32
    %c0_i32_0 = arith.constant 0 : i32
    %c0_i32_1 = arith.constant 0 : i32
    return %c0_i32, %c0_i32_0 : i32, i32
  }
  func.func @transform_6(%arg0: i32) -> (i32, i32) {
    %c0_i32 = arith.constant 0 : i32
    %c0_i32_0 = arith.constant 0 : i32
    %c0_i32_1 = arith.constant 0 : i32
    return %c0_i32, %c0_i32_0 : i32, i32
  }
  func.func @transform_7(%arg0: i32) -> (i32, i32) {
    %c0_i32 = arith.constant 0 : i32
    %c0_i32_0 = arith.constant 0 : i32
    %c0_i32_1 = arith.constant 0 : i32
    return %c0_i32, %c0_i32_0 : i32, i32
  }
  func.func @transform_8(%arg0: i32) -> (i32, i32) {
    %c0_i32 = arith.constant 0 : i32
    %c0_i32_0 = arith.constant 0 : i32
    %c0_i32_1 = arith.constant 0 : i32
    return %c0_i32, %c0_i32_0 : i32, i32
  }
  func.func @transform_9(%arg0: i32) -> (i32, i32) {
    %c0_i32 = arith.constant 0 : i32
    %c0_i32_0 = arith.constant 0 : i32
    %c0_i32_1 = arith.constant 0 : i32
    return %c0_i32, %c0_i32_0 : i32, i32
  }
  func.func @transform_10(%arg0: i32) -> (i32, i32) {
    %c0_i32 = arith.constant 0 : i32
    %c0_i32_0 = arith.constant 0 : i32
    %c0_i32_1 = arith.constant 0 : i32
    return %c0_i32, %c0_i32_0 : i32, i32
  }
  func.func @transform_11(%arg0: i32) -> (i32, i32) {
    %c0_i32 = arith.constant 0 : i32
    %c0_i32_0 = arith.constant 0 : i32
    %c0_i32_1 = arith.constant 0 : i32
    return %c0_i32, %c0_i32_0 : i32, i32
  }
  func.func @transform_12(%arg0: i32) -> (i32, i32) {
    %c0_i32 = arith.constant 0 : i32
    %c0_i32_0 = arith.constant 0 : i32
    %c0_i32_1 = arith.constant 0 : i32
    return %c0_i32, %c0_i32_0 : i32, i32
  }
  func.func @transform_13(%arg0: i32) -> (i32, i32) {
    %c0_i32 = arith.constant 0 : i32
    %c0_i32_0 = arith.constant 0 : i32
    %c0_i32_1 = arith.constant 0 : i32
    return %c0_i32, %c0_i32_0 : i32, i32
  }
  func.func @transform_14(%arg0: i32) -> (i32, i32) {
    %c0_i32 = arith.constant 0 : i32
    %c0_i32_0 = arith.constant 0 : i32
    %c0_i32_1 = arith.constant 0 : i32
    return %c0_i32, %c0_i32_0 : i32, i32
  }
  func.func @transform_15(%arg0: i32) -> (i32, i32) {
    %c0_i32 = arith.constant 0 : i32
    %c0_i32_0 = arith.constant 0 : i32
    %c0_i32_1 = arith.constant 0 : i32
    return %c0_i32, %c0_i32_0 : i32, i32
  }
  func.func @transform_16(%arg0: i32) -> (i32, i32) {
    %c0_i32 = arith.constant 0 : i32
    %c0_i32_0 = arith.constant 0 : i32
    %c0_i32_1 = arith.constant 0 : i32
    return %c0_i32, %c0_i32_0 : i32, i32
  }
  func.func @transform_17(%arg0: i32) -> (i32, i32) {
    %c0_i32 = arith.constant 0 : i32
    %c0_i32_0 = arith.constant 0 : i32
    %c0_i32_1 = arith.constant 0 : i32
    return %c0_i32, %c0_i32_0 : i32, i32
  }
  func.func @transform_18(%arg0: i32) -> (i32, i32, i32, i32) {
    %c0_i32 = arith.constant 0 : i32
    %c0_i32_0 = arith.constant 0 : i32
    %c0_i32_1 = arith.constant 0 : i32
    %c0_i32_2 = arith.constant 0 : i32
    return %arg0, %c0_i32, %c0_i32_0, %c0_i32_1 : i32, i32, i32, i32
  }
}

</mosaic_0001>

<llo_original>
// kernel: dec_fcn_forward.1
$region0: #{dec_fcn_forward.1}
  #allocation0 [shape = 'u32[]', space=smem, size = 0x4, offset = 0x4, fixed_abs, tag = 'smem constant byte address 0x4 - core index']
  #allocation1 [shape = 'u32[72,128]{1,0:T(1,128)}', space=vmem, size = 0x9000, scoped, tag = 'internal scratch']
  #allocation2 [shape = 'f32[1,1]{1,0:T(1,128)S(1)}', space=vmem, size = 0x200, scoped, tag = 'scoped memory for dec_fcn_forward.1']
  #allocation3 [shape = 'f32[1,1]{1,0:T(1,128)S(1)}', space=vmem, size = 0x200, scoped, tag = 'scoped memory for dec_fcn_forward.1']
  #allocation4 [shape = 'f32[1,1]{1,0:T(1,128)S(1)}', space=vmem, size = 0x200, scoped, tag = 'scoped memory for dec_fcn_forward.1']
  %s0 = inlined_call_operand.vmem [shape: bf16[2,4,4,512], index: 0, kind: input, shape index: {}]
  %s1 = inlined_call_operand.vmem [shape: bf16[2,4,4,512], index: 1, kind: input, shape index: {}]
  %s2 = inlined_call_operand.vmem [shape: bf16[2,8,8,256], index: 2, kind: input, shape index: {}]
  %s3 = inlined_call_operand.hbm [shape: bf16[4608,128], index: 3, kind: input, shape index: {}]
  %s4 = inlined_call_operand.hbm [shape: f32[1,128], index: 4, kind: input, shape index: {}]
  %s5 = inlined_call_operand.hbm [shape: f32[1,128], index: 5, kind: input, shape index: {}]
  %s6 = inlined_call_operand.hbm [shape: bf16[128,1], index: 6, kind: input, shape index: {}]
  %s7 = inlined_call_operand.<no memory space> [shape: f32[1,1], index: 7, kind: input, shape index: {}]
  %s8 = inlined_call_operand.hbm [shape: bf16[512,1], index: 8, kind: input, shape index: {}]
  %s9 = inlined_call_operand.<no memory space> [shape: f32[1,1], index: 9, kind: input, shape index: {}]
  %s10 = inlined_call_operand.hbm [shape: bf16[256,1], index: 10, kind: input, shape index: {}]
  %s11 = inlined_call_operand.<no memory space> [shape: f32[1,1], index: 11, kind: input, shape index: {}]
  %s12 = inlined_call_operand.vmem [shape: f32[4,2], index: 12, kind: input, shape index: {}]
  %s13 = inlined_call_operand.vmem [shape: f32[2,4], index: 13, kind: input, shape index: {}]
  %s14 = inlined_call_operand.vmem [shape: f32[8,4], index: 14, kind: input, shape index: {}]
  %s15 = inlined_call_operand.vmem [shape: f32[4,8], index: 15, kind: input, shape index: {}]
  %s16 = inlined_call_operand.vmem [shape: f32[16,8], index: 16, kind: input, shape index: {}]
  %s17 = inlined_call_operand.vmem [shape: f32[8,16], index: 17, kind: input, shape index: {}]
  %s18 = inlined_call_operand.hbm [shape: f32[2,1,16,16], index: 18, kind: output, shape index: {}]
  %s19 = sld [smem:[#allocation0]]
  $region129: #{dec_fcn_forward.1} parent=0
    _
  %s21 = ssub.s32 1, %s19
  %s22 = scalar_select 0, %s21, %s19
  %v23 = vstv %s7
  %24 = vst [vmem:[#allocation2] sm:$0x1] %v23
  %v25 = vstv %s9
  %26 = vst [vmem:[#allocation3] sm:$0x1] %v25
  %v27 = vstv %s11
  %28 = vst [vmem:[#allocation4] sm:$0x1] %v27
  $region1: #{dec_fcn_forward.1} parent=0
    #allocation5 [shape = 'u8[1179648]{0}', space=vmem, size = 0x120000, scoped, tag = 'input window, operand 3, single buffered']
    #allocation6 [shape = 's32[2]{0}', space=sflag, size = 0x8, scoped, tag = 'scoped memory for dec_fcn_forward.1']
    #allocation7 [shape = 's32[2]{0}', space=sflag, size = 0x8, scoped, tag = 'scoped memory for dec_fcn_forward.1']
    #allocation8 [shape = 'u8[512]{0}', space=vmem, size = 0x400, scoped, tag = 'input window, operand 4, single buffered']
    #allocation9 [shape = 's32[1]{0}', space=sflag, size = 0x4, scoped, tag = 'scoped memory for dec_fcn_forward.1']
    #allocation10 [shape = 'u8[512]{0}', space=vmem, size = 0x400, scoped, tag = 'input window, operand 5, single buffered']
    #allocation11 [shape = 'u8[32768]{0}', space=vmem, size = 0x8000, scoped, tag = 'input window, operand 6, single buffered']
    #allocation12 [shape = 's32[1]{0}', space=sflag, size = 0x4, scoped, tag = 'scoped memory for dec_fcn_forward.1']
    #allocation13 [shape = 'u8[131072]{0}', space=vmem, size = 0x20000, scoped, tag = 'input window, operand 8, single buffered']
    #allocation14 [shape = 'u8[65536]{0}', space=vmem, size = 0x10000, scoped, tag = 'input window, operand 10, single buffered']
    #allocation15 [shape = 's32[1]{0}', space=sflag, size = 0x4, scoped, tag = 'scoped memory for dec_fcn_forward.1']
    #allocation16 [shape = 'u8[16384]{0}', space=vmem, size = 0x4000, scoped, tag = 'output window, operand 0']
    %29 = vsyncpa [#allocation6], 0
    %30 = vsyncpa [#allocation9], 0
    %31 = vsyncpa [#allocation12], 0
    %32 = vsyncpa [#allocation15], 0
    %33 = vsyncpa [#allocation7], 0
    %s34 = scalar_lea.sflag [#allocation7], 1
    %35 = vsyncpa %s34, 0
    loop: start=0, step=1, limit=4
    $region2: #{dec_fcn_forward.1} parent=1 // loop_pre_header
      _
    $region3: #{dec_fcn_forward.1} parent=1 // loop_header
      %s37 = sphi 0, %s41
      %p38 = scmp.ge.s32.totalorder %s37, 4
      %s47 = sphi 0, %s49
      %s50 = sphi 0, %s47
      %s51 = sphi 0, %s50
      %s67 = sphi 0, %s51
      %s73 = sphi 0, %s75
      %s76 = sphi 0, %s73
      %s77 = sphi 0, %s76
      %s93 = sphi 0, %s77
      %s99 = sphi 0, %s101
      %s102 = sphi 0, %s99
      %s103 = sphi 0, %s102
      %s119 = sphi 0, %s103
      %s123 = sphi 0, %s123
      %s125 = sphi 0, %s123
      %s126 = sphi 0, %s125
      %s140 = sphi 0, %s126
      %s144 = sphi 0, %s144
      %s146 = sphi 0, %s144
      %s147 = sphi 0, %s146
      %s161 = sphi 0, %s147
      %s165 = sphi 0, %s165
      %s167 = sphi 0, %s165
      %s168 = sphi 0, %s167
      %s182 = sphi 0, %s168
      %s186 = sphi 0, %s186
      %s188 = sphi 0, %s186
      %s189 = sphi 0, %s188
      %s203 = sphi 0, %s189
      %s207 = sphi 0, %s207
      %s209 = sphi 0, %s207
      %s210 = sphi 0, %s209
      %s224 = sphi 0, %s210
      %s228 = sphi 0, %s228
      %s230 = sphi 0, %s228
      %s231 = sphi 0, %s230
      %s245 = sphi 0, %s231
      %s249 = sphi 0, %s249
      %s251 = sphi 0, %s249
      %s252 = sphi 0, %s251
      %s266 = sphi 0, %s252
      %s270 = sphi 0, %s270
      %s272 = sphi 0, %s270
      %s273 = sphi 0, %s272
      %s287 = sphi 0, %s273
      %s291 = sphi 0, %s291
      %s293 = sphi 0, %s291
      %s294 = sphi 0, %s293
      %s308 = sphi 0, %s294
      %s312 = sphi 0, %s312
      %s314 = sphi 0, %s312
      %s315 = sphi 0, %s314
      %s329 = sphi 0, %s315
      %s333 = sphi 0, %s333
      %s335 = sphi 0, %s333
      %s336 = sphi 0, %s335
      %s350 = sphi 0, %s336
      %s354 = sphi 0, %s354
      %s356 = sphi 0, %s354
      %s357 = sphi 0, %s356
      %s371 = sphi 0, %s357
      %s375 = sphi 0, %s375
      %s377 = sphi 0, %s375
      %s378 = sphi 0, %s377
      %s392 = sphi 0, %s378
      %s396 = sphi 0, %s396
      %s398 = sphi 0, %s396
      %s399 = sphi 0, %s398
      %s413 = sphi 0, %s399
      %s417 = sphi 0, %s417
      %s419 = sphi 0, %s417
      %s420 = sphi 0, %s419
      %s434 = sphi 0, %s420
      %s440 = sphi 0, %s442
      %s443 = sphi 0, %s440
      %s444 = sphi 0, %s443
      %s460 = sphi 0, %s444
    $region4: #{dec_fcn_forward.1} parent=1 // loop_header_branch
      %40 = sbr.rel (%p38) target = $region8
    $region5: #{dec_fcn_forward.1} parent=1 // loop_body
      %s42 = ssub.s32 %s37, 1
      %s43 = ssub.s32 %s37, 2
      %s44 = sadd.s32 %s37, 1
      %s45 = ssub.s32 %s37, %s44
      %p46 = scmp.eq.s32.totalorder %s45, 0
      %s48 = sadd.s32 %s47, 1
      %s49 = scalar_select %p46, %s47, %s48
      %p52 = pneg %p46
      %p53 = scmp.eq.s32.totalorder %s37, 1
      %p54 = por %p52, %p53
      %p55 = scmp.ne.s32.totalorder %s47, %s50
      %p56 = scmp.eq.s32.totalorder %s37, 0
      %p57 = por %p55, %p56
      %p58 = scmp.ne.s32.totalorder %s47, %s50
      %p59 = scmp.eq.s32.totalorder %s42, 1
      %p60 = por %p58, %p59
      %p61 = scmp.ne.s32.totalorder %s50, %s51
      %p62 = scmp.eq.s32.totalorder %s42, 0
      %p63 = por %p61, %p62
      %p64 = scmp.ne.s32.totalorder %s50, %s51
      %p65 = scmp.eq.s32.totalorder %s43, 1
      %p66 = por %p64, %p65
      %p68 = scmp.ne.s32.totalorder %s51, %s67
      %p69 = scmp.eq.s32.totalorder %s43, 0
      %p70 = por %p68, %p69
      %s71 = ssub.s32 %s37, %s44
      %p72 = scmp.eq.s32.totalorder %s71, 0
      %s74 = sadd.s32 %s73, 1
      %s75 = scalar_select %p72, %s73, %s74
      %p78 = pneg %p72
      %p79 = scmp.eq.s32.totalorder %s37, 1
      %p80 = por %p78, %p79
      %p81 = scmp.ne.s32.totalorder %s73, %s76
      %p82 = scmp.eq.s32.totalorder %s37, 0
      %p83 = por %p81, %p82
      %p84 = scmp.ne.s32.totalorder %s73, %s76
      %p85 = scmp.eq.s32.totalorder %s42, 1
      %p86 = por %p84, %p85
      %p87 = scmp.ne.s32.totalorder %s76, %s77
      %p88 = scmp.eq.s32.totalorder %s42, 0
      %p89 = por %p87, %p88
      %p90 = scmp.ne.s32.totalorder %s76, %s77
      %p91 = scmp.eq.s32.totalorder %s43, 1
      %p92 = por %p90, %p91
      %p94 = scmp.ne.s32.totalorder %s77, %s93
      %p95 = scmp.eq.s32.totalorder %s43, 0
      %p96 = por %p94, %p95
      %s97 = ssub.s32 %s37, %s44
      %p98 = scmp.eq.s32.totalorder %s97, 0
      %s100 = sadd.s32 %s99, 1
      %s101 = scalar_select %p98, %s99, %s100
      %p104 = pneg %p98
      %p105 = scmp.eq.s32.totalorder %s37, 1
      %p106 = por %p104, %p105
      %p107 = scmp.ne.s32.totalorder %s99, %s102
      %p108 = scmp.eq.s32.totalorder %s37, 0
      %p109 = por %p107, %p108
      %p110 = scmp.ne.s32.totalorder %s99, %s102
      %p111 = scmp.eq.s32.totalorder %s42, 1
      %p112 = por %p110, %p111
      %p113 = scmp.ne.s32.totalorder %s102, %s103
      %p114 = scmp.eq.s32.totalorder %s42, 0
      %p115 = por %p113, %p114
      %p116 = scmp.ne.s32.totalorder %s102, %s103
      %p117 = scmp.eq.s32.totalorder %s43, 1
      %p118 = por %p116, %p117
      %p120 = scmp.ne.s32.totalorder %s103, %s119
      %p121 = scmp.eq.s32.totalorder %s43, 0
      %p122 = por %p120, %p121
      %s124 = sadd.s32 %s123, 1
      %p127 = scmp.eq.s32.totalorder %s37, 1
      %p128 = scmp.ne.s32.totalorder %s123, %s125
      %p129 = scmp.eq.s32.totalorder %s37, 0
      %p130 = por %p128, %p129
      %p131 = scmp.ne.s32.totalorder %s123, %s125
      %p132 = scmp.eq.s32.totalorder %s42, 1
      %p133 = por %p131, %p132
      %p134 = scmp.ne.s32.totalorder %s125, %s126
      %p135 = scmp.eq.s32.totalorder %s42, 0
      %p136 = por %p134, %p135
      %p137 = scmp.ne.s32.totalorder %s125, %s126
      %p138 = scmp.eq.s32.totalorder %s43, 1
      %p139 = por %p137, %p138
      %p141 = scmp.ne.s32.totalorder %s126, %s140
      %p142 = scmp.eq.s32.totalorder %s43, 0
      %p143 = por %p141, %p142
      %s145 = sadd.s32 %s144, 1
      %p148 = scmp.eq.s32.totalorder %s37, 1
      %p149 = scmp.ne.s32.totalorder %s144, %s146
      %p150 = scmp.eq.s32.totalorder %s37, 0
      %p151 = por %p149, %p150
      %p152 = scmp.ne.s32.totalorder %s144, %s146
      %p153 = scmp.eq.s32.totalorder %s42, 1
      %p154 = por %p152, %p153
      %p155 = scmp.ne.s32.totalorder %s146, %s147
      %p156 = scmp.eq.s32.totalorder %s42, 0
      %p157 = por %p155, %p156
      %p158 = scmp.ne.s32.totalorder %s146, %s147
      %p159 = scmp.eq.s32.totalorder %s43, 1
      %p160 = por %p158, %p159
      %p162 = scmp.ne.s32.totalorder %s147, %s161
      %p163 = scmp.eq.s32.totalorder %s43, 0
      %p164 = por %p162, %p163
      %s166 = sadd.s32 %s165, 1
      %p169 = scmp.eq.s32.totalorder %s37, 1
      %p170 = scmp.ne.s32.totalorder %s165, %s167
      %p171 = scmp.eq.s32.totalorder %s37, 0
      %p172 = por %p170, %p171
      %p173 = scmp.ne.s32.totalorder %s165, %s167
      %p174 = scmp.eq.s32.totalorder %s42, 1
      %p175 = por %p173, %p174
      %p176 = scmp.ne.s32.totalorder %s167, %s168
      %p177 = scmp.eq.s32.totalorder %s42, 0
      %p178 = por %p176, %p177
      %p179 = scmp.ne.s32.totalorder %s167, %s168
      %p180 = scmp.eq.s32.totalorder %s43, 1
      %p181 = por %p179, %p180
      %p183 = scmp.ne.s32.totalorder %s168, %s182
      %p184 = scmp.eq.s32.totalorder %s43, 0
      %p185 = por %p183, %p184
      %s187 = sadd.s32 %s186, 1
      %p190 = scmp.eq.s32.totalorder %s37, 1
      %p191 = scmp.ne.s32.totalorder %s186, %s188
      %p192 = scmp.eq.s32.totalorder %s37, 0
      %p193 = por %p191, %p192
      %p194 = scmp.ne.s32.totalorder %s186, %s188
      %p195 = scmp.eq.s32.totalorder %s42, 1
      %p196 = por %p194, %p195
      %p197 = scmp.ne.s32.totalorder %s188, %s189
      %p198 = scmp.eq.s32.totalorder %s42, 0
      %p199 = por %p197, %p198
      %p200 = scmp.ne.s32.totalorder %s188, %s189
      %p201 = scmp.eq.s32.totalorder %s43, 1
      %p202 = por %p200, %p201
      %p204 = scmp.ne.s32.totalorder %s189, %s203
      %p205 = scmp.eq.s32.totalorder %s43, 0
      %p206 = por %p204, %p205
      %s208 = sadd.s32 %s207, 1
      %p211 = scmp.eq.s32.totalorder %s37, 1
      %p212 = scmp.ne.s32.totalorder %s207, %s209
      %p213 = scmp.eq.s32.totalorder %s37, 0
      %p214 = por %p212, %p213
      %p215 = scmp.ne.s32.totalorder %s207, %s209
      %p216 = scmp.eq.s32.totalorder %s42, 1
      %p217 = por %p215, %p216
      %p218 = scmp.ne.s32.totalorder %s209, %s210
      %p219 = scmp.eq.s32.totalorder %s42, 0
      %p220 = por %p218, %p219
      %p221 = scmp.ne.s32.totalorder %s209, %s210
      %p222 = scmp.eq.s32.totalorder %s43, 1
      %p223 = por %p221, %p222
      %p225 = scmp.ne.s32.totalorder %s210, %s224
      %p226 = scmp.eq.s32.totalorder %s43, 0
      %p227 = por %p225, %p226
      %s229 = sadd.s32 %s228, 1
      %p232 = scmp.eq.s32.totalorder %s37, 1
      %p233 = scmp.ne.s32.totalorder %s228, %s230
      %p234 = scmp.eq.s32.totalorder %s37, 0
      %p235 = por %p233, %p234
      %p236 = scmp.ne.s32.totalorder %s228, %s230
      %p237 = scmp.eq.s32.totalorder %s42, 1
      %p238 = por %p236, %p237
      %p239 = scmp.ne.s32.totalorder %s230, %s231
      %p240 = scmp.eq.s32.totalorder %s42, 0
      %p241 = por %p239, %p240
      %p242 = scmp.ne.s32.totalorder %s230, %s231
      %p243 = scmp.eq.s32.totalorder %s43, 1
      %p244 = por %p242, %p243
      %p246 = scmp.ne.s32.totalorder %s231, %s245
      %p247 = scmp.eq.s32.totalorder %s43, 0
      %p248 = por %p246, %p247
      %s250 = sadd.s32 %s249, 1
      %p253 = scmp.eq.s32.totalorder %s37, 1
      %p254 = scmp.ne.s32.totalorder %s249, %s251
      %p255 = scmp.eq.s32.totalorder %s37, 0
      %p256 = por %p254, %p255
      %p257 = scmp.ne.s32.totalorder %s249, %s251
      %p258 = scmp.eq.s32.totalorder %s42, 1
      %p259 = por %p257, %p258
      %p260 = scmp.ne.s32.totalorder %s251, %s252
      %p261 = scmp.eq.s32.totalorder %s42, 0
      %p262 = por %p260, %p261
      %p263 = scmp.ne.s32.totalorder %s251, %s252
      %p264 = scmp.eq.s32.totalorder %s43, 1
      %p265 = por %p263, %p264
      %p267 = scmp.ne.s32.totalorder %s252, %s266
      %p268 = scmp.eq.s32.totalorder %s43, 0
      %p269 = por %p267, %p268
      %s271 = sadd.s32 %s270, 1
      %p274 = scmp.eq.s32.totalorder %s37, 1
      %p275 = scmp.ne.s32.totalorder %s270, %s272
      %p276 = scmp.eq.s32.totalorder %s37, 0
      %p277 = por %p275, %p276
      %p278 = scmp.ne.s32.totalorder %s270, %s272
      %p279 = scmp.eq.s32.totalorder %s42, 1
      %p280 = por %p278, %p279
      %p281 = scmp.ne.s32.totalorder %s272, %s273
      %p282 = scmp.eq.s32.totalorder %s42, 0
      %p283 = por %p281, %p282
      %p284 = scmp.ne.s32.totalorder %s272, %s273
      %p285 = scmp.eq.s32.totalorder %s43, 1
      %p286 = por %p284, %p285
      %p288 = scmp.ne.s32.totalorder %s273, %s287
      %p289 = scmp.eq.s32.totalorder %s43, 0
      %p290 = por %p288, %p289
      %s292 = sadd.s32 %s291, 1
      %p295 = scmp.eq.s32.totalorder %s37, 1
      %p296 = scmp.ne.s32.totalorder %s291, %s293
      %p297 = scmp.eq.s32.totalorder %s37, 0
      %p298 = por %p296, %p297
      %p299 = scmp.ne.s32.totalorder %s291, %s293
      %p300 = scmp.eq.s32.totalorder %s42, 1
      %p301 = por %p299, %p300
      %p302 = scmp.ne.s32.totalorder %s293, %s294
      %p303 = scmp.eq.s32.totalorder %s42, 0
      %p304 = por %p302, %p303
      %p305 = scmp.ne.s32.totalorder %s293, %s294
      %p306 = scmp.eq.s32.totalorder %s43, 1
      %p307 = por %p305, %p306
      %p309 = scmp.ne.s32.totalorder %s294, %s308
      %p310 = scmp.eq.s32.totalorder %s43, 0
      %p311 = por %p309, %p310
      %s313 = sadd.s32 %s312, 1
      %p316 = scmp.eq.s32.totalorder %s37, 1
      %p317 = scmp.ne.s32.totalorder %s312, %s314
      %p318 = scmp.eq.s32.totalorder %s37, 0
      %p319 = por %p317, %p318
      %p320 = scmp.ne.s32.totalorder %s312, %s314
      %p321 = scmp.eq.s32.totalorder %s42, 1
      %p322 = por %p320, %p321
      %p323 = scmp.ne.s32.totalorder %s314, %s315
      %p324 = scmp.eq.s32.totalorder %s42, 0
      %p325 = por %p323, %p324
      %p326 = scmp.ne.s32.totalorder %s314, %s315
      %p327 = scmp.eq.s32.totalorder %s43, 1
      %p328 = por %p326, %p327
      %p330 = scmp.ne.s32.totalorder %s315, %s329
      %p331 = scmp.eq.s32.totalorder %s43, 0
      %p332 = por %p330, %p331
      %s334 = sadd.s32 %s333, 1
      %p337 = scmp.eq.s32.totalorder %s37, 1
      %p338 = scmp.ne.s32.totalorder %s333, %s335
      %p339 = scmp.eq.s32.totalorder %s37, 0
      %p340 = por %p338, %p339
      %p341 = scmp.ne.s32.totalorder %s333, %s335
      %p342 = scmp.eq.s32.totalorder %s42, 1
      %p343 = por %p341, %p342
      %p344 = scmp.ne.s32.totalorder %s335, %s336
      %p345 = scmp.eq.s32.totalorder %s42, 0
      %p346 = por %p344, %p345
      %p347 = scmp.ne.s32.totalorder %s335, %s336
      %p348 = scmp.eq.s32.totalorder %s43, 1
      %p349 = por %p347, %p348
      %p351 = scmp.ne.s32.totalorder %s336, %s350
      %p352 = scmp.eq.s32.totalorder %s43, 0
      %p353 = por %p351, %p352
      %s355 = sadd.s32 %s354, 1
      %p358 = scmp.eq.s32.totalorder %s37, 1
      %p359 = scmp.ne.s32.totalorder %s354, %s356
      %p360 = scmp.eq.s32.totalorder %s37, 0
      %p361 = por %p359, %p360
      %p362 = scmp.ne.s32.totalorder %s354, %s356
      %p363 = scmp.eq.s32.totalorder %s42, 1
      %p364 = por %p362, %p363
      %p365 = scmp.ne.s32.totalorder %s356, %s357
      %p366 = scmp.eq.s32.totalorder %s42, 0
      %p367 = por %p365, %p366
      %p368 = scmp.ne.s32.totalorder %s356, %s357
      %p369 = scmp.eq.s32.totalorder %s43, 1
      %p370 = por %p368, %p369
      %p372 = scmp.ne.s32.totalorder %s357, %s371
      %p373 = scmp.eq.s32.totalorder %s43, 0
      %p374 = por %p372, %p373
      %s376 = sadd.s32 %s375, 1
      %p379 = scmp.eq.s32.totalorder %s37, 1
      %p380 = scmp.ne.s32.totalorder %s375, %s377
      %p381 = scmp.eq.s32.totalorder %s37, 0
      %p382 = por %p380, %p381
      %p383 = scmp.ne.s32.totalorder %s375, %s377
      %p384 = scmp.eq.s32.totalorder %s42, 1
      %p385 = por %p383, %p384
      %p386 = scmp.ne.s32.totalorder %s377, %s378
      %p387 = scmp.eq.s32.totalorder %s42, 0
      %p388 = por %p386, %p387
      %p389 = scmp.ne.s32.totalorder %s377, %s378
      %p390 = scmp.eq.s32.totalorder %s43, 1
      %p391 = por %p389, %p390
      %p393 = scmp.ne.s32.totalorder %s378, %s392
      %p394 = scmp.eq.s32.totalorder %s43, 0
      %p395 = por %p393, %p394
      %s397 = sadd.s32 %s396, 1
      %p400 = scmp.eq.s32.totalorder %s37, 1
      %p401 = scmp.ne.s32.totalorder %s396, %s398
      %p402 = scmp.eq.s32.totalorder %s37, 0
      %p403 = por %p401, %p402
      %p404 = scmp.ne.s32.totalorder %s396, %s398
      %p405 = scmp.eq.s32.totalorder %s42, 1
      %p406 = por %p404, %p405
      %p407 = scmp.ne.s32.totalorder %s398, %s399
      %p408 = scmp.eq.s32.totalorder %s42, 0
      %p409 = por %p407, %p408
      %p410 = scmp.ne.s32.totalorder %s398, %s399
      %p411 = scmp.eq.s32.totalorder %s43, 1
      %p412 = por %p410, %p411
      %p414 = scmp.ne.s32.totalorder %s399, %s413
      %p415 = scmp.eq.s32.totalorder %s43, 0
      %p416 = por %p414, %p415
      %s418 = sadd.s32 %s417, 1
      %p421 = scmp.eq.s32.totalorder %s37, 1
      %p422 = scmp.ne.s32.totalorder %s417, %s419
      %p423 = scmp.eq.s32.totalorder %s37, 0
      %p424 = por %p422, %p423
      %p425 = scmp.ne.s32.totalorder %s417, %s419
      %p426 = scmp.eq.s32.totalorder %s42, 1
      %p427 = por %p425, %p426
      %p428 = scmp.ne.s32.totalorder %s419, %s420
      %p429 = scmp.eq.s32.totalorder %s42, 0
      %p430 = por %p428, %p429
      %p431 = scmp.ne.s32.totalorder %s419, %s420
      %p432 = scmp.eq.s32.totalorder %s43, 1
      %p433 = por %p431, %p432
      %p435 = scmp.ne.s32.totalorder %s420, %s434
      %p436 = scmp.eq.s32.totalorder %s43, 0
      %p437 = por %p435, %p436
      %s438 = ssub.s32 %s37, %s44
      %p439 = scmp.eq.s32.totalorder %s438, 0
      %s441 = sadd.s32 %s440, 1
      %s442 = scalar_select %p439, %s440, %s441
      %p445 = pneg %p439
      %p446 = scmp.eq.s32.totalorder %s37, 1
      %p447 = por %p445, %p446
      %p448 = scmp.ne.s32.totalorder %s440, %s443
      %p449 = scmp.eq.s32.totalorder %s37, 0
      %p450 = por %p448, %p449
      %p451 = scmp.ne.s32.totalorder %s440, %s443
      %p452 = scmp.eq.s32.totalorder %s42, 1
      %p453 = por %p451, %p452
      %p454 = scmp.ne.s32.totalorder %s443, %s444
      %p455 = scmp.eq.s32.totalorder %s42, 0
      %p456 = por %p454, %p455
      %p457 = scmp.ne.s32.totalorder %s443, %s444
      %p458 = scmp.eq.s32.totalorder %s43, 1
      %p459 = por %p457, %p458
      %p461 = scmp.ne.s32.totalorder %s444, %s460
      %p462 = scmp.eq.s32.totalorder %s43, 0
      %p463 = por %p461, %p462
      %p464 = scmp.le.s32.totalorder 1, %s37
      %p465 = scmp.lt.s32.totalorder %s37, 3
      %p466 = pnand %p464, %p465
      %p467 = pneg %p466
      // Predicated region
      $region9: #{dec_fcn_forward.1} parent=5 // pred_check
        _
      $region10: #{dec_fcn_forward.1} parent=5 // pred_check_branch
        %469 = sbr.rel (%p466) target = $region12
      $region11: #{dec_fcn_forward.1} parent=5 // pred_region
        %s470 = ssub.s32 %s37, 1
        // Predicated region
        $region13: #{dec_fcn_forward.1} parent=11 // pred_check
          %p471 = pneg %p136
        $region14: #{dec_fcn_forward.1} parent=11 // pred_check_branch
          %473 = sbr.rel (%p471) target = $region16
        $region15: #{dec_fcn_forward.1} parent=11 // pred_region
          %475 = vsyncadd [#allocation6], 0
          %s476 = sshll.u32 %s3, 4
          %s477 = int_to_ptr.hbm [resolvable:$true] %s476
          %s478 = sshll.u32 [#allocation5], 4
          %s479 = int_to_ptr.vmem [resolvable:$true] %s478
          %484 = dma.hbm_to_vmem [thread:$0]  %s477, 36864, %s479, [#allocation6], 64, 64, 4
        $region16: #{dec_fcn_forward.1} parent=11 // pred_fallthru
          _
        // Predicated region
        $region17: #{dec_fcn_forward.1} parent=11 // pred_check
          %p485 = pneg %p157
        $region18: #{dec_fcn_forward.1} parent=11 // pred_check_branch
          %487 = sbr.rel (%p485) target = $region20
        $region19: #{dec_fcn_forward.1} parent=11 // pred_region
          %489 = vsyncadd [#allocation9], 0
          %s491 = sshll.u32 %s4, 4
          %s492 = int_to_ptr.hbm [resolvable:$true] %s491
          %s493 = sshll.u32 [#allocation8], 4
          %s494 = int_to_ptr.vmem [resolvable:$true] %s493
          %496 = dma.hbm_to_vmem [thread:$0]  %s492, 16, %s494, [#allocation9]
        $region20: #{dec_fcn_forward.1} parent=11 // pred_fallthru
          _
        // Predicated region
        $region21: #{dec_fcn_forward.1} parent=11 // pred_check
          %p497 = pneg %p178
        $region22: #{dec_fcn_forward.1} parent=11 // pred_check_branch
          %499 = sbr.rel (%p497) target = $region24
        $region23: #{dec_fcn_forward.1} parent=11 // pred_region
          %501 = vsyncadd [#allocation9], 0
          %s503 = sshll.u32 %s5, 4
          %s504 = int_to_ptr.hbm [resolvable:$true] %s503
          %s505 = sshll.u32 [#allocation10], 4
          %s506 = int_to_ptr.vmem [resolvable:$true] %s505
          %508 = dma.hbm_to_vmem [thread:$0]  %s504, 16, %s506, [#allocation9]
        $region24: #{dec_fcn_forward.1} parent=11 // pred_fallthru
          _
        // Predicated region
        $region25: #{dec_fcn_forward.1} parent=11 // pred_check
          %p509 = pneg %p199
        $region26: #{dec_fcn_forward.1} parent=11 // pred_check_branch
          %511 = sbr.rel (%p509) target = $region28
        $region27: #{dec_fcn_forward.1} parent=11 // pred_region
          %513 = vsyncadd [#allocation12], 0
          %s514 = sshll.u32 %s6, 4
          %s515 = int_to_ptr.hbm [resolvable:$true] %s514
          %s516 = sshll.u32 [#allocation11], 4
          %s517 = int_to_ptr.vmem [resolvable:$true] %s516
          %522 = dma.hbm_to_vmem [thread:$0]  %s515, 1024, %s517, [#allocation12], 64, 64, 4
        $region28: #{dec_fcn_forward.1} parent=11 // pred_fallthru
          _
        // Predicated region
        $region29: #{dec_fcn_forward.1} parent=11 // pred_check
          %p523 = pneg %p220
        $region30: #{dec_fcn_forward.1} parent=11 // pred_check_branch
          %525 = sbr.rel (%p523) target = $region32
        $region31: #{dec_fcn_forward.1} parent=11 // pred_region
          _
        $region32: #{dec_fcn_forward.1} parent=11 // pred_fallthru
          _
        // Predicated region
        $region33: #{dec_fcn_forward.1} parent=11 // pred_check
          %p526 = pneg %p241
        $region34: #{dec_fcn_forward.1} parent=11 // pred_check_branch
          %528 = sbr.rel (%p526) target = $region36
        $region35: #{dec_fcn_forward.1} parent=11 // pred_region
          %530 = vsyncadd [#allocation12], 0
          %s531 = sshll.u32 %s8, 4
          %s532 = int_to_ptr.hbm [resolvable:$true] %s531
          %s533 = sshll.u32 [#allocation13], 4
          %s534 = int_to_ptr.vmem [resolvable:$true] %s533
          %539 = dma.hbm_to_vmem [thread:$0]  %s532, 4096, %s534, [#allocation12], 64, 64, 4
        $region36: #{dec_fcn_forward.1} parent=11 // pred_fallthru
          _
        // Predicated region
        $region37: #{dec_fcn_forward.1} parent=11 // pred_check
          %p540 = pneg %p262
        $region38: #{dec_fcn_forward.1} parent=11 // pred_check_branch
          %542 = sbr.rel (%p540) target = $region40
        $region39: #{dec_fcn_forward.1} parent=11 // pred_region
          _
        $region40: #{dec_fcn_forward.1} parent=11 // pred_fallthru
          _
        // Predicated region
        $region41: #{dec_fcn_forward.1} parent=11 // pred_check
          %p543 = pneg %p283
        $region42: #{dec_fcn_forward.1} parent=11 // pred_check_branch
          %545 = sbr.rel (%p543) target = $region44
        $region43: #{dec_fcn_forward.1} parent=11 // pred_region
          %547 = vsyncadd [#allocation15], 0
          %s548 = sshll.u32 %s10, 4
          %s549 = int_to_ptr.hbm [resolvable:$true] %s548
          %s550 = sshll.u32 [#allocation14], 4
          %s551 = int_to_ptr.vmem [resolvable:$true] %s550
          %556 = dma.hbm_to_vmem [thread:$0]  %s549, 2048, %s551, [#allocation15], 64, 64, 4
        $region44: #{dec_fcn_forward.1} parent=11 // pred_fallthru
          _
        // Predicated region
        $region45: #{dec_fcn_forward.1} parent=11 // pred_check
          %p557 = pneg %p304
        $region46: #{dec_fcn_forward.1} parent=11 // pred_check_branch
          %559 = sbr.rel (%p557) target = $region48
        $region47: #{dec_fcn_forward.1} parent=11 // pred_region
          _
        $region48: #{dec_fcn_forward.1} parent=11 // pred_fallthru
          _
        // Predicated region
        $region49: #{dec_fcn_forward.1} parent=11 // pred_check
          %p560 = pneg %p325
        $region50: #{dec_fcn_forward.1} parent=11 // pred_check_branch
          %562 = sbr.rel (%p560) target = $region52
        $region51: #{dec_fcn_forward.1} parent=11 // pred_region
          _
        $region52: #{dec_fcn_forward.1} parent=11 // pred_fallthru
          _
        // Predicated region
        $region53: #{dec_fcn_forward.1} parent=11 // pred_check
          %p563 = pneg %p346
        $region54: #{dec_fcn_forward.1} parent=11 // pred_check_branch
          %565 = sbr.rel (%p563) target = $region56
        $region55: #{dec_fcn_forward.1} parent=11 // pred_region
          _
        $region56: #{dec_fcn_forward.1} parent=11 // pred_fallthru
          _
        // Predicated region
        $region57: #{dec_fcn_forward.1} parent=11 // pred_check
          %p566 = pneg %p367
        $region58: #{dec_fcn_forward.1} parent=11 // pred_check_branch
          %568 = sbr.rel (%p566) target = $region60
        $region59: #{dec_fcn_forward.1} parent=11 // pred_region
          _
        $region60: #{dec_fcn_forward.1} parent=11 // pred_fallthru
          _
        // Predicated region
        $region61: #{dec_fcn_forward.1} parent=11 // pred_check
          %p569 = pneg %p388
        $region62: #{dec_fcn_forward.1} parent=11 // pred_check_branch
          %571 = sbr.rel (%p569) target = $region64
        $region63: #{dec_fcn_forward.1} parent=11 // pred_region
          _
        $region64: #{dec_fcn_forward.1} parent=11 // pred_fallthru
          _
        // Predicated region
        $region65: #{dec_fcn_forward.1} parent=11 // pred_check
          %p572 = pneg %p409
        $region66: #{dec_fcn_forward.1} parent=11 // pred_check_branch
          %574 = sbr.rel (%p572) target = $region68
        $region67: #{dec_fcn_forward.1} parent=11 // pred_region
          _
        $region68: #{dec_fcn_forward.1} parent=11 // pred_fallthru
          _
        // Predicated region
        $region69: #{dec_fcn_forward.1} parent=11 // pred_check
          %p575 = pneg %p430
        $region70: #{dec_fcn_forward.1} parent=11 // pred_check_branch
          %577 = sbr.rel (%p575) target = $region72
        $region71: #{dec_fcn_forward.1} parent=11 // pred_region
          _
        $region72: #{dec_fcn_forward.1} parent=11 // pred_fallthru
          _
      $region12: #{dec_fcn_forward.1} parent=5 // pred_fallthru
        _
      %p578 = scmp.lt.s32.totalorder %s37, 2
      // Predicated region
      $region73: #{dec_fcn_forward.1} parent=5 // pred_check
        %p579 = pneg %p578
      $region74: #{dec_fcn_forward.1} parent=5 // pred_check_branch
        %581 = sbr.rel (%p579) target = $region76
      $region75: #{dec_fcn_forward.1} parent=5 // pred_region
        // Predicated region
        $region77: #{dec_fcn_forward.1} parent=75 // pred_check
          %p582 = pneg %p57
        $region78: #{dec_fcn_forward.1} parent=75 // pred_check_branch
          %584 = sbr.rel (%p582) target = $region80
        $region79: #{dec_fcn_forward.1} parent=75 // pred_region
          %p585 = scmp.lt.s32.totalorder %s37, 1
          %s586 = scalar_select %p585, %s37, 1
          %s587 = smul.addr %s586, 16
          %s588 = smul.addr %s587, 2
          %s589 = scalar_lea.vmem %s0, %s588
        $region80: #{dec_fcn_forward.1} parent=75 // pred_fallthru
          _
        // Predicated region
        $region81: #{dec_fcn_forward.1} parent=75 // pred_check
          %p590 = pneg %p83
        $region82: #{dec_fcn_forward.1} parent=75 // pred_check_branch
          %592 = sbr.rel (%p590) target = $region84
        $region83: #{dec_fcn_forward.1} parent=75 // pred_region
          %p593 = scmp.lt.s32.totalorder %s37, 1
          %s594 = scalar_select %p593, %s37, 1
          %s595 = smul.addr %s594, 16
          %s596 = smul.addr %s595, 2
          %s597 = scalar_lea.vmem %s1, %s596
        $region84: #{dec_fcn_forward.1} parent=75 // pred_fallthru
          _
        // Predicated region
        $region85: #{dec_fcn_forward.1} parent=75 // pred_check
          %p598 = pneg %p109
        $region86: #{dec_fcn_forward.1} parent=75 // pred_check_branch
          %600 = sbr.rel (%p598) target = $region88
        $region87: #{dec_fcn_forward.1} parent=75 // pred_region
          %p601 = scmp.lt.s32.totalorder %s37, 1
          %s602 = scalar_select %p601, %s37, 1
          %s603 = smul.addr %s602, 16
          %s604 = smul.addr %s603, 4
          %s605 = scalar_lea.vmem %s2, %s604
        $region88: #{dec_fcn_forward.1} parent=75 // pred_fallthru
          _
      $region76: #{dec_fcn_forward.1} parent=5 // pred_fallthru
        _
      %p606 = scmp.le.s32.totalorder 1, %s37
      %p607 = scmp.lt.s32.totalorder %s37, 3
      %p608 = pnand %p606, %p607
      %p609 = pneg %p608
      // Predicated region
      $region89: #{dec_fcn_forward.1} parent=5 // pred_check
        _
      $region90: #{dec_fcn_forward.1} parent=5 // pred_check_branch
        %611 = sbr.rel (%p608) target = $region92
      $region91: #{dec_fcn_forward.1} parent=5 // pred_region
        %s612 = ssub.s32 %s37, 1
        // Predicated region
        $region93: #{dec_fcn_forward.1} parent=91 // pred_check
          %p613 = pneg %p136
        $region94: #{dec_fcn_forward.1} parent=91 // pred_check_branch
          %615 = sbr.rel (%p613) target = $region96
        $region95: #{dec_fcn_forward.1} parent=91 // pred_region
          %617 = dma.done [#allocation6], 36864
        $region96: #{dec_fcn_forward.1} parent=91 // pred_fallthru
          _
        // Predicated region
        $region97: #{dec_fcn_forward.1} parent=91 // pred_check
          %p618 = pneg %p157
        $region98: #{dec_fcn_forward.1} parent=91 // pred_check_branch
          %620 = sbr.rel (%p618) target = $region100
        $region99: #{dec_fcn_forward.1} parent=91 // pred_region
          %622 = dma.done [#allocation9], 16
        $region100: #{dec_fcn_forward.1} parent=91 // pred_fallthru
          _
        // Predicated region
        $region101: #{dec_fcn_forward.1} parent=91 // pred_check
          %p623 = pneg %p178
        $region102: #{dec_fcn_forward.1} parent=91 // pred_check_branch
          %625 = sbr.rel (%p623) target = $region104
        $region103: #{dec_fcn_forward.1} parent=91 // pred_region
          %627 = dma.done [#allocation9], 16
        $region104: #{dec_fcn_forward.1} parent=91 // pred_fallthru
          _
        // Predicated region
        $region105: #{dec_fcn_forward.1} parent=91 // pred_check
          %p628 = pneg %p199
        $region106: #{dec_fcn_forward.1} parent=91 // pred_check_branch
          %630 = sbr.rel (%p628) target = $region108
        $region107: #{dec_fcn_forward.1} parent=91 // pred_region
          %632 = dma.done [#allocation12], 1024
        $region108: #{dec_fcn_forward.1} parent=91 // pred_fallthru
          _
        // Predicated region
        $region109: #{dec_fcn_forward.1} parent=91 // pred_check
          %p633 = pneg %p241
        $region110: #{dec_fcn_forward.1} parent=91 // pred_check_branch
          %635 = sbr.rel (%p633) target = $region112
        $region111: #{dec_fcn_forward.1} parent=91 // pred_region
          %637 = dma.done [#allocation12], 4096
        $region112: #{dec_fcn_forward.1} parent=91 // pred_fallthru
          _
        // Predicated region
        $region113: #{dec_fcn_forward.1} parent=91 // pred_check
          %p638 = pneg %p283
        $region114: #{dec_fcn_forward.1} parent=91 // pred_check_branch
          %640 = sbr.rel (%p638) target = $region116
        $region115: #{dec_fcn_forward.1} parent=91 // pred_region
          %642 = dma.done [#allocation15], 2048
        $region116: #{dec_fcn_forward.1} parent=91 // pred_fallthru
          _
        %p643 = scmp.lt.s32.totalorder %s42, 1
        %s644 = scalar_select %p643, %s42, 1
        %s645 = smul.addr %s644, 16
        %s646 = smul.addr %s645, 2
        %s647 = scalar_lea.vmem %s0, %s646
        %p648 = pneg %p63
        %p649 = pneg %p60
        %p650 = scmp.lt.s32.totalorder %s42, 1
        %s651 = scalar_select %p650, %s42, 1
        %s652 = smul.addr %s651, 16
        %s653 = smul.addr %s652, 2
        %s654 = scalar_lea.vmem %s1, %s653
        %p655 = pneg %p89
        %p656 = pneg %p86
        %p657 = scmp.lt.s32.totalorder %s42, 1
        %s658 = scalar_select %p657, %s42, 1
        %s659 = smul.addr %s658, 16
        %s660 = smul.addr %s659, 4
        %s661 = scalar_lea.vmem %s2, %s660
        %p662 = pneg %p115
        %p663 = pneg %p112
        %p664 = pneg %p136
        %p665 = pneg %p133
        %p666 = pneg %p157
        %p667 = pneg %p154
        %p668 = pneg %p178
        %p669 = pneg %p175
        %p670 = pneg %p199
        %p671 = pneg %p196
        %p672 = pneg %p220
        %p673 = pneg %p217
        %p674 = pneg %p241
        %p675 = pneg %p238
        %p676 = pneg %p262
        %p677 = pneg %p259
        %p678 = pneg %p283
        %p679 = pneg %p280
        %p680 = pneg %p304
        %p681 = pneg %p301
        %p682 = pneg %p325
        %p683 = pneg %p322
        %p684 = pneg %p346
        %p685 = pneg %p343
        %p686 = pneg %p367
        %p687 = pneg %p364
        %p688 = pneg %p388
        %p689 = pneg %p385
        %p690 = pneg %p409
        %p691 = pneg %p406
        %p692 = pneg %p430
        %p693 = pneg %p427
        %p694 = pneg %p456
        %p695 = pneg %p453
        %s696 = sand.u32 %s443, 1
        %s697 = scalar_lea.sflag [#allocation7], %s696
        %s698 = sand.u32 %s443, 1
        %s699 = smul.addr %s698, 16
        %s700 = scalar_lea.vmem [#allocation16], %s699
        %p701 = scmp.lt.s32.totalorder %s42, 1
        %s702 = scalar_select %p701, %s42, 1
        %s703 = smul.addr %s702, 16
        %s704 = smul.addr %s703, 2
        %s705 = scalar_lea.vmem %s0, %s704
        %p706 = scmp.lt.s32.totalorder %s42, 1
        %s707 = scalar_select %p706, %s42, 1
        %s708 = smul.addr %s707, 16
        %s709 = smul.addr %s708, 2
        %s710 = scalar_lea.vmem %s1, %s709
        %p711 = scmp.lt.s32.totalorder %s42, 1
        %s712 = scalar_select %p711, %s42, 1
        %s713 = smul.addr %s712, 16
        %s714 = smul.addr %s713, 4
        %s715 = scalar_lea.vmem %s2, %s714
        %v716 = vld [vmem:[%s705] sm:$0xff]
        %v717 = vld [vmem:[%s705 + $0x8] sm:$0xff]
        %v718 = vld [vmem:[%s705 + $0x10] sm:$0xff]
        %v719 = vld [vmem:[%s705 + $0x18] sm:$0xff]
        %721 = vst [vmem:[#allocation1] ss:$4 sm:$0xff] %v716
        %v722 = vld.sshfl [vmem:[#allocation1] sm:$0xff pattern:$0x73625140]
        %v724 = vld.sshfl [vmem:[#allocation1 + $0x8] sm:$0xff pattern:$0x73625140]
        %v726 = vld.sshfl [vmem:[#allocation1 + $0x10] sm:$0xff pattern:$0x73625140]
        %v728 = vld.sshfl [vmem:[#allocation1 + $0x18] sm:$0xff pattern:$0x73625140]
        %s731 = scalar_lea.vmem [#allocation1], 32
        %732 = vst [vmem:[%s731] ss:$4 sm:$0xff] %v717
        %v733 = vld.sshfl [vmem:[#allocation1 + $0x20] sm:$0xff pattern:$0x73625140]
        %v735 = vld.sshfl [vmem:[#allocation1 + $0x28] sm:$0xff pattern:$0x73625140]
        %v737 = vld.sshfl [vmem:[#allocation1 + $0x30] sm:$0xff pattern:$0x73625140]
        %v739 = vld.sshfl [vmem:[#allocation1 + $0x38] sm:$0xff pattern:$0x73625140]
        %741 = vst [vmem:[#allocation1] ss:$4 sm:$0xff] %v717
        %v742 = vld.sshfl [vmem:[#allocation1] sm:$0xff pattern:$0x73625140]
        %v744 = vld.sshfl [vmem:[#allocation1 + $0x8] sm:$0xff pattern:$0x73625140]
        %v746 = vld.sshfl [vmem:[#allocation1 + $0x10] sm:$0xff pattern:$0x73625140]
        %v748 = vld.sshfl [vmem:[#allocation1 + $0x18] sm:$0xff pattern:$0x73625140]
        %s751 = scalar_lea.vmem [#allocation1], 32
        %752 = vst [vmem:[%s751] ss:$4 sm:$0xff] %v718
        %v753 = vld.sshfl [vmem:[#allocation1 + $0x20] sm:$0xff pattern:$0x73625140]
        %v755 = vld.sshfl [vmem:[#allocation1 + $0x28] sm:$0xff pattern:$0x73625140]
        %v757 = vld.sshfl [vmem:[#allocation1 + $0x30] sm:$0xff pattern:$0x73625140]
        %v759 = vld.sshfl [vmem:[#allocation1 + $0x38] sm:$0xff pattern:$0x73625140]
        %761 = vst [vmem:[#allocation1] ss:$4 sm:$0xff] %v718
        %v762 = vld.sshfl [vmem:[#allocation1] sm:$0xff pattern:$0x73625140]
        %v764 = vld.sshfl [vmem:[#allocation1 + $0x8] sm:$0xff pattern:$0x73625140]
        %v766 = vld.sshfl [vmem:[#allocation1 + $0x10] sm:$0xff pattern:$0x73625140]
        %v768 = vld.sshfl [vmem:[#allocation1 + $0x18] sm:$0xff pattern:$0x73625140]
        %s771 = scalar_lea.vmem [#allocation1], 32
        %772 = vst [vmem:[%s771] ss:$4 sm:$0xff] %v719
        %v773 = vld.sshfl [vmem:[#allocation1 + $0x20] sm:$0xff pattern:$0x73625140]
        %v775 = vld.sshfl [vmem:[#allocation1 + $0x28] sm:$0xff pattern:$0x73625140]
        %v777 = vld.sshfl [vmem:[#allocation1 + $0x30] sm:$0xff pattern:$0x73625140]
        %v779 = vld.sshfl [vmem:[#allocation1 + $0x38] sm:$0xff pattern:$0x73625140]
        %v781 = vshrl.u32 %v722, 16
        %v783 = vshll.u32 %v722, 16
        %v785 = vrot.slane %v783, 1
        %v786 = vor.u32 %v781, %v785
        %v787 = vshrl.u32 %v724, 16
        %v789 = vshll.u32 %v724, 16
        %v791 = vrot.slane %v789, 1
        %v792 = vor.u32 %v787, %v791
        %v793 = vshrl.u32 %v726, 16
        %v795 = vshll.u32 %v726, 16
        %v797 = vrot.slane %v795, 1
        %v798 = vor.u32 %v793, %v797
        %v799 = vshrl.u32 %v728, 16
        %v801 = vshll.u32 %v728, 16
        %v803 = vrot.slane %v801, 1
        %v804 = vor.u32 %v799, %v803
        %v805 = vshrl.u32 %v742, 16
        %v807 = vshll.u32 %v742, 16
        %v809 = vrot.slane %v807, 1
        %v810 = vor.u32 %v805, %v809
        %v811 = vshrl.u32 %v744, 16
        %v813 = vshll.u32 %v744, 16
        %v815 = vrot.slane %v813, 1
        %v816 = vor.u32 %v811, %v815
        %v817 = vshrl.u32 %v746, 16
        %v819 = vshll.u32 %v746, 16
        %v821 = vrot.slane %v819, 1
        %v822 = vor.u32 %v817, %v821
        %v823 = vshrl.u32 %v748, 16
        %v825 = vshll.u32 %v748, 16
        %v827 = vrot.slane %v825, 1
        %v828 = vor.u32 %v823, %v827
        %v829 = vshrl.u32 %v762, 16
        %v831 = vshll.u32 %v762, 16
        %v833 = vrot.slane %v831, 1
        %v834 = vor.u32 %v829, %v833
        %v835 = vshrl.u32 %v764, 16
        %v837 = vshll.u32 %v764, 16
        %v839 = vrot.slane %v837, 1
        %v840 = vor.u32 %v835, %v839
        %v841 = vshrl.u32 %v766, 16
        %v843 = vshll.u32 %v766, 16
        %v845 = vrot.slane %v843, 1
        %v846 = vor.u32 %v841, %v845
        %v847 = vshrl.u32 %v768, 16
        %v849 = vshll.u32 %v768, 16
        %v851 = vrot.slane %v849, 1
        %v852 = vor.u32 %v847, %v851
        %v853 = vshrl.u32 %v733, 16
        %v855 = vshll.u32 %v733, 16
        %v857 = vrot.slane %v855, 1
        %v858 = vor.u32 %v853, %v857
        %v859 = vshrl.u32 %v735, 16
        %v861 = vshll.u32 %v735, 16
        %v863 = vrot.slane %v861, 1
        %v864 = vor.u32 %v859, %v863
        %v865 = vshrl.u32 %v737, 16
        %v867 = vshll.u32 %v737, 16
        %v869 = vrot.slane %v867, 1
        %v870 = vor.u32 %v865, %v869
        %v871 = vshrl.u32 %v739, 16
        %v873 = vshll.u32 %v739, 16
        %v875 = vrot.slane %v873, 1
        %v876 = vor.u32 %v871, %v875
        %v877 = vshrl.u32 %v753, 16
        %v879 = vshll.u32 %v753, 16
        %v881 = vrot.slane %v879, 1
        %v882 = vor.u32 %v877, %v881
        %v883 = vshrl.u32 %v755, 16
        %v885 = vshll.u32 %v755, 16
        %v887 = vrot.slane %v885, 1
        %v888 = vor.u32 %v883, %v887
        %v889 = vshrl.u32 %v757, 16
        %v891 = vshll.u32 %v757, 16
        %v893 = vrot.slane %v891, 1
        %v894 = vor.u32 %v889, %v893
        %v895 = vshrl.u32 %v759, 16
        %v897 = vshll.u32 %v759, 16
        %v899 = vrot.slane %v897, 1
        %v900 = vor.u32 %v895, %v899
        %v901 = vshrl.u32 %v773, 16
        %v903 = vshll.u32 %v773, 16
        %v905 = vrot.slane %v903, 1
        %v906 = vor.u32 %v901, %v905
        %v907 = vshrl.u32 %v775, 16
        %v909 = vshll.u32 %v775, 16
        %v911 = vrot.slane %v909, 1
        %v912 = vor.u32 %v907, %v911
        %v913 = vshrl.u32 %v777, 16
        %v915 = vshll.u32 %v777, 16
        %v917 = vrot.slane %v915, 1
        %v918 = vor.u32 %v913, %v917
        %v919 = vshrl.u32 %v779, 16
        %v921 = vshll.u32 %v779, 16
        %v923 = vrot.slane %v921, 1
        %v924 = vor.u32 %v919, %v923
        %v925 = vrot.slane %v722, 1
        %v926 = vrot.slane %v724, 1
        %v927 = vrot.slane %v726, 1
        %v928 = vrot.slane %v728, 1
        %v929 = vrot.slane %v742, 1
        %v930 = vrot.slane %v744, 1
        %v931 = vrot.slane %v746, 1
        %v932 = vrot.slane %v748, 1
        %v933 = vrot.slane %v762, 1
        %v934 = vrot.slane %v764, 1
        %v935 = vrot.slane %v766, 1
        %v936 = vrot.slane %v768, 1
        %v937 = vrot.slane %v733, 1
        %v938 = vrot.slane %v735, 1
        %v939 = vrot.slane %v737, 1
        %v940 = vrot.slane %v739, 1
        %v941 = vrot.slane %v753, 1
        %v942 = vrot.slane %v755, 1
        %v943 = vrot.slane %v757, 1
        %v944 = vrot.slane %v759, 1
        %v945 = vrot.slane %v773, 1
        %v946 = vrot.slane %v775, 1
        %v947 = vrot.slane %v777, 1
        %v948 = vrot.slane %v779, 1
        %v949 = vrot.slane %v724, 7
        %v950 = vrot.slane %v726, 6
        %v951 = vrot.slane %v728, 5
        %v952 = vrot.slane %v742, 4
        %v953 = vrot.slane %v744, 3
        %v954 = vrot.slane %v746, 2
        %v955 = vrot.slane %v764, 7
        %v956 = vrot.slane %v766, 6
        %v957 = vrot.slane %v768, 5
        %v958 = vrot.slane %v786, 4
        %v959 = vrot.slane %v792, 3
        %v960 = vrot.slane %v798, 2
        %v961 = vrot.slane %v804, 1
        %v962 = vrot.slane %v816, 7
        %v963 = vrot.slane %v822, 6
        %v964 = vrot.slane %v828, 5
        %v965 = vrot.slane %v834, 4
        %v966 = vrot.slane %v840, 3
        %v967 = vrot.slane %v846, 2
        %v968 = vrot.slane %v852, 1
        %v969 = vrot.slane %v926, 7
        %v970 = vrot.slane %v927, 6
        %v971 = vrot.slane %v928, 5
        %v972 = vrot.slane %v929, 4
        %v973 = vrot.slane %v930, 3
        %v974 = vrot.slane %v931, 2
        %v975 = vrot.slane %v932, 1
        %v976 = vrot.slane %v934, 7
        %v977 = vrot.slane %v935, 6
        %v978 = vrot.slane %v936, 5
        %v979 = vrot.slane %v735, 7
        %v980 = vrot.slane %v737, 6
        %v981 = vrot.slane %v739, 5
        %v982 = vrot.slane %v753, 4
        %v983 = vrot.slane %v755, 3
        %v984 = vrot.slane %v757, 2
        %v985 = vrot.slane %v775, 7
        %v986 = vrot.slane %v777, 6
        %v987 = vrot.slane %v779, 5
        %v988 = vrot.slane %v858, 4
        %v989 = vrot.slane %v864, 3
        %v990 = vrot.slane %v870, 2
        %v991 = vrot.slane %v876, 1
        %v992 = vrot.slane %v888, 7
        %v993 = vrot.slane %v894, 6
        %v994 = vrot.slane %v900, 5
        %v995 = vrot.slane %v906, 4
        %v996 = vrot.slane %v912, 3
        %v997 = vrot.slane %v918, 2
        %v998 = vrot.slane %v924, 1
        %v999 = vrot.slane %v938, 7
        %v1000 = vrot.slane %v939, 6
        %v1001 = vrot.slane %v940, 5
        %v1002 = vrot.slane %v941, 4
        %v1003 = vrot.slane %v942, 3
        %v1004 = vrot.slane %v943, 2
        %v1005 = vrot.slane %v944, 1
        %v1006 = vrot.slane %v946, 7
        %v1007 = vrot.slane %v947, 6
        %v1008 = vrot.slane %v948, 5
        %vm1009 = vcmask 1040384
        %v1011 = vsel %vm1009, %v722, %v949
        %vm1012 = vcmask 1042434
        %v1015 = vsel %vm1012, %v950, %v951
        %vm1016 = vcmask 1041408
        %v1017 = vsel %vm1016, %v1011, %v1015
        %vm1018 = vcmask 1044484
        %v1021 = vsel %vm1018, %v952, %v953
        %vm1022 = vcmask 1046534
        %v1025 = vsel %vm1022, %v954, %v932
        %vm1026 = vcmask 1045508
        %v1027 = vsel %vm1026, %v1021, %v1025
        %vm1028 = vcmask 1043456
        %v1029 = vsel %vm1028, %v1017, %v1027
        %v1031 = vsel %vm1009, %v762, %v955
        %v1034 = vsel %vm1012, %v956, %v957
        %v1035 = vsel %vm1016, %v1031, %v1034
        %v1038 = vsel %vm1018, %v958, %v959
        %v1041 = vsel %vm1022, %v960, %v961
        %v1042 = vsel %vm1026, %v1038, %v1041
        %v1043 = vsel %vm1028, %v1035, %v1042
        %v1046 = vsel %vm1009, %v810, %v962
        %v1049 = vsel %vm1012, %v963, %v964
        %v1050 = vsel %vm1016, %v1046, %v1049
        %v1053 = vsel %vm1018, %v965, %v966
        %v1056 = vsel %vm1022, %v967, %v968
        %v1057 = vsel %vm1026, %v1053, %v1056
        %v1058 = vsel %vm1028, %v1050, %v1057
        %v1061 = vsel %vm1009, %v925, %v969
        %v1064 = vsel %vm1012, %v970, %v971
        %v1065 = vsel %vm1016, %v1061, %v1064
        %v1068 = vsel %vm1018, %v972, %v973
        %v1071 = vsel %vm1022, %v974, %v975
        %v1072 = vsel %vm1026, %v1068, %v1071
        %v1073 = vsel %vm1028, %v1065, %v1072
        %v1076 = vsel %vm1009, %v933, %v976
        %v1079 = vsel %vm1012, %v977, %v978
        %v1080 = vsel %vm1016, %v1076, %v1079
        %v1082 = vsel %vm1009, %v733, %v979
        %v1085 = vsel %vm1012, %v980, %v981
        %v1086 = vsel %vm1016, %v1082, %v1085
        %v1089 = vsel %vm1018, %v982, %v983
        %v1092 = vsel %vm1022, %v984, %v944
        %v1093 = vsel %vm1026, %v1089, %v1092
        %v1094 = vsel %vm1028, %v1086, %v1093
        %v1096 = vsel %vm1009, %v773, %v985
        %v1099 = vsel %vm1012, %v986, %v987
        %v1100 = vsel %vm1016, %v1096, %v1099
        %v1103 = vsel %vm1018, %v988, %v989
        %v1106 = vsel %vm1022, %v990, %v991
        %v1107 = vsel %vm1026, %v1103, %v1106
        %v1108 = vsel %vm1028, %v1100, %v1107
        %v1111 = vsel %vm1009, %v882, %v992
        %v1114 = vsel %vm1012, %v993, %v994
        %v1115 = vsel %vm1016, %v1111, %v1114
        %v1118 = vsel %vm1018, %v995, %v996
        %v1121 = vsel %vm1022, %v997, %v998
        %v1122 = vsel %vm1026, %v1118, %v1121
        %v1123 = vsel %vm1028, %v1115, %v1122
        %v1126 = vsel %vm1009, %v937, %v999
        %v1129 = vsel %vm1012, %v1000, %v1001
        %v1130 = vsel %vm1016, %v1126, %v1129
        %v1133 = vsel %vm1018, %v1002, %v1003
        %v1136 = vsel %vm1022, %v1004, %v1005
        %v1137 = vsel %vm1026, %v1133, %v1136
        %v1138 = vsel %vm1028, %v1130, %v1137
        %v1141 = vsel %vm1009, %v945, %v1006
        %v1144 = vsel %vm1012, %v1007, %v1008
        %v1145 = vsel %vm1016, %v1141, %v1144
        %v1146 = vld [vmem:[#allocation5] sm:$0xf]
        %v1147 = vld [vmem:[#allocation5 + $0x4] sm:$0xf]
        %v1148 = vld [vmem:[#allocation5 + $0x8] sm:$0xf]
        %v1149 = vld [vmem:[#allocation5 + $0xc] sm:$0xf]
        %v1150 = vld [vmem:[#allocation5 + $0x10] sm:$0xf]
        %v1151 = vld [vmem:[#allocation5 + $0x14] sm:$0xf]
        %v1152 = vld [vmem:[#allocation5 + $0x18] sm:$0xf]
        %v1153 = vld [vmem:[#allocation5 + $0x1c] sm:$0xf]
        %v1154 = vld [vmem:[#allocation5 + $0x20] sm:$0xf]
        %v1155 = vld [vmem:[#allocation5 + $0x24] sm:$0xf]
        %v1156 = vld [vmem:[#allocation5 + $0x28] sm:$0xf]
        %v1157 = vld [vmem:[#allocation5 + $0x2c] sm:$0xf]
        %v1158 = vld [vmem:[#allocation5 + $0x30] sm:$0xf]
        %v1159 = vld [vmem:[#allocation5 + $0x34] sm:$0xf]
        %v1160 = vld [vmem:[#allocation5 + $0x38] sm:$0xf]
        %v1161 = vld [vmem:[#allocation5 + $0x3c] sm:$0xf]
        %v1162 = vld [vmem:[#allocation5 + $0x40] sm:$0xf]
        %v1163 = vld [vmem:[#allocation5 + $0x44] sm:$0xf]
        %v1164 = vld [vmem:[#allocation5 + $0x48] sm:$0xf]
        %v1165 = vld [vmem:[#allocation5 + $0x4c] sm:$0xf]
        %v1166 = vld [vmem:[#allocation5 + $0x50] sm:$0xf]
        %v1167 = vld [vmem:[#allocation5 + $0x54] sm:$0xf]
        %v1168 = vld [vmem:[#allocation5 + $0x58] sm:$0xf]
        %v1169 = vld [vmem:[#allocation5 + $0x5c] sm:$0xf]
        %v1170 = vld [vmem:[#allocation5 + $0x60] sm:$0xf]
        %v1171 = vld [vmem:[#allocation5 + $0x64] sm:$0xf]
        %v1172 = vld [vmem:[#allocation5 + $0x68] sm:$0xf]
        %v1173 = vld [vmem:[#allocation5 + $0x6c] sm:$0xf]
        %v1174 = vld [vmem:[#allocation5 + $0x70] sm:$0xf]
        %v1175 = vld [vmem:[#allocation5 + $0x74] sm:$0xf]
        %v1176 = vld [vmem:[#allocation5 + $0x78] sm:$0xf]
        %v1177 = vld [vmem:[#allocation5 + $0x7c] sm:$0xf]
        %v1178 = vld [vmem:[#allocation5 + $0x80] sm:$0xf]
        %v1179 = vld [vmem:[#allocation5 + $0x84] sm:$0xf]
        %v1180 = vld [vmem:[#allocation5 + $0x88] sm:$0xf]
        %v1181 = vld [vmem:[#allocation5 + $0x8c] sm:$0xf]
        %v1182 = vld [vmem:[#allocation5 + $0x90] sm:$0xf]
        %v1183 = vld [vmem:[#allocation5 + $0x94] sm:$0xf]
        %v1184 = vld [vmem:[#allocation5 + $0x98] sm:$0xf]
        %v1185 = vld [vmem:[#allocation5 + $0x9c] sm:$0xf]
        %v1186 = vld [vmem:[#allocation5 + $0xa0] sm:$0xf]
        %v1187 = vld [vmem:[#allocation5 + $0xa4] sm:$0xf]
        %v1188 = vld [vmem:[#allocation5 + $0xa8] sm:$0xf]
        %v1189 = vld [vmem:[#allocation5 + $0xac] sm:$0xf]
        %v1190 = vld [vmem:[#allocation5 + $0xb0] sm:$0xf]
        %v1191 = vld [vmem:[#allocation5 + $0xb4] sm:$0xf]
        %v1192 = vld [vmem:[#allocation5 + $0xb8] sm:$0xf]
        %v1193 = vld [vmem:[#allocation5 + $0xbc] sm:$0xf]
        %v1194 = vld [vmem:[#allocation5 + $0xc0] sm:$0xf]
        %v1195 = vld [vmem:[#allocation5 + $0xc4] sm:$0xf]
        %v1196 = vld [vmem:[#allocation5 + $0xc8] sm:$0xf]
        %v1197 = vld [vmem:[#allocation5 + $0xcc] sm:$0xf]
        %v1198 = vld [vmem:[#allocation5 + $0xd0] sm:$0xf]
        %v1199 = vld [vmem:[#allocation5 + $0xd4] sm:$0xf]
        %v1200 = vld [vmem:[#allocation5 + $0xd8] sm:$0xf]
        %v1201 = vld [vmem:[#allocation5 + $0xdc] sm:$0xf]
        %v1202 = vld [vmem:[#allocation5 + $0xe0] sm:$0xf]
        %v1203 = vld [vmem:[#allocation5 + $0xe4] sm:$0xf]
        %v1204 = vld [vmem:[#allocation5 + $0xe8] sm:$0xf]
        %v1205 = vld [vmem:[#allocation5 + $0xec] sm:$0xf]
        %v1206 = vld [vmem:[#allocation5 + $0xf0] sm:$0xf]
        %v1207 = vld [vmem:[#allocation5 + $0xf4] sm:$0xf]
        %v1208 = vld [vmem:[#allocation5 + $0xf8] sm:$0xf]
        %v1209 = vld [vmem:[#allocation5 + $0xfc] sm:$0xf]
        %v1210 = vld [vmem:[#allocation5 + $0x100] sm:$0xf]
        %v1211 = vld [vmem:[#allocation5 + $0x104] sm:$0xf]
        %v1212 = vld [vmem:[#allocation5 + $0x108] sm:$0xf]
        %v1213 = vld [vmem:[#allocation5 + $0x10c] sm:$0xf]
        %v1214 = vld [vmem:[#allocation5 + $0x110] sm:$0xf]
        %v1215 = vld [vmem:[#allocation5 + $0x114] sm:$0xf]
        %v1216 = vld [vmem:[#allocation5 + $0x118] sm:$0xf]
        %v1217 = vld [vmem:[#allocation5 + $0x11c] sm:$0xf]
        %v1218 = vld [vmem:[#allocation5 + $0x120] sm:$0xf]
        %v1219 = vld [vmem:[#allocation5 + $0x124] sm:$0xf]
        %v1220 = vld [vmem:[#allocation5 + $0x128] sm:$0xf]
        %v1221 = vld [vmem:[#allocation5 + $0x12c] sm:$0xf]
        %v1222 = vld [vmem:[#allocation5 + $0x130] sm:$0xf]
        %v1223 = vld [vmem:[#allocation5 + $0x134] sm:$0xf]
        %v1224 = vld [vmem:[#allocation5 + $0x138] sm:$0xf]
        %v1225 = vld [vmem:[#allocation5 + $0x13c] sm:$0xf]
        %v1226 = vld [vmem:[#allocation5 + $0x140] sm:$0xf]
        %v1227 = vld [vmem:[#allocation5 + $0x144] sm:$0xf]
        %v1228 = vld [vmem:[#allocation5 + $0x148] sm:$0xf]
        %v1229 = vld [vmem:[#allocation5 + $0x14c] sm:$0xf]
        %v1230 = vld [vmem:[#allocation5 + $0x150] sm:$0xf]
        %v1231 = vld [vmem:[#allocation5 + $0x154] sm:$0xf]
        %v1232 = vld [vmem:[#allocation5 + $0x158] sm:$0xf]
        %v1233 = vld [vmem:[#allocation5 + $0x15c] sm:$0xf]
        %v1234 = vld [vmem:[#allocation5 + $0x160] sm:$0xf]
        %v1235 = vld [vmem:[#allocation5 + $0x164] sm:$0xf]
        %v1236 = vld [vmem:[#allocation5 + $0x168] sm:$0xf]
        %v1237 = vld [vmem:[#allocation5 + $0x16c] sm:$0xf]
        %v1238 = vld [vmem:[#allocation5 + $0x170] sm:$0xf]
        %v1239 = vld [vmem:[#allocation5 + $0x174] sm:$0xf]
        %v1240 = vld [vmem:[#allocation5 + $0x178] sm:$0xf]
        %v1241 = vld [vmem:[#allocation5 + $0x17c] sm:$0xf]
        %v1242 = vld [vmem:[#allocation5 + $0x180] sm:$0xf]
        %v1243 = vld [vmem:[#allocation5 + $0x184] sm:$0xf]
        %v1244 = vld [vmem:[#allocation5 + $0x188] sm:$0xf]
        %v1245 = vld [vmem:[#allocation5 + $0x18c] sm:$0xf]
        %v1246 = vld [vmem:[#allocation5 + $0x190] sm:$0xf]
        %v1247 = vld [vmem:[#allocation5 + $0x194] sm:$0xf]
        %v1248 = vld [vmem:[#allocation5 + $0x198] sm:$0xf]
        %v1249 = vld [vmem:[#allocation5 + $0x19c] sm:$0xf]
        %v1250 = vld [vmem:[#allocation5 + $0x1a0] sm:$0xf]
        %v1251 = vld [vmem:[#allocation5 + $0x1a4] sm:$0xf]
        %v1252 = vld [vmem:[#allocation5 + $0x1a8] sm:$0xf]
        %v1253 = vld [vmem:[#allocation5 + $0x1ac] sm:$0xf]
        %v1254 = vld [vmem:[#allocation5 + $0x1b0] sm:$0xf]
        %v1255 = vld [vmem:[#allocation5 + $0x1b4] sm:$0xf]
        %v1256 = vld [vmem:[#allocation5 + $0x1b8] sm:$0xf]
        %v1257 = vld [vmem:[#allocation5 + $0x1bc] sm:$0xf]
        %v1258 = vld [vmem:[#allocation5 + $0x1c0] sm:$0xf]
        %v1259 = vld [vmem:[#allocation5 + $0x1c4] sm:$0xf]
        %v1260 = vld [vmem:[#allocation5 + $0x1c8] sm:$0xf]
        %v1261 = vld [vmem:[#allocation5 + $0x1cc] sm:$0xf]
        %v1262 = vld [vmem:[#allocation5 + $0x1d0] sm:$0xf]
        %v1263 = vld [vmem:[#allocation5 + $0x1d4] sm:$0xf]
        %v1264 = vld [vmem:[#allocation5 + $0x1d8] sm:$0xf]
        %v1265 = vld [vmem:[#allocation5 + $0x1dc] sm:$0xf]
        %v1266 = vld [vmem:[#allocation5 + $0x1e0] sm:$0xf]
        %v1267 = vld [vmem:[#allocation5 + $0x1e4] sm:$0xf]
        %v1268 = vld [vmem:[#allocation5 + $0x1e8] sm:$0xf]
        %v1269 = vld [vmem:[#allocation5 + $0x1ec] sm:$0xf]
        %v1270 = vld [vmem:[#allocation5 + $0x1f0] sm:$0xf]
        %v1271 = vld [vmem:[#allocation5 + $0x1f4] sm:$0xf]
        %v1272 = vld [vmem:[#allocation5 + $0x1f8] sm:$0xf]
        %v1273 = vld [vmem:[#allocation5 + $0x1fc] sm:$0xf]
        %v1274 = vld [vmem:[#allocation5 + $0x200] sm:$0xf]
        %v1275 = vld [vmem:[#allocation5 + $0x204] sm:$0xf]
        %v1276 = vld [vmem:[#allocation5 + $0x208] sm:$0xf]
        %v1277 = vld [vmem:[#allocation5 + $0x20c] sm:$0xf]
        %v1278 = vld [vmem:[#allocation5 + $0x210] sm:$0xf]
        %v1279 = vld [vmem:[#allocation5 + $0x214] sm:$0xf]
        %v1280 = vld [vmem:[#allocation5 + $0x218] sm:$0xf]
        %v1281 = vld [vmem:[#allocation5 + $0x21c] sm:$0xf]
        %v1282 = vld [vmem:[#allocation5 + $0x220] sm:$0xf]
        %v1283 = vld [vmem:[#allocation5 + $0x224] sm:$0xf]
        %v1284 = vld [vmem:[#allocation5 + $0x228] sm:$0xf]
        %v1285 = vld [vmem:[#allocation5 + $0x22c] sm:$0xf]
        %v1286 = vld [vmem:[#allocation5 + $0x230] sm:$0xf]
        %v1287 = vld [vmem:[#allocation5 + $0x234] sm:$0xf]
        %v1288 = vld [vmem:[#allocation5 + $0x238] sm:$0xf]
        %v1289 = vld [vmem:[#allocation5 + $0x23c] sm:$0xf]
        %v1290 = vld [vmem:[#allocation5 + $0x240] sm:$0xf]
        %v1291 = vld [vmem:[#allocation5 + $0x244] sm:$0xf]
        %v1292 = vld [vmem:[#allocation5 + $0x248] sm:$0xf]
        %v1293 = vld [vmem:[#allocation5 + $0x24c] sm:$0xf]
        %v1294 = vld [vmem:[#allocation5 + $0x250] sm:$0xf]
        %v1295 = vld [vmem:[#allocation5 + $0x254] sm:$0xf]
        %v1296 = vld [vmem:[#allocation5 + $0x258] sm:$0xf]
        %v1297 = vld [vmem:[#allocation5 + $0x25c] sm:$0xf]
        %v1298 = vld [vmem:[#allocation5 + $0x260] sm:$0xf]
        %v1299 = vld [vmem:[#allocation5 + $0x264] sm:$0xf]
        %v1300 = vld [vmem:[#allocation5 + $0x268] sm:$0xf]
        %v1301 = vld [vmem:[#allocation5 + $0x26c] sm:$0xf]
        %v1302 = vld [vmem:[#allocation5 + $0x270] sm:$0xf]
        %v1303 = vld [vmem:[#allocation5 + $0x274] sm:$0xf]
        %v1304 = vld [vmem:[#allocation5 + $0x278] sm:$0xf]
        %v1305 = vld [vmem:[#allocation5 + $0x27c] sm:$0xf]
        %v1306 = vld [vmem:[#allocation5 + $0x280] sm:$0xf]
        %v1307 = vld [vmem:[#allocation5 + $0x284] sm:$0xf]
        %v1308 = vld [vmem:[#allocation5 + $0x288] sm:$0xf]
        %v1309 = vld [vmem:[#allocation5 + $0x28c] sm:$0xf]
        %v1310 = vld [vmem:[#allocation5 + $0x290] sm:$0xf]
        %v1311 = vld [vmem:[#allocation5 + $0x294] sm:$0xf]
        %v1312 = vld [vmem:[#allocation5 + $0x298] sm:$0xf]
        %v1313 = vld [vmem:[#allocation5 + $0x29c] sm:$0xf]
        %v1314 = vld [vmem:[#allocation5 + $0x2a0] sm:$0xf]
        %v1315 = vld [vmem:[#allocation5 + $0x2a4] sm:$0xf]
        %v1316 = vld [vmem:[#allocation5 + $0x2a8] sm:$0xf]
        %v1317 = vld [vmem:[#allocation5 + $0x2ac] sm:$0xf]
        %v1318 = vld [vmem:[#allocation5 + $0x2b0] sm:$0xf]
        %v1319 = vld [vmem:[#allocation5 + $0x2b4] sm:$0xf]
        %v1320 = vld [vmem:[#allocation5 + $0x2b8] sm:$0xf]
        %v1321 = vld [vmem:[#allocation5 + $0x2bc] sm:$0xf]
        %v1322 = vld [vmem:[#allocation5 + $0x2c0] sm:$0xf]
        %v1323 = vld [vmem:[#allocation5 + $0x2c4] sm:$0xf]
        %v1324 = vld [vmem:[#allocation5 + $0x2c8] sm:$0xf]
        %v1325 = vld [vmem:[#allocation5 + $0x2cc] sm:$0xf]
        %v1326 = vld [vmem:[#allocation5 + $0x2d0] sm:$0xf]
        %v1327 = vld [vmem:[#allocation5 + $0x2d4] sm:$0xf]
        %v1328 = vld [vmem:[#allocation5 + $0x2d8] sm:$0xf]
        %v1329 = vld [vmem:[#allocation5 + $0x2dc] sm:$0xf]
        %v1330 = vld [vmem:[#allocation5 + $0x2e0] sm:$0xf]
        %v1331 = vld [vmem:[#allocation5 + $0x2e4] sm:$0xf]
        %v1332 = vld [vmem:[#allocation5 + $0x2e8] sm:$0xf]
        %v1333 = vld [vmem:[#allocation5 + $0x2ec] sm:$0xf]
        %v1334 = vld [vmem:[#allocation5 + $0x2f0] sm:$0xf]
        %v1335 = vld [vmem:[#allocation5 + $0x2f4] sm:$0xf]
        %v1336 = vld [vmem:[#allocation5 + $0x2f8] sm:$0xf]
        %v1337 = vld [vmem:[#allocation5 + $0x2fc] sm:$0xf]
        %v1338 = vld [vmem:[#allocation5 + $0x300] sm:$0xf]
        %v1339 = vld [vmem:[#allocation5 + $0x304] sm:$0xf]
        %v1340 = vld [vmem:[#allocation5 + $0x308] sm:$0xf]
        %v1341 = vld [vmem:[#allocation5 + $0x30c] sm:$0xf]
        %v1342 = vld [vmem:[#allocation5 + $0x310] sm:$0xf]
        %v1343 = vld [vmem:[#allocation5 + $0x314] sm:$0xf]
        %v1344 = vld [vmem:[#allocation5 + $0x318] sm:$0xf]
        %v1345 = vld [vmem:[#allocation5 + $0x31c] sm:$0xf]
        %v1346 = vld [vmem:[#allocation5 + $0x320] sm:$0xf]
        %v1347 = vld [vmem:[#allocation5 + $0x324] sm:$0xf]
        %v1348 = vld [vmem:[#allocation5 + $0x328] sm:$0xf]
        %v1349 = vld [vmem:[#allocation5 + $0x32c] sm:$0xf]
        %v1350 = vld [vmem:[#allocation5 + $0x330] sm:$0xf]
        %v1351 = vld [vmem:[#allocation5 + $0x334] sm:$0xf]
        %v1352 = vld [vmem:[#allocation5 + $0x338] sm:$0xf]
        %v1353 = vld [vmem:[#allocation5 + $0x33c] sm:$0xf]
        %v1354 = vld [vmem:[#allocation5 + $0x340] sm:$0xf]
        %v1355 = vld [vmem:[#allocation5 + $0x344] sm:$0xf]
        %v1356 = vld [vmem:[#allocation5 + $0x348] sm:$0xf]
        %v1357 = vld [vmem:[#allocation5 + $0x34c] sm:$0xf]
        %v1358 = vld [vmem:[#allocation5 + $0x350] sm:$0xf]
        %v1359 = vld [vmem:[#allocation5 + $0x354] sm:$0xf]
        %v1360 = vld [vmem:[#allocation5 + $0x358] sm:$0xf]
        %v1361 = vld [vmem:[#allocation5 + $0x35c] sm:$0xf]
        %v1362 = vld [vmem:[#allocation5 + $0x360] sm:$0xf]
        %v1363 = vld [vmem:[#allocation5 + $0x364] sm:$0xf]
        %v1364 = vld [vmem:[#allocation5 + $0x368] sm:$0xf]
        %v1365 = vld [vmem:[#allocation5 + $0x36c] sm:$0xf]
        %v1366 = vld [vmem:[#allocation5 + $0x370] sm:$0xf]
        %v1367 = vld [vmem:[#allocation5 + $0x374] sm:$0xf]
        %v1368 = vld [vmem:[#allocation5 + $0x378] sm:$0xf]
        %v1369 = vld [vmem:[#allocation5 + $0x37c] sm:$0xf]
        %v1370 = vld [vmem:[#allocation5 + $0x380] sm:$0xf]
        %v1371 = vld [vmem:[#allocation5 + $0x384] sm:$0xf]
        %v1372 = vld [vmem:[#allocation5 + $0x388] sm:$0xf]
        %v1373 = vld [vmem:[#allocation5 + $0x38c] sm:$0xf]
        %v1374 = vld [vmem:[#allocation5 + $0x390] sm:$0xf]
        %v1375 = vld [vmem:[#allocation5 + $0x394] sm:$0xf]
        %v1376 = vld [vmem:[#allocation5 + $0x398] sm:$0xf]
        %v1377 = vld [vmem:[#allocation5 + $0x39c] sm:$0xf]
        %v1378 = vld [vmem:[#allocation5 + $0x3a0] sm:$0xf]
        %v1379 = vld [vmem:[#allocation5 + $0x3a4] sm:$0xf]
        %v1380 = vld [vmem:[#allocation5 + $0x3a8] sm:$0xf]
        %v1381 = vld [vmem:[#allocation5 + $0x3ac] sm:$0xf]
        %v1382 = vld [vmem:[#allocation5 + $0x3b0] sm:$0xf]
        %v1383 = vld [vmem:[#allocation5 + $0x3b4] sm:$0xf]
        %v1384 = vld [vmem:[#allocation5 + $0x3b8] sm:$0xf]
        %v1385 = vld [vmem:[#allocation5 + $0x3bc] sm:$0xf]
        %v1386 = vld [vmem:[#allocation5 + $0x3c0] sm:$0xf]
        %v1387 = vld [vmem:[#allocation5 + $0x3c4] sm:$0xf]
        %v1388 = vld [vmem:[#allocation5 + $0x3c8] sm:$0xf]
        %v1389 = vld [vmem:[#allocation5 + $0x3cc] sm:$0xf]
        %v1390 = vld [vmem:[#allocation5 + $0x3d0] sm:$0xf]
        %v1391 = vld [vmem:[#allocation5 + $0x3d4] sm:$0xf]
        %v1392 = vld [vmem:[#allocation5 + $0x3d8] sm:$0xf]
        %v1393 = vld [vmem:[#allocation5 + $0x3dc] sm:$0xf]
        %v1394 = vld [vmem:[#allocation5 + $0x3e0] sm:$0xf]
        %v1395 = vld [vmem:[#allocation5 + $0x3e4] sm:$0xf]
        %v1396 = vld [vmem:[#allocation5 + $0x3e8] sm:$0xf]
        %v1397 = vld [vmem:[#allocation5 + $0x3ec] sm:$0xf]
        %v1398 = vld [vmem:[#allocation5 + $0x3f0] sm:$0xf]
        %v1399 = vld [vmem:[#allocation5 + $0x3f4] sm:$0xf]
        %v1400 = vld [vmem:[#allocation5 + $0x3f8] sm:$0xf]
        %v1401 = vld [vmem:[#allocation5 + $0x3fc] sm:$0xf]
        %v1402 = vld [vmem:[#allocation5 + $0x400] sm:$0xf]
        %v1403 = vld [vmem:[#allocation5 + $0x404] sm:$0xf]
        %v1404 = vld [vmem:[#allocation5 + $0x408] sm:$0xf]
        %v1405 = vld [vmem:[#allocation5 + $0x40c] sm:$0xf]
        %v1406 = vld [vmem:[#allocation5 + $0x410] sm:$0xf]
        %v1407 = vld [vmem:[#allocation5 + $0x414] sm:$0xf]
        %v1408 = vld [vmem:[#allocation5 + $0x418] sm:$0xf]
        %v1409 = vld [vmem:[#allocation5 + $0x41c] sm:$0xf]
        %v1410 = vld [vmem:[#allocation5 + $0x420] sm:$0xf]
        %v1411 = vld [vmem:[#allocation5 + $0x424] sm:$0xf]
        %v1412 = vld [vmem:[#allocation5 + $0x428] sm:$0xf]
        %v1413 = vld [vmem:[#allocation5 + $0x42c] sm:$0xf]
        %v1414 = vld [vmem:[#allocation5 + $0x430] sm:$0xf]
        %v1415 = vld [vmem:[#allocation5 + $0x434] sm:$0xf]
        %v1416 = vld [vmem:[#allocation5 + $0x438] sm:$0xf]
        %v1417 = vld [vmem:[#allocation5 + $0x43c] sm:$0xf]
        %v1418 = vld [vmem:[#allocation5 + $0x440] sm:$0xf]
        %v1419 = vld [vmem:[#allocation5 + $0x444] sm:$0xf]
        %v1420 = vld [vmem:[#allocation5 + $0x448] sm:$0xf]
        %v1421 = vld [vmem:[#allocation5 + $0x44c] sm:$0xf]
        %v1422 = vld [vmem:[#allocation5 + $0x450] sm:$0xf]
        %v1423 = vld [vmem:[#allocation5 + $0x454] sm:$0xf]
        %v1424 = vld [vmem:[#allocation5 + $0x458] sm:$0xf]
        %v1425 = vld [vmem:[#allocation5 + $0x45c] sm:$0xf]
        %v1426 = vld [vmem:[#allocation5 + $0x460] sm:$0xf]
        %v1427 = vld [vmem:[#allocation5 + $0x464] sm:$0xf]
        %v1428 = vld [vmem:[#allocation5 + $0x468] sm:$0xf]
        %v1429 = vld [vmem:[#allocation5 + $0x46c] sm:$0xf]
        %v1430 = vld [vmem:[#allocation5 + $0x470] sm:$0xf]
        %v1431 = vld [vmem:[#allocation5 + $0x474] sm:$0xf]
        %v1432 = vld [vmem:[#allocation5 + $0x478] sm:$0xf]
        %v1433 = vld [vmem:[#allocation5 + $0x47c] sm:$0xf]
        %v1434 = vld [vmem:[#allocation5 + $0x480] sm:$0xf]
        %v1435 = vld [vmem:[#allocation5 + $0x484] sm:$0xf]
        %v1436 = vld [vmem:[#allocation5 + $0x488] sm:$0xf]
        %v1437 = vld [vmem:[#allocation5 + $0x48c] sm:$0xf]
        %v1438 = vld [vmem:[#allocation5 + $0x490] sm:$0xf]
        %v1439 = vld [vmem:[#allocation5 + $0x494] sm:$0xf]
        %v1440 = vld [vmem:[#allocation5 + $0x498] sm:$0xf]
        %v1441 = vld [vmem:[#allocation5 + $0x49c] sm:$0xf]
        %v1442 = vld [vmem:[#allocation5 + $0x4a0] sm:$0xf]
        %v1443 = vld [vmem:[#allocation5 + $0x4a4] sm:$0xf]
        %v1444 = vld [vmem:[#allocation5 + $0x4a8] sm:$0xf]
        %v1445 = vld [vmem:[#allocation5 + $0x4ac] sm:$0xf]
        %v1446 = vld [vmem:[#allocation5 + $0x4b0] sm:$0xf]
        %v1447 = vld [vmem:[#allocation5 + $0x4b4] sm:$0xf]
        %v1448 = vld [vmem:[#allocation5 + $0x4b8] sm:$0xf]
        %v1449 = vld [vmem:[#allocation5 + $0x4bc] sm:$0xf]
        %v1450 = vld [vmem:[#allocation5 + $0x4c0] sm:$0xf]
        %v1451 = vld [vmem:[#allocation5 + $0x4c4] sm:$0xf]
        %v1452 = vld [vmem:[#allocation5 + $0x4c8] sm:$0xf]
        %v1453 = vld [vmem:[#allocation5 + $0x4cc] sm:$0xf]
        %v1454 = vld [vmem:[#allocation5 + $0x4d0] sm:$0xf]
        %v1455 = vld [vmem:[#allocation5 + $0x4d4] sm:$0xf]
        %v1456 = vld [vmem:[#allocation5 + $0x4d8] sm:$0xf]
        %v1457 = vld [vmem:[#allocation5 + $0x4dc] sm:$0xf]
        %v1458 = vld [vmem:[#allocation5 + $0x4e0] sm:$0xf]
        %v1459 = vld [vmem:[#allocation5 + $0x4e4] sm:$0xf]
        %v1460 = vld [vmem:[#allocation5 + $0x4e8] sm:$0xf]
        %v1461 = vld [vmem:[#allocation5 + $0x4ec] sm:$0xf]
        %v1462 = vld [vmem:[#allocation5 + $0x4f0] sm:$0xf]
        %v1463 = vld [vmem:[#allocation5 + $0x4f4] sm:$0xf]
        %v1464 = vld [vmem:[#allocation5 + $0x4f8] sm:$0xf]
        %v1465 = vld [vmem:[#allocation5 + $0x4fc] sm:$0xf]
        %v1466 = vld [vmem:[#allocation5 + $0x500] sm:$0xf]
        %v1467 = vld [vmem:[#allocation5 + $0x504] sm:$0xf]
        %v1468 = vld [vmem:[#allocation5 + $0x508] sm:$0xf]
        %v1469 = vld [vmem:[#allocation5 + $0x50c] sm:$0xf]
        %v1470 = vld [vmem:[#allocation5 + $0x510] sm:$0xf]
        %v1471 = vld [vmem:[#allocation5 + $0x514] sm:$0xf]
        %v1472 = vld [vmem:[#allocation5 + $0x518] sm:$0xf]
        %v1473 = vld [vmem:[#allocation5 + $0x51c] sm:$0xf]
        %v1474 = vld [vmem:[#allocation5 + $0x520] sm:$0xf]
        %v1475 = vld [vmem:[#allocation5 + $0x524] sm:$0xf]
        %v1476 = vld [vmem:[#allocation5 + $0x528] sm:$0xf]
        %v1477 = vld [vmem:[#allocation5 + $0x52c] sm:$0xf]
        %v1478 = vld [vmem:[#allocation5 + $0x530] sm:$0xf]
        %v1479 = vld [vmem:[#allocation5 + $0x534] sm:$0xf]
        %v1480 = vld [vmem:[#allocation5 + $0x538] sm:$0xf]
        %v1481 = vld [vmem:[#allocation5 + $0x53c] sm:$0xf]
        %v1482 = vld [vmem:[#allocation5 + $0x540] sm:$0xf]
        %v1483 = vld [vmem:[#allocation5 + $0x544] sm:$0xf]
        %v1484 = vld [vmem:[#allocation5 + $0x548] sm:$0xf]
        %v1485 = vld [vmem:[#allocation5 + $0x54c] sm:$0xf]
        %v1486 = vld [vmem:[#allocation5 + $0x550] sm:$0xf]
        %v1487 = vld [vmem:[#allocation5 + $0x554] sm:$0xf]
        %v1488 = vld [vmem:[#allocation5 + $0x558] sm:$0xf]
        %v1489 = vld [vmem:[#allocation5 + $0x55c] sm:$0xf]
        %v1490 = vld [vmem:[#allocation5 + $0x560] sm:$0xf]
        %v1491 = vld [vmem:[#allocation5 + $0x564] sm:$0xf]
        %v1492 = vld [vmem:[#allocation5 + $0x568] sm:$0xf]
        %v1493 = vld [vmem:[#allocation5 + $0x56c] sm:$0xf]
        %v1494 = vld [vmem:[#allocation5 + $0x570] sm:$0xf]
        %v1495 = vld [vmem:[#allocation5 + $0x574] sm:$0xf]
        %v1496 = vld [vmem:[#allocation5 + $0x578] sm:$0xf]
        %v1497 = vld [vmem:[#allocation5 + $0x57c] sm:$0xf]
        %v1498 = vld [vmem:[#allocation5 + $0x580] sm:$0xf]
        %v1499 = vld [vmem:[#allocation5 + $0x584] sm:$0xf]
        %v1500 = vld [vmem:[#allocation5 + $0x588] sm:$0xf]
        %v1501 = vld [vmem:[#allocation5 + $0x58c] sm:$0xf]
        %v1502 = vld [vmem:[#allocation5 + $0x590] sm:$0xf]
        %v1503 = vld [vmem:[#allocation5 + $0x594] sm:$0xf]
        %v1504 = vld [vmem:[#allocation5 + $0x598] sm:$0xf]
        %v1505 = vld [vmem:[#allocation5 + $0x59c] sm:$0xf]
        %v1506 = vld [vmem:[#allocation5 + $0x5a0] sm:$0xf]
        %v1507 = vld [vmem:[#allocation5 + $0x5a4] sm:$0xf]
        %v1508 = vld [vmem:[#allocation5 + $0x5a8] sm:$0xf]
        %v1509 = vld [vmem:[#allocation5 + $0x5ac] sm:$0xf]
        %v1510 = vld [vmem:[#allocation5 + $0x5b0] sm:$0xf]
        %v1511 = vld [vmem:[#allocation5 + $0x5b4] sm:$0xf]
        %v1512 = vld [vmem:[#allocation5 + $0x5b8] sm:$0xf]
        %v1513 = vld [vmem:[#allocation5 + $0x5bc] sm:$0xf]
        %v1514 = vld [vmem:[#allocation5 + $0x5c0] sm:$0xf]
        %v1515 = vld [vmem:[#allocation5 + $0x5c4] sm:$0xf]
        %v1516 = vld [vmem:[#allocation5 + $0x5c8] sm:$0xf]
        %v1517 = vld [vmem:[#allocation5 + $0x5cc] sm:$0xf]
        %v1518 = vld [vmem:[#allocation5 + $0x5d0] sm:$0xf]
        %v1519 = vld [vmem:[#allocation5 + $0x5d4] sm:$0xf]
        %v1520 = vld [vmem:[#allocation5 + $0x5d8] sm:$0xf]
        %v1521 = vld [vmem:[#allocation5 + $0x5dc] sm:$0xf]
        %v1522 = vld [vmem:[#allocation5 + $0x5e0] sm:$0xf]
        %v1523 = vld [vmem:[#allocation5 + $0x5e4] sm:$0xf]
        %v1524 = vld [vmem:[#allocation5 + $0x5e8] sm:$0xf]
        %v1525 = vld [vmem:[#allocation5 + $0x5ec] sm:$0xf]
        %v1526 = vld [vmem:[#allocation5 + $0x5f0] sm:$0xf]
        %v1527 = vld [vmem:[#allocation5 + $0x5f4] sm:$0xf]
        %v1528 = vld [vmem:[#allocation5 + $0x5f8] sm:$0xf]
        %v1529 = vld [vmem:[#allocation5 + $0x5fc] sm:$0xf]
        %v1530 = vld [vmem:[#allocation5 + $0x600] sm:$0xf]
        %v1531 = vld [vmem:[#allocation5 + $0x604] sm:$0xf]
        %v1532 = vld [vmem:[#allocation5 + $0x608] sm:$0xf]
        %v1533 = vld [vmem:[#allocation5 + $0x60c] sm:$0xf]
        %v1534 = vld [vmem:[#allocation5 + $0x610] sm:$0xf]
        %v1535 = vld [vmem:[#allocation5 + $0x614] sm:$0xf]
        %v1536 = vld [vmem:[#allocation5 + $0x618] sm:$0xf]
        %v1537 = vld [vmem:[#allocation5 + $0x61c] sm:$0xf]
        %v1538 = vld [vmem:[#allocation5 + $0x620] sm:$0xf]
        %v1539 = vld [vmem:[#allocation5 + $0x624] sm:$0xf]
        %v1540 = vld [vmem:[#allocation5 + $0x628] sm:$0xf]
        %v1541 = vld [vmem:[#allocation5 + $0x62c] sm:$0xf]
        %v1542 = vld [vmem:[#allocation5 + $0x630] sm:$0xf]
        %v1543 = vld [vmem:[#allocation5 + $0x634] sm:$0xf]
        %v1544 = vld [vmem:[#allocation5 + $0x638] sm:$0xf]
        %v1545 = vld [vmem:[#allocation5 + $0x63c] sm:$0xf]
        %v1546 = vld [vmem:[#allocation5 + $0x640] sm:$0xf]
        %v1547 = vld [vmem:[#allocation5 + $0x644] sm:$0xf]
        %v1548 = vld [vmem:[#allocation5 + $0x648] sm:$0xf]
        %v1549 = vld [vmem:[#allocation5 + $0x64c] sm:$0xf]
        %v1550 = vld [vmem:[#allocation5 + $0x650] sm:$0xf]
        %v1551 = vld [vmem:[#allocation5 + $0x654] sm:$0xf]
        %v1552 = vld [vmem:[#allocation5 + $0x658] sm:$0xf]
        %v1553 = vld [vmem:[#allocation5 + $0x65c] sm:$0xf]
        %v1554 = vld [vmem:[#allocation5 + $0x660] sm:$0xf]
        %v1555 = vld [vmem:[#allocation5 + $0x664] sm:$0xf]
        %v1556 = vld [vmem:[#allocation5 + $0x668] sm:$0xf]
        %v1557 = vld [vmem:[#allocation5 + $0x66c] sm:$0xf]
        %v1558 = vld [vmem:[#allocation5 + $0x670] sm:$0xf]
        %v1559 = vld [vmem:[#allocation5 + $0x674] sm:$0xf]
        %v1560 = vld [vmem:[#allocation5 + $0x678] sm:$0xf]
        %v1561 = vld [vmem:[#allocation5 + $0x67c] sm:$0xf]
        %v1562 = vld [vmem:[#allocation5 + $0x680] sm:$0xf]
        %v1563 = vld [vmem:[#allocation5 + $0x684] sm:$0xf]
        %v1564 = vld [vmem:[#allocation5 + $0x688] sm:$0xf]
        %v1565 = vld [vmem:[#allocation5 + $0x68c] sm:$0xf]
        %v1566 = vld [vmem:[#allocation5 + $0x690] sm:$0xf]
        %v1567 = vld [vmem:[#allocation5 + $0x694] sm:$0xf]
        %v1568 = vld [vmem:[#allocation5 + $0x698] sm:$0xf]
        %v1569 = vld [vmem:[#allocation5 + $0x69c] sm:$0xf]
        %v1570 = vld [vmem:[#allocation5 + $0x6a0] sm:$0xf]
        %v1571 = vld [vmem:[#allocation5 + $0x6a4] sm:$0xf]
        %v1572 = vld [vmem:[#allocation5 + $0x6a8] sm:$0xf]
        %v1573 = vld [vmem:[#allocation5 + $0x6ac] sm:$0xf]
        %v1574 = vld [vmem:[#allocation5 + $0x6b0] sm:$0xf]
        %v1575 = vld [vmem:[#allocation5 + $0x6b4] sm:$0xf]
        %v1576 = vld [vmem:[#allocation5 + $0x6b8] sm:$0xf]
        %v1577 = vld [vmem:[#allocation5 + $0x6bc] sm:$0xf]
        %v1578 = vld [vmem:[#allocation5 + $0x6c0] sm:$0xf]
        %v1579 = vld [vmem:[#allocation5 + $0x6c4] sm:$0xf]
        %v1580 = vld [vmem:[#allocation5 + $0x6c8] sm:$0xf]
        %v1581 = vld [vmem:[#allocation5 + $0x6cc] sm:$0xf]
        %v1582 = vld [vmem:[#allocation5 + $0x6d0] sm:$0xf]
        %v1583 = vld [vmem:[#allocation5 + $0x6d4] sm:$0xf]
        %v1584 = vld [vmem:[#allocation5 + $0x6d8] sm:$0xf]
        %v1585 = vld [vmem:[#allocation5 + $0x6dc] sm:$0xf]
        %v1586 = vld [vmem:[#allocation5 + $0x6e0] sm:$0xf]
        %v1587 = vld [vmem:[#allocation5 + $0x6e4] sm:$0xf]
        %v1588 = vld [vmem:[#allocation5 + $0x6e8] sm:$0xf]
        %v1589 = vld [vmem:[#allocation5 + $0x6ec] sm:$0xf]
        %v1590 = vld [vmem:[#allocation5 + $0x6f0] sm:$0xf]
        %v1591 = vld [vmem:[#allocation5 + $0x6f4] sm:$0xf]
        %v1592 = vld [vmem:[#allocation5 + $0x6f8] sm:$0xf]
        %v1593 = vld [vmem:[#allocation5 + $0x6fc] sm:$0xf]
        %v1594 = vld [vmem:[#allocation5 + $0x700] sm:$0xf]
        %v1595 = vld [vmem:[#allocation5 + $0x704] sm:$0xf]
        %v1596 = vld [vmem:[#allocation5 + $0x708] sm:$0xf]
        %v1597 = vld [vmem:[#allocation5 + $0x70c] sm:$0xf]
        %v1598 = vld [vmem:[#allocation5 + $0x710] sm:$0xf]
        %v1599 = vld [vmem:[#allocation5 + $0x714] sm:$0xf]
        %v1600 = vld [vmem:[#allocation5 + $0x718] sm:$0xf]
        %v1601 = vld [vmem:[#allocation5 + $0x71c] sm:$0xf]
        %v1602 = vld [vmem:[#allocation5 + $0x720] sm:$0xf]
        %v1603 = vld [vmem:[#allocation5 + $0x724] sm:$0xf]
        %v1604 = vld [vmem:[#allocation5 + $0x728] sm:$0xf]
        %v1605 = vld [vmem:[#allocation5 + $0x72c] sm:$0xf]
        %v1606 = vld [vmem:[#allocation5 + $0x730] sm:$0xf]
        %v1607 = vld [vmem:[#allocation5 + $0x734] sm:$0xf]
        %v1608 = vld [vmem:[#allocation5 + $0x738] sm:$0xf]
        %v1609 = vld [vmem:[#allocation5 + $0x73c] sm:$0xf]
        %v1610 = vld [vmem:[#allocation5 + $0x740] sm:$0xf]
        %v1611 = vld [vmem:[#allocation5 + $0x744] sm:$0xf]
        %v1612 = vld [vmem:[#allocation5 + $0x748] sm:$0xf]
        %v1613 = vld [vmem:[#allocation5 + $0x74c] sm:$0xf]
        %v1614 = vld [vmem:[#allocation5 + $0x750] sm:$0xf]
        %v1615 = vld [vmem:[#allocation5 + $0x754] sm:$0xf]
        %v1616 = vld [vmem:[#allocation5 + $0x758] sm:$0xf]
        %v1617 = vld [vmem:[#allocation5 + $0x75c] sm:$0xf]
        %v1618 = vld [vmem:[#allocation5 + $0x760] sm:$0xf]
        %v1619 = vld [vmem:[#allocation5 + $0x764] sm:$0xf]
        %v1620 = vld [vmem:[#allocation5 + $0x768] sm:$0xf]
        %v1621 = vld [vmem:[#allocation5 + $0x76c] sm:$0xf]
        %v1622 = vld [vmem:[#allocation5 + $0x770] sm:$0xf]
        %v1623 = vld [vmem:[#allocation5 + $0x774] sm:$0xf]
        %v1624 = vld [vmem:[#allocation5 + $0x778] sm:$0xf]
        %v1625 = vld [vmem:[#allocation5 + $0x77c] sm:$0xf]
        %v1626 = vld [vmem:[#allocation5 + $0x780] sm:$0xf]
        %v1627 = vld [vmem:[#allocation5 + $0x784] sm:$0xf]
        %v1628 = vld [vmem:[#allocation5 + $0x788] sm:$0xf]
        %v1629 = vld [vmem:[#allocation5 + $0x78c] sm:$0xf]
        %v1630 = vld [vmem:[#allocation5 + $0x790] sm:$0xf]
        %v1631 = vld [vmem:[#allocation5 + $0x794] sm:$0xf]
        %v1632 = vld [vmem:[#allocation5 + $0x798] sm:$0xf]
        %v1633 = vld [vmem:[#allocation5 + $0x79c] sm:$0xf]
        %v1634 = vld [vmem:[#allocation5 + $0x7a0] sm:$0xf]
        %v1635 = vld [vmem:[#allocation5 + $0x7a4] sm:$0xf]
        %v1636 = vld [vmem:[#allocation5 + $0x7a8] sm:$0xf]
        %v1637 = vld [vmem:[#allocation5 + $0x7ac] sm:$0xf]
        %v1638 = vld [vmem:[#allocation5 + $0x7b0] sm:$0xf]
        %v1639 = vld [vmem:[#allocation5 + $0x7b4] sm:$0xf]
        %v1640 = vld [vmem:[#allocation5 + $0x7b8] sm:$0xf]
        %v1641 = vld [vmem:[#allocation5 + $0x7bc] sm:$0xf]
        %v1642 = vld [vmem:[#allocation5 + $0x7c0] sm:$0xf]
        %v1643 = vld [vmem:[#allocation5 + $0x7c4] sm:$0xf]
        %v1644 = vld [vmem:[#allocation5 + $0x7c8] sm:$0xf]
        %v1645 = vld [vmem:[#allocation5 + $0x7cc] sm:$0xf]
        %v1646 = vld [vmem:[#allocation5 + $0x7d0] sm:$0xf]
        %v1647 = vld [vmem:[#allocation5 + $0x7d4] sm:$0xf]
        %v1648 = vld [vmem:[#allocation5 + $0x7d8] sm:$0xf]
        %v1649 = vld [vmem:[#allocation5 + $0x7dc] sm:$0xf]
        %v1650 = vld [vmem:[#allocation5 + $0x7e0] sm:$0xf]
        %v1651 = vld [vmem:[#allocation5 + $0x7e4] sm:$0xf]
        %v1652 = vld [vmem:[#allocation5 + $0x7e8] sm:$0xf]
        %v1653 = vld [vmem:[#allocation5 + $0x7ec] sm:$0xf]
        %v1654 = vld [vmem:[#allocation5 + $0x7f0] sm:$0xf]
        %v1655 = vld [vmem:[#allocation5 + $0x7f4] sm:$0xf]
        %v1656 = vld [vmem:[#allocation5 + $0x7f8] sm:$0xf]
        %v1657 = vld [vmem:[#allocation5 + $0x7fc] sm:$0xf]
        %v1658 = vld [vmem:[#allocation5 + $0x800] sm:$0xf]
        %v1659 = vld [vmem:[#allocation5 + $0x804] sm:$0xf]
        %v1660 = vld [vmem:[#allocation5 + $0x808] sm:$0xf]
        %v1661 = vld [vmem:[#allocation5 + $0x80c] sm:$0xf]
        %v1662 = vld [vmem:[#allocation5 + $0x810] sm:$0xf]
        %v1663 = vld [vmem:[#allocation5 + $0x814] sm:$0xf]
        %v1664 = vld [vmem:[#allocation5 + $0x818] sm:$0xf]
        %v1665 = vld [vmem:[#allocation5 + $0x81c] sm:$0xf]
        %v1666 = vld [vmem:[#allocation5 + $0x820] sm:$0xf]
        %v1667 = vld [vmem:[#allocation5 + $0x824] sm:$0xf]
        %v1668 = vld [vmem:[#allocation5 + $0x828] sm:$0xf]
        %v1669 = vld [vmem:[#allocation5 + $0x82c] sm:$0xf]
        %v1670 = vld [vmem:[#allocation5 + $0x830] sm:$0xf]
        %v1671 = vld [vmem:[#allocation5 + $0x834] sm:$0xf]
        %v1672 = vld [vmem:[#allocation5 + $0x838] sm:$0xf]
        %v1673 = vld [vmem:[#allocation5 + $0x83c] sm:$0xf]
        %v1674 = vld [vmem:[#allocation5 + $0x840] sm:$0xf]
        %v1675 = vld [vmem:[#allocation5 + $0x844] sm:$0xf]
        %v1676 = vld [vmem:[#allocation5 + $0x848] sm:$0xf]
        %v1677 = vld [vmem:[#allocation5 + $0x84c] sm:$0xf]
        %v1678 = vld [vmem:[#allocation5 + $0x850] sm:$0xf]
        %v1679 = vld [vmem:[#allocation5 + $0x854] sm:$0xf]
        %v1680 = vld [vmem:[#allocation5 + $0x858] sm:$0xf]
        %v1681 = vld [vmem:[#allocation5 + $0x85c] sm:$0xf]
        %v1682 = vld [vmem:[#allocation5 + $0x860] sm:$0xf]
        %v1683 = vld [vmem:[#allocation5 + $0x864] sm:$0xf]
        %v1684 = vld [vmem:[#allocation5 + $0x868] sm:$0xf]
        %v1685 = vld [vmem:[#allocation5 + $0x86c] sm:$0xf]
        %v1686 = vld [vmem:[#allocation5 + $0x870] sm:$0xf]
        %v1687 = vld [vmem:[#allocation5 + $0x874] sm:$0xf]
        %v1688 = vld [vmem:[#allocation5 + $0x878] sm:$0xf]
        %v1689 = vld [vmem:[#allocation5 + $0x87c] sm:$0xf]
        %v1690 = vld [vmem:[#allocation5 + $0x880] sm:$0xf]
        %v1691 = vld [vmem:[#allocation5 + $0x884] sm:$0xf]
        %v1692 = vld [vmem:[#allocation5 + $0x888] sm:$0xf]
        %v1693 = vld [vmem:[#allocation5 + $0x88c] sm:$0xf]
        %v1694 = vld [vmem:[#allocation5 + $0x890] sm:$0xf]
        %v1695 = vld [vmem:[#allocation5 + $0x894] sm:$0xf]
        %v1696 = vld [vmem:[#allocation5 + $0x898] sm:$0xf]
        %v1697 = vld [vmem:[#allocation5 + $0x89c] sm:$0xf]
        %v1698 = vld [vmem:[#allocation5 + $0x8a0] sm:$0xf]
        %v1699 = vld [vmem:[#allocation5 + $0x8a4] sm:$0xf]
        %v1700 = vld [vmem:[#allocation5 + $0x8a8] sm:$0xf]
        %v1701 = vld [vmem:[#allocation5 + $0x8ac] sm:$0xf]
        %v1702 = vld [vmem:[#allocation5 + $0x8b0] sm:$0xf]
        %v1703 = vld [vmem:[#allocation5 + $0x8b4] sm:$0xf]
        %v1704 = vld [vmem:[#allocation5 + $0x8b8] sm:$0xf]
        %v1705 = vld [vmem:[#allocation5 + $0x8bc] sm:$0xf]
        %v1706 = vld [vmem:[#allocation5 + $0x8c0] sm:$0xf]
        %v1707 = vld [vmem:[#allocation5 + $0x8c4] sm:$0xf]
        %v1708 = vld [vmem:[#allocation5 + $0x8c8] sm:$0xf]
        %v1709 = vld [vmem:[#allocation5 + $0x8cc] sm:$0xf]
        %v1710 = vld [vmem:[#allocation5 + $0x8d0] sm:$0xf]
        %v1711 = vld [vmem:[#allocation5 + $0x8d4] sm:$0xf]
        %v1712 = vld [vmem:[#allocation5 + $0x8d8] sm:$0xf]
        %v1713 = vld [vmem:[#allocation5 + $0x8dc] sm:$0xf]
        %v1714 = vld [vmem:[#allocation5 + $0x8e0] sm:$0xf]
        %v1715 = vld [vmem:[#allocation5 + $0x8e4] sm:$0xf]
        %v1716 = vld [vmem:[#allocation5 + $0x8e8] sm:$0xf]
        %v1717 = vld [vmem:[#allocation5 + $0x8ec] sm:$0xf]
        %v1718 = vld [vmem:[#allocation5 + $0x8f0] sm:$0xf]
        %v1719 = vld [vmem:[#allocation5 + $0x8f4] sm:$0xf]
        %v1720 = vld [vmem:[#allocation5 + $0x8f8] sm:$0xf]
        %v1721 = vld [vmem:[#allocation5 + $0x8fc] sm:$0xf]
        %1722 = vst [vmem:[#allocation1] ss:$9 sm:$0xff] %v1029
        %s1723 = scalar_lea.vmem [#allocation1], 1
        %1724 = vst [vmem:[%s1723] ss:$9 sm:$0xff] %v1094
        %v1725 = vld [vmem:[#allocation1] sm:$0xff]
        %v1726 = vld [vmem:[#allocation1 + $0x9] sm:$0xff]
        %v1727 = vld [vmem:[#allocation1 + $0x12] sm:$0xff]
        %v1728 = vld [vmem:[#allocation1 + $0x1b] sm:$0xff]
        %v1729 = vld [vmem:[#allocation1 + $0x24] sm:$0xff]
        %v1730 = vld [vmem:[#allocation1 + $0x2d] sm:$0xff]
        %v1731 = vld [vmem:[#allocation1 + $0x36] sm:$0xff]
        %v1732 = vld [vmem:[#allocation1 + $0x3f] sm:$0xff]
        %1733 = vst [vmem:[#allocation1] ss:$9 sm:$0xff] %v1043
        %1734 = vst [vmem:[%s1723] ss:$9 sm:$0xff] %v1108
        %v1735 = vld [vmem:[#allocation1] sm:$0xff]
        %v1736 = vld [vmem:[#allocation1 + $0x9] sm:$0xff]
        %v1737 = vld [vmem:[#allocation1 + $0x12] sm:$0xff]
        %v1738 = vld [vmem:[#allocation1 + $0x1b] sm:$0xff]
        %v1739 = vld [vmem:[#allocation1 + $0x24] sm:$0xff]
        %v1740 = vld [vmem:[#allocation1 + $0x2d] sm:$0xff]
        %v1741 = vld [vmem:[#allocation1 + $0x36] sm:$0xff]
        %v1742 = vld [vmem:[#allocation1 + $0x3f] sm:$0xff]
        %1743 = vst [vmem:[#allocation1] ss:$9 sm:$0xff] %v1058
        %1744 = vst [vmem:[%s1723] ss:$9 sm:$0xff] %v1123
        %v1745 = vld [vmem:[#allocation1] sm:$0xff]
        %v1746 = vld [vmem:[#allocation1 + $0x9] sm:$0xff]
        %v1747 = vld [vmem:[#allocation1 + $0x12] sm:$0xff]
        %v1748 = vld [vmem:[#allocation1 + $0x1b] sm:$0xff]
        %v1749 = vld [vmem:[#allocation1 + $0x24] sm:$0xff]
        %v1750 = vld [vmem:[#allocation1 + $0x2d] sm:$0xff]
        %v1751 = vld [vmem:[#allocation1 + $0x36] sm:$0xff]
        %v1752 = vld [vmem:[#allocation1 + $0x3f] sm:$0xff]
        %1753 = vst [vmem:[#allocation1] ss:$9 sm:$0xff] %v1073
        %1754 = vst [vmem:[%s1723] ss:$9 sm:$0xff] %v1138
        %v1755 = vld [vmem:[#allocation1] sm:$0xff]
        %v1756 = vld [vmem:[#allocation1 + $0x9] sm:$0xff]
        %v1757 = vld [vmem:[#allocation1 + $0x12] sm:$0xff]
        %v1758 = vld [vmem:[#allocation1 + $0x1b] sm:$0xff]
        %v1759 = vld [vmem:[#allocation1 + $0x24] sm:$0xff]
        %v1760 = vld [vmem:[#allocation1 + $0x2d] sm:$0xff]
        %v1761 = vld [vmem:[#allocation1 + $0x36] sm:$0xff]
        %v1762 = vld [vmem:[#allocation1 + $0x3f] sm:$0xff]
        %1763 = vst [vmem:[#allocation1] ss:$9 sm:$0xff] %v1080
        %1764 = vst [vmem:[%s1723] ss:$9 sm:$0xff] %v1145
        %v1765 = vld [vmem:[#allocation1] sm:$0xff]
        %v1766 = vld [vmem:[#allocation1 + $0x9] sm:$0xff]
        %v1767 = vld [vmem:[#allocation1 + $0x12] sm:$0xff]
        %v1768 = vld [vmem:[#allocation1 + $0x1b] sm:$0xff]
        %v2381 = vunpack.c.l.b16 %v1146
        %v2382 = vunpack.c.l.b16 %v1147
        %v2383 = vunpack.c.l.b16 %v1148
        %v2384 = vunpack.c.l.b16 %v1149
        %v2385 = vunpack.c.l.b16 %v1150
        %v2386 = vunpack.c.l.b16 %v1151
        %v2387 = vunpack.c.l.b16 %v1152
        %v2388 = vunpack.c.l.b16 %v1153
        %v2389 = vunpack.c.l.b16 %v1154
        %v2390 = vunpack.c.l.b16 %v1155
        %v2391 = vunpack.c.l.b16 %v1156
        %v2392 = vunpack.c.l.b16 %v1157
        %v2393 = vunpack.c.l.b16 %v1158
        %v2394 = vunpack.c.l.b16 %v1159
        %v2395 = vunpack.c.l.b16 %v1160
        %v2396 = vunpack.c.l.b16 %v1161
        %v2397 = vunpack.c.l.b16 %v1162
        %v2398 = vunpack.c.l.b16 %v1163
        %v2399 = vunpack.c.l.b16 %v1164
        %v2400 = vunpack.c.l.b16 %v1165
        %v2401 = vunpack.c.l.b16 %v1166
        %v2402 = vunpack.c.l.b16 %v1167
        %v2403 = vunpack.c.l.b16 %v1168
        %v2404 = vunpack.c.l.b16 %v1169
        %v2405 = vunpack.c.l.b16 %v1170
        %v2406 = vunpack.c.l.b16 %v1171
        %v2407 = vunpack.c.l.b16 %v1172
        %v2408 = vunpack.c.l.b16 %v1173
        %v2409 = vunpack.c.l.b16 %v1174
        %v2410 = vunpack.c.l.b16 %v1175
        %v2411 = vunpack.c.l.b16 %v1176
        %v2412 = vunpack.c.l.b16 %v1177
        %v2413 = vunpack.c.l.b16 %v1178
        %v2414 = vunpack.c.l.b16 %v1179
        %v2415 = vunpack.c.l.b16 %v1180
        %v2416 = vunpack.c.l.b16 %v1181
        %v2417 = vunpack.c.l.b16 %v1182
        %v2418 = vunpack.c.l.b16 %v1183
        %v2419 = vunpack.c.l.b16 %v1184
        %v2420 = vunpack.c.l.b16 %v1185
        %v2421 = vunpack.c.l.b16 %v1186
        %v2422 = vunpack.c.l.b16 %v1187
        %v2423 = vunpack.c.l.b16 %v1188
        %v2424 = vunpack.c.l.b16 %v1189
        %v2425 = vunpack.c.l.b16 %v1190
        %v2426 = vunpack.c.l.b16 %v1191
        %v2427 = vunpack.c.l.b16 %v1192
        %v2428 = vunpack.c.l.b16 %v1193
        %v2429 = vunpack.c.l.b16 %v1194
        %v2430 = vunpack.c.l.b16 %v1195
        %v2431 = vunpack.c.l.b16 %v1196
        %v2432 = vunpack.c.l.b16 %v1197
        %v2433 = vunpack.c.l.b16 %v1198
        %v2434 = vunpack.c.l.b16 %v1199
        %v2435 = vunpack.c.l.b16 %v1200
        %v2436 = vunpack.c.l.b16 %v1201
        %v2437 = vunpack.c.l.b16 %v1202
        %v2438 = vunpack.c.l.b16 %v1203
        %v2439 = vunpack.c.l.b16 %v1204
        %v2440 = vunpack.c.l.b16 %v1205
        %v2441 = vunpack.c.l.b16 %v1206
        %v2442 = vunpack.c.l.b16 %v1207
        %v2443 = vunpack.c.l.b16 %v1208
        %v2444 = vunpack.c.l.b16 %v1209
        %v2445 = vunpack.c.l.b16 %v1210
        %v2446 = vunpack.c.l.b16 %v1211
        %v2447 = vunpack.c.l.b16 %v1212
        %v2448 = vunpack.c.l.b16 %v1213
        %v2449 = vunpack.c.l.b16 %v1214
        %v2450 = vunpack.c.l.b16 %v1215
        %v2451 = vunpack.c.l.b16 %v1216
        %v2452 = vunpack.c.l.b16 %v1217
        %v2453 = vunpack.c.l.b16 %v1218
        %v2454 = vunpack.c.l.b16 %v1219
        %v2455 = vunpack.c.l.b16 %v1220
        %v2456 = vunpack.c.l.b16 %v1221
        %v2457 = vunpack.c.l.b16 %v1222
        %v2458 = vunpack.c.l.b16 %v1223
        %v2459 = vunpack.c.l.b16 %v1224
        %v2460 = vunpack.c.l.b16 %v1225
        %v2461 = vunpack.c.l.b16 %v1226
        %v2462 = vunpack.c.l.b16 %v1227
        %v2463 = vunpack.c.l.b16 %v1228
        %v2464 = vunpack.c.l.b16 %v1229
        %v2465 = vunpack.c.l.b16 %v1230
        %v2466 = vunpack.c.l.b16 %v1231
        %v2467 = vunpack.c.l.b16 %v1232
        %v2468 = vunpack.c.l.b16 %v1233
        %v2469 = vunpack.c.l.b16 %v1234
        %v2470 = vunpack.c.l.b16 %v1235
        %v2471 = vunpack.c.l.b16 %v1236
        %v2472 = vunpack.c.l.b16 %v1237
        %v2473 = vunpack.c.l.b16 %v1238
        %v2474 = vunpack.c.l.b16 %v1239
        %v2475 = vunpack.c.l.b16 %v1240
        %v2476 = vunpack.c.l.b16 %v1241
        %v2477 = vunpack.c.l.b16 %v1242
        %v2478 = vunpack.c.l.b16 %v1243
        %v2479 = vunpack.c.l.b16 %v1244
        %v2480 = vunpack.c.l.b16 %v1245
        %v2481 = vunpack.c.l.b16 %v1246
        %v2482 = vunpack.c.l.b16 %v1247
        %v2483 = vunpack.c.l.b16 %v1248
        %v2484 = vunpack.c.l.b16 %v1249
        %v2485 = vunpack.c.l.b16 %v1250
        %v2486 = vunpack.c.l.b16 %v1251
        %v2487 = vunpack.c.l.b16 %v1252
        %v2488 = vunpack.c.l.b16 %v1253
        %v2489 = vunpack.c.l.b16 %v1254
        %v2490 = vunpack.c.l.b16 %v1255
        %v2491 = vunpack.c.l.b16 %v1256
        %v2492 = vunpack.c.l.b16 %v1257
        %v2493 = vunpack.c.l.b16 %v1258
        %v2494 = vunpack.c.l.b16 %v1259
        %v2495 = vunpack.c.l.b16 %v1260
        %v2496 = vunpack.c.l.b16 %v1261
        %v2497 = vunpack.c.l.b16 %v1262
        %v2498 = vunpack.c.l.b16 %v1263
        %v2499 = vunpack.c.l.b16 %v1264
        %v2500 = vunpack.c.l.b16 %v1265
        %v2501 = vunpack.c.l.b16 %v1266
        %v2502 = vunpack.c.l.b16 %v1267
        %v2503 = vunpack.c.l.b16 %v1268
        %v2504 = vunpack.c.l.b16 %v1269
        %v2505 = vunpack.c.l.b16 %v1270
        %v2506 = vunpack.c.l.b16 %v1271
        %v2507 = vunpack.c.l.b16 %v1272
        %v2508 = vunpack.c.l.b16 %v1273
        %v2509 = vunpack.c.l.b16 %v1274
        %v2510 = vunpack.c.l.b16 %v1275
        %v2511 = vunpack.c.l.b16 %v1276
        %v2512 = vunpack.c.l.b16 %v1277
        %v2513 = vunpack.c.l.b16 %v1278
        %v2514 = vunpack.c.l.b16 %v1279
        %v2515 = vunpack.c.l.b16 %v1280
        %v2516 = vunpack.c.l.b16 %v1281
        %v2517 = vunpack.c.l.b16 %v1282
        %v2518 = vunpack.c.l.b16 %v1283
        %v2519 = vunpack.c.l.b16 %v1284
        %v2520 = vunpack.c.l.b16 %v1285
        %v2521 = vunpack.c.l.b16 %v1286
        %v2522 = vunpack.c.l.b16 %v1287
        %v2523 = vunpack.c.l.b16 %v1288
        %v2524 = vunpack.c.l.b16 %v1289
        %v2525 = vunpack.c.l.b16 %v1290
        %v2526 = vunpack.c.l.b16 %v1291
        %v2527 = vunpack.c.l.b16 %v1292
        %v2528 = vunpack.c.l.b16 %v1293
        %v2529 = vunpack.c.l.b16 %v1294
        %v2530 = vunpack.c.l.b16 %v1295
        %v2531 = vunpack.c.l.b16 %v1296
        %v2532 = vunpack.c.l.b16 %v1297
        %v2533 = vunpack.c.l.b16 %v1298
        %v2534 = vunpack.c.l.b16 %v1299
        %v2535 = vunpack.c.l.b16 %v1300
        %v2536 = vunpack.c.l.b16 %v1301
        %v2537 = vunpack.c.l.b16 %v1302
        %v2538 = vunpack.c.l.b16 %v1303
        %v2539 = vunpack.c.l.b16 %v1304
        %v2540 = vunpack.c.l.b16 %v1305
        %v2541 = vunpack.c.l.b16 %v1306
        %v2542 = vunpack.c.l.b16 %v1307
        %v2543 = vunpack.c.l.b16 %v1308
        %v2544 = vunpack.c.l.b16 %v1309
        %v2545 = vunpack.c.l.b16 %v1310
        %v2546 = vunpack.c.l.b16 %v1311
        %v2547 = vunpack.c.l.b16 %v1312
        %v2548 = vunpack.c.l.b16 %v1313
        %v2549 = vunpack.c.l.b16 %v1314
        %v2550 = vunpack.c.l.b16 %v1315
        %v2551 = vunpack.c.l.b16 %v1316
        %v2552 = vunpack.c.l.b16 %v1317
        %v2553 = vunpack.c.l.b16 %v1318
        %v2554 = vunpack.c.l.b16 %v1319
        %v2555 = vunpack.c.l.b16 %v1320
        %v2556 = vunpack.c.l.b16 %v1321
        %v2557 = vunpack.c.l.b16 %v1322
        %v2558 = vunpack.c.l.b16 %v1323
        %v2559 = vunpack.c.l.b16 %v1324
        %v2560 = vunpack.c.l.b16 %v1325
        %v2561 = vunpack.c.l.b16 %v1326
        %v2562 = vunpack.c.l.b16 %v1327
        %v2563 = vunpack.c.l.b16 %v1328
        %v2564 = vunpack.c.l.b16 %v1329
        %v2565 = vunpack.c.l.b16 %v1330
        %v2566 = vunpack.c.l.b16 %v1331
        %v2567 = vunpack.c.l.b16 %v1332
        %v2568 = vunpack.c.l.b16 %v1333
        %v2569 = vunpack.c.l.b16 %v1334
        %v2570 = vunpack.c.l.b16 %v1335
        %v2571 = vunpack.c.l.b16 %v1336
        %v2572 = vunpack.c.l.b16 %v1337
        %v2573 = vunpack.c.l.b16 %v1338
        %v2574 = vunpack.c.l.b16 %v1339
        %v2575 = vunpack.c.l.b16 %v1340
        %v2576 = vunpack.c.l.b16 %v1341
        %v2577 = vunpack.c.l.b16 %v1342
        %v2578 = vunpack.c.l.b16 %v1343
        %v2579 = vunpack.c.l.b16 %v1344
        %v2580 = vunpack.c.l.b16 %v1345
        %v2581 = vunpack.c.l.b16 %v1346
        %v2582 = vunpack.c.l.b16 %v1347
        %v2583 = vunpack.c.l.b16 %v1348
        %v2584 = vunpack.c.l.b16 %v1349
        %v2585 = vunpack.c.l.b16 %v1350
        %v2586 = vunpack.c.l.b16 %v1351
        %v2587 = vunpack.c.l.b16 %v1352
        %v2588 = vunpack.c.l.b16 %v1353
        %v2589 = vunpack.c.l.b16 %v1354
        %v2590 = vunpack.c.l.b16 %v1355
        %v2591 = vunpack.c.l.b16 %v1356
        %v2592 = vunpack.c.l.b16 %v1357
        %v2593 = vunpack.c.l.b16 %v1358
        %v2594 = vunpack.c.l.b16 %v1359
        %v2595 = vunpack.c.l.b16 %v1360
        %v2596 = vunpack.c.l.b16 %v1361
        %v2597 = vunpack.c.l.b16 %v1362
        %v2598 = vunpack.c.l.b16 %v1363
        %v2599 = vunpack.c.l.b16 %v1364
        %v2600 = vunpack.c.l.b16 %v1365
        %v2601 = vunpack.c.l.b16 %v1366
        %v2602 = vunpack.c.l.b16 %v1367
        %v2603 = vunpack.c.l.b16 %v1368
        %v2604 = vunpack.c.l.b16 %v1369
        %v2605 = vunpack.c.l.b16 %v1370
        %v2606 = vunpack.c.l.b16 %v1371
        %v2607 = vunpack.c.l.b16 %v1372
        %v2608 = vunpack.c.l.b16 %v1373
        %v2609 = vunpack.c.l.b16 %v1374
        %v2610 = vunpack.c.l.b16 %v1375
        %v2611 = vunpack.c.l.b16 %v1376
        %v2612 = vunpack.c.l.b16 %v1377
        %v2613 = vunpack.c.l.b16 %v1378
        %v2614 = vunpack.c.l.b16 %v1379
        %v2615 = vunpack.c.l.b16 %v1380
        %v2616 = vunpack.c.l.b16 %v1381
        %v2617 = vunpack.c.l.b16 %v1382
        %v2618 = vunpack.c.l.b16 %v1383
        %v2619 = vunpack.c.l.b16 %v1384
        %v2620 = vunpack.c.l.b16 %v1385
        %v2621 = vunpack.c.l.b16 %v1386
        %v2622 = vunpack.c.l.b16 %v1387
        %v2623 = vunpack.c.l.b16 %v1388
        %v2624 = vunpack.c.l.b16 %v1389
        %v2625 = vunpack.c.l.b16 %v1390
        %v2626 = vunpack.c.l.b16 %v1391
        %v2627 = vunpack.c.l.b16 %v1392
        %v2628 = vunpack.c.l.b16 %v1393
        %v2629 = vunpack.c.l.b16 %v1394
        %v2630 = vunpack.c.l.b16 %v1395
        %v2631 = vunpack.c.l.b16 %v1396
        %v2632 = vunpack.c.l.b16 %v1397
        %v2633 = vunpack.c.l.b16 %v1398
        %v2634 = vunpack.c.l.b16 %v1399
        %v2635 = vunpack.c.l.b16 %v1400
        %v2636 = vunpack.c.l.b16 %v1401
        %v2637 = vunpack.c.l.b16 %v1402
        %v2638 = vunpack.c.l.b16 %v1403
        %v2639 = vunpack.c.l.b16 %v1404
        %v2640 = vunpack.c.l.b16 %v1405
        %v2641 = vunpack.c.l.b16 %v1406
        %v2642 = vunpack.c.l.b16 %v1407
        %v2643 = vunpack.c.l.b16 %v1408
        %v2644 = vunpack.c.l.b16 %v1409
        %v2645 = vunpack.c.l.b16 %v1410
        %v2646 = vunpack.c.l.b16 %v1411
        %v2647 = vunpack.c.l.b16 %v1412
        %v2648 = vunpack.c.l.b16 %v1413
        %v2649 = vunpack.c.l.b16 %v1414
        %v2650 = vunpack.c.l.b16 %v1415
        %v2651 = vunpack.c.l.b16 %v1416
        %v2652 = vunpack.c.l.b16 %v1417
        %v2653 = vunpack.c.l.b16 %v1418
        %v2654 = vunpack.c.l.b16 %v1419
        %v2655 = vunpack.c.l.b16 %v1420
        %v2656 = vunpack.c.l.b16 %v1421
        %v2657 = vunpack.c.l.b16 %v1422
        %v2658 = vunpack.c.l.b16 %v1423
        %v2659 = vunpack.c.l.b16 %v1424
        %v2660 = vunpack.c.l.b16 %v1425
        %v2661 = vunpack.c.l.b16 %v1426
        %v2662 = vunpack.c.l.b16 %v1427
        %v2663 = vunpack.c.l.b16 %v1428
        %v2664 = vunpack.c.l.b16 %v1429
        %v2665 = vunpack.c.l.b16 %v1430
        %v2666 = vunpack.c.l.b16 %v1431
        %v2667 = vunpack.c.l.b16 %v1432
        %v2668 = vunpack.c.l.b16 %v1433
        %v2669 = vunpack.c.l.b16 %v1434
        %v2670 = vunpack.c.l.b16 %v1435
        %v2671 = vunpack.c.l.b16 %v1436
        %v2672 = vunpack.c.l.b16 %v1437
        %v2673 = vunpack.c.l.b16 %v1438
        %v2674 = vunpack.c.l.b16 %v1439
        %v2675 = vunpack.c.l.b16 %v1440
        %v2676 = vunpack.c.l.b16 %v1441
        %v2677 = vunpack.c.l.b16 %v1442
        %v2678 = vunpack.c.l.b16 %v1443
        %v2679 = vunpack.c.l.b16 %v1444
        %v2680 = vunpack.c.l.b16 %v1445
        %v2681 = vunpack.c.l.b16 %v1446
        %v2682 = vunpack.c.l.b16 %v1447
        %v2683 = vunpack.c.l.b16 %v1448
        %v2684 = vunpack.c.l.b16 %v1449
        %v2685 = vunpack.c.l.b16 %v1450
        %v2686 = vunpack.c.l.b16 %v1451
        %v2687 = vunpack.c.l.b16 %v1452
        %v2688 = vunpack.c.l.b16 %v1453
        %v2689 = vunpack.c.l.b16 %v1454
        %v2690 = vunpack.c.l.b16 %v1455
        %v2691 = vunpack.c.l.b16 %v1456
        %v2692 = vunpack.c.l.b16 %v1457
        %v2693 = vunpack.c.l.b16 %v1458
        %v2694 = vunpack.c.l.b16 %v1459
        %v2695 = vunpack.c.l.b16 %v1460
        %v2696 = vunpack.c.l.b16 %v1461
        %v2697 = vunpack.c.l.b16 %v1462
        %v2698 = vunpack.c.l.b16 %v1463
        %v2699 = vunpack.c.l.b16 %v1464
        %v2700 = vunpack.c.l.b16 %v1465
        %v2701 = vunpack.c.l.b16 %v1466
        %v2702 = vunpack.c.l.b16 %v1467
        %v2703 = vunpack.c.l.b16 %v1468
        %v2704 = vunpack.c.l.b16 %v1469
        %v2705 = vunpack.c.l.b16 %v1470
        %v2706 = vunpack.c.l.b16 %v1471
        %v2707 = vunpack.c.l.b16 %v1472
        %v2708 = vunpack.c.l.b16 %v1473
        %v2709 = vunpack.c.l.b16 %v1474
        %v2710 = vunpack.c.l.b16 %v1475
        %v2711 = vunpack.c.l.b16 %v1476
        %v2712 = vunpack.c.l.b16 %v1477
        %v2713 = vunpack.c.l.b16 %v1478
        %v2714 = vunpack.c.l.b16 %v1479
        %v2715 = vunpack.c.l.b16 %v1480
        %v2716 = vunpack.c.l.b16 %v1481
        %v2717 = vunpack.c.l.b16 %v1482
        %v2718 = vunpack.c.l.b16 %v1483
        %v2719 = vunpack.c.l.b16 %v1484
        %v2720 = vunpack.c.l.b16 %v1485
        %v2721 = vunpack.c.l.b16 %v1486
        %v2722 = vunpack.c.l.b16 %v1487
        %v2723 = vunpack.c.l.b16 %v1488
        %v2724 = vunpack.c.l.b16 %v1489
        %v2725 = vunpack.c.l.b16 %v1490
        %v2726 = vunpack.c.l.b16 %v1491
        %v2727 = vunpack.c.l.b16 %v1492
        %v2728 = vunpack.c.l.b16 %v1493
        %v2729 = vunpack.c.l.b16 %v1494
        %v2730 = vunpack.c.l.b16 %v1495
        %v2731 = vunpack.c.l.b16 %v1496
        %v2732 = vunpack.c.l.b16 %v1497
        %v2733 = vunpack.c.l.b16 %v1498
        %v2734 = vunpack.c.l.b16 %v1499
        %v2735 = vunpack.c.l.b16 %v1500
        %v2736 = vunpack.c.l.b16 %v1501
        %v2737 = vunpack.c.l.b16 %v1502
        %v2738 = vunpack.c.l.b16 %v1503
        %v2739 = vunpack.c.l.b16 %v1504
        %v2740 = vunpack.c.l.b16 %v1505
        %v2741 = vunpack.c.l.b16 %v1506
        %v2742 = vunpack.c.l.b16 %v1507
        %v2743 = vunpack.c.l.b16 %v1508
        %v2744 = vunpack.c.l.b16 %v1509
        %v2745 = vunpack.c.l.b16 %v1510
        %v2746 = vunpack.c.l.b16 %v1511
        %v2747 = vunpack.c.l.b16 %v1512
        %v2748 = vunpack.c.l.b16 %v1513
        %v2749 = vunpack.c.l.b16 %v1514
        %v2750 = vunpack.c.l.b16 %v1515
        %v2751 = vunpack.c.l.b16 %v1516
        %v2752 = vunpack.c.l.b16 %v1517
        %v2753 = vunpack.c.l.b16 %v1518
        %v2754 = vunpack.c.l.b16 %v1519
        %v2755 = vunpack.c.l.b16 %v1520
        %v2756 = vunpack.c.l.b16 %v1521
        %v2757 = vunpack.c.l.b16 %v1522
        %v2758 = vunpack.c.l.b16 %v1523
        %v2759 = vunpack.c.l.b16 %v1524
        %v2760 = vunpack.c.l.b16 %v1525
        %v2761 = vunpack.c.l.b16 %v1526
        %v2762 = vunpack.c.l.b16 %v1527
        %v2763 = vunpack.c.l.b16 %v1528
        %v2764 = vunpack.c.l.b16 %v1529
        %v2765 = vunpack.c.l.b16 %v1530
        %v2766 = vunpack.c.l.b16 %v1531
        %v2767 = vunpack.c.l.b16 %v1532
        %v2768 = vunpack.c.l.b16 %v1533
        %v2769 = vunpack.c.l.b16 %v1534
        %v2770 = vunpack.c.l.b16 %v1535
        %v2771 = vunpack.c.l.b16 %v1536
        %v2772 = vunpack.c.l.b16 %v1537
        %v2773 = vunpack.c.l.b16 %v1538
        %v2774 = vunpack.c.l.b16 %v1539
        %v2775 = vunpack.c.l.b16 %v1540
        %v2776 = vunpack.c.l.b16 %v1541
        %v2777 = vunpack.c.l.b16 %v1542
        %v2778 = vunpack.c.l.b16 %v1543
        %v2779 = vunpack.c.l.b16 %v1544
        %v2780 = vunpack.c.l.b16 %v1545
        %v2781 = vunpack.c.l.b16 %v1546
        %v2782 = vunpack.c.l.b16 %v1547
        %v2783 = vunpack.c.l.b16 %v1548
        %v2784 = vunpack.c.l.b16 %v1549
        %v2785 = vunpack.c.l.b16 %v1550
        %v2786 = vunpack.c.l.b16 %v1551
        %v2787 = vunpack.c.l.b16 %v1552
        %v2788 = vunpack.c.l.b16 %v1553
        %v2789 = vunpack.c.l.b16 %v1554
        %v2790 = vunpack.c.l.b16 %v1555
        %v2791 = vunpack.c.l.b16 %v1556
        %v2792 = vunpack.c.l.b16 %v1557
        %v2793 = vunpack.c.l.b16 %v1558
        %v2794 = vunpack.c.l.b16 %v1559
        %v2795 = vunpack.c.l.b16 %v1560
        %v2796 = vunpack.c.l.b16 %v1561
        %v2797 = vunpack.c.l.b16 %v1562
        %v2798 = vunpack.c.l.b16 %v1563
        %v2799 = vunpack.c.l.b16 %v1564
        %v2800 = vunpack.c.l.b16 %v1565
        %v2801 = vunpack.c.l.b16 %v1566
        %v2802 = vunpack.c.l.b16 %v1567
        %v2803 = vunpack.c.l.b16 %v1568
        %v2804 = vunpack.c.l.b16 %v1569
        %v2805 = vunpack.c.l.b16 %v1570
        %v2806 = vunpack.c.l.b16 %v1571
        %v2807 = vunpack.c.l.b16 %v1572
        %v2808 = vunpack.c.l.b16 %v1573
        %v2809 = vunpack.c.l.b16 %v1574
        %v2810 = vunpack.c.l.b16 %v1575
        %v2811 = vunpack.c.l.b16 %v1576
        %v2812 = vunpack.c.l.b16 %v1577
        %v2813 = vunpack.c.l.b16 %v1578
        %v2814 = vunpack.c.l.b16 %v1579
        %v2815 = vunpack.c.l.b16 %v1580
        %v2816 = vunpack.c.l.b16 %v1581
        %v2817 = vunpack.c.l.b16 %v1582
        %v2818 = vunpack.c.l.b16 %v1583
        %v2819 = vunpack.c.l.b16 %v1584
        %v2820 = vunpack.c.l.b16 %v1585
        %v2821 = vunpack.c.l.b16 %v1586
        %v2822 = vunpack.c.l.b16 %v1587
        %v2823 = vunpack.c.l.b16 %v1588
        %v2824 = vunpack.c.l.b16 %v1589
        %v2825 = vunpack.c.l.b16 %v1590
        %v2826 = vunpack.c.l.b16 %v1591
        %v2827 = vunpack.c.l.b16 %v1592
        %v2828 = vunpack.c.l.b16 %v1593
        %v2829 = vunpack.c.l.b16 %v1594
        %v2830 = vunpack.c.l.b16 %v1595
        %v2831 = vunpack.c.l.b16 %v1596
        %v2832 = vunpack.c.l.b16 %v1597
        %v2833 = vunpack.c.l.b16 %v1598
        %v2834 = vunpack.c.l.b16 %v1599
        %v2835 = vunpack.c.l.b16 %v1600
        %v2836 = vunpack.c.l.b16 %v1601
        %v2837 = vunpack.c.l.b16 %v1602
        %v2838 = vunpack.c.l.b16 %v1603
        %v2839 = vunpack.c.l.b16 %v1604
        %v2840 = vunpack.c.l.b16 %v1605
        %v2841 = vunpack.c.l.b16 %v1606
        %v2842 = vunpack.c.l.b16 %v1607
        %v2843 = vunpack.c.l.b16 %v1608
        %v2844 = vunpack.c.l.b16 %v1609
        %v2845 = vunpack.c.l.b16 %v1610
        %v2846 = vunpack.c.l.b16 %v1611
        %v2847 = vunpack.c.l.b16 %v1612
        %v2848 = vunpack.c.l.b16 %v1613
        %v2849 = vunpack.c.l.b16 %v1614
        %v2850 = vunpack.c.l.b16 %v1615
        %v2851 = vunpack.c.l.b16 %v1616
        %v2852 = vunpack.c.l.b16 %v1617
        %v2853 = vunpack.c.l.b16 %v1618
        %v2854 = vunpack.c.l.b16 %v1619
        %v2855 = vunpack.c.l.b16 %v1620
        %v2856 = vunpack.c.l.b16 %v1621
        %v2857 = vunpack.c.l.b16 %v1622
        %v2858 = vunpack.c.l.b16 %v1623
        %v2859 = vunpack.c.l.b16 %v1624
        %v2860 = vunpack.c.l.b16 %v1625
        %v2861 = vunpack.c.l.b16 %v1626
        %v2862 = vunpack.c.l.b16 %v1627
        %v2863 = vunpack.c.l.b16 %v1628
        %v2864 = vunpack.c.l.b16 %v1629
        %v2865 = vunpack.c.l.b16 %v1630
        %v2866 = vunpack.c.l.b16 %v1631
        %v2867 = vunpack.c.l.b16 %v1632
        %v2868 = vunpack.c.l.b16 %v1633
        %v2869 = vunpack.c.l.b16 %v1634
        %v2870 = vunpack.c.l.b16 %v1635
        %v2871 = vunpack.c.l.b16 %v1636
        %v2872 = vunpack.c.l.b16 %v1637
        %v2873 = vunpack.c.l.b16 %v1638
        %v2874 = vunpack.c.l.b16 %v1639
        %v2875 = vunpack.c.l.b16 %v1640
        %v2876 = vunpack.c.l.b16 %v1641
        %v2877 = vunpack.c.l.b16 %v1642
        %v2878 = vunpack.c.l.b16 %v1643
        %v2879 = vunpack.c.l.b16 %v1644
        %v2880 = vunpack.c.l.b16 %v1645
        %v2881 = vunpack.c.l.b16 %v1646
        %v2882 = vunpack.c.l.b16 %v1647
        %v2883 = vunpack.c.l.b16 %v1648
        %v2884 = vunpack.c.l.b16 %v1649
        %v2885 = vunpack.c.l.b16 %v1650
        %v2886 = vunpack.c.l.b16 %v1651
        %v2887 = vunpack.c.l.b16 %v1652
        %v2888 = vunpack.c.l.b16 %v1653
        %v2889 = vunpack.c.l.b16 %v1654
        %v2890 = vunpack.c.l.b16 %v1655
        %v2891 = vunpack.c.l.b16 %v1656
        %v2892 = vunpack.c.l.b16 %v1657
        %v2893 = vunpack.c.l.b16 %v1658
        %v2894 = vunpack.c.l.b16 %v1659
        %v2895 = vunpack.c.l.b16 %v1660
        %v2896 = vunpack.c.l.b16 %v1661
        %v2897 = vunpack.c.l.b16 %v1662
        %v2898 = vunpack.c.l.b16 %v1663
        %v2899 = vunpack.c.l.b16 %v1664
        %v2900 = vunpack.c.l.b16 %v1665
        %v2901 = vunpack.c.l.b16 %v1666
        %v2902 = vunpack.c.l.b16 %v1667
        %v2903 = vunpack.c.l.b16 %v1668
        %v2904 = vunpack.c.l.b16 %v1669
        %v2905 = vunpack.c.l.b16 %v1670
        %v2906 = vunpack.c.l.b16 %v1671
        %v2907 = vunpack.c.l.b16 %v1672
        %v2908 = vunpack.c.l.b16 %v1673
        %v2909 = vunpack.c.l.b16 %v1674
        %v2910 = vunpack.c.l.b16 %v1675
        %v2911 = vunpack.c.l.b16 %v1676
        %v2912 = vunpack.c.l.b16 %v1677
        %v2913 = vunpack.c.l.b16 %v1678
        %v2914 = vunpack.c.l.b16 %v1679
        %v2915 = vunpack.c.l.b16 %v1680
        %v2916 = vunpack.c.l.b16 %v1681
        %v2917 = vunpack.c.l.b16 %v1682
        %v2918 = vunpack.c.l.b16 %v1683
        %v2919 = vunpack.c.l.b16 %v1684
        %v2920 = vunpack.c.l.b16 %v1685
        %v2921 = vunpack.c.l.b16 %v1686
        %v2922 = vunpack.c.l.b16 %v1687
        %v2923 = vunpack.c.l.b16 %v1688
        %v2924 = vunpack.c.l.b16 %v1689
        %v2925 = vunpack.c.l.b16 %v1690
        %v2926 = vunpack.c.l.b16 %v1691
        %v2927 = vunpack.c.l.b16 %v1692
        %v2928 = vunpack.c.l.b16 %v1693
        %v2929 = vunpack.c.l.b16 %v1694
        %v2930 = vunpack.c.l.b16 %v1695
        %v2931 = vunpack.c.l.b16 %v1696
        %v2932 = vunpack.c.l.b16 %v1697
        %v2933 = vunpack.c.l.b16 %v1698
        %v2934 = vunpack.c.l.b16 %v1699
        %v2935 = vunpack.c.l.b16 %v1700
        %v2936 = vunpack.c.l.b16 %v1701
        %v2937 = vunpack.c.l.b16 %v1702
        %v2938 = vunpack.c.l.b16 %v1703
        %v2939 = vunpack.c.l.b16 %v1704
        %v2940 = vunpack.c.l.b16 %v1705
        %v2941 = vunpack.c.l.b16 %v1706
        %v2942 = vunpack.c.l.b16 %v1707
        %v2943 = vunpack.c.l.b16 %v1708
        %v2944 = vunpack.c.l.b16 %v1709
        %v2945 = vunpack.c.l.b16 %v1710
        %v2946 = vunpack.c.l.b16 %v1711
        %v2947 = vunpack.c.l.b16 %v1712
        %v2948 = vunpack.c.l.b16 %v1713
        %v2949 = vunpack.c.l.b16 %v1714
        %v2950 = vunpack.c.l.b16 %v1715
        %v2951 = vunpack.c.l.b16 %v1716
        %v2952 = vunpack.c.l.b16 %v1717
        %v2953 = vunpack.c.l.b16 %v1718
        %v2954 = vunpack.c.l.b16 %v1719
        %v2955 = vunpack.c.l.b16 %v1720
        %v2956 = vunpack.c.l.b16 %v1721
        %v2957 = vpack.c.b16 %v2382, %v2381
        %v2958 = vpack.c.b16 %v2384, %v2383
        %v2959 = vpack.c.b16 %v2386, %v2385
        %v2960 = vpack.c.b16 %v2388, %v2387
        %v2961 = vpack.c.b16 %v2390, %v2389
        %v2962 = vpack.c.b16 %v2392, %v2391
        %v2963 = vpack.c.b16 %v2394, %v2393
        %v2964 = vpack.c.b16 %v2396, %v2395
        %v2965 = vpack.c.b16 %v2398, %v2397
        %v2966 = vpack.c.b16 %v2400, %v2399
        %v2967 = vpack.c.b16 %v2402, %v2401
        %v2968 = vpack.c.b16 %v2404, %v2403
        %v2969 = vpack.c.b16 %v2406, %v2405
        %v2970 = vpack.c.b16 %v2408, %v2407
        %v2971 = vpack.c.b16 %v2410, %v2409
        %v2972 = vpack.c.b16 %v2412, %v2411
        %v2973 = vpack.c.b16 %v2414, %v2413
        %v2974 = vpack.c.b16 %v2416, %v2415
        %v2975 = vpack.c.b16 %v2418, %v2417
        %v2976 = vpack.c.b16 %v2420, %v2419
        %v2977 = vpack.c.b16 %v2422, %v2421
        %v2978 = vpack.c.b16 %v2424, %v2423
        %v2979 = vpack.c.b16 %v2426, %v2425
        %v2980 = vpack.c.b16 %v2428, %v2427
        %v2981 = vpack.c.b16 %v2430, %v2429
        %v2982 = vpack.c.b16 %v2432, %v2431
        %v2983 = vpack.c.b16 %v2434, %v2433
        %v2984 = vpack.c.b16 %v2436, %v2435
        %v2985 = vpack.c.b16 %v2438, %v2437
        %v2986 = vpack.c.b16 %v2440, %v2439
        %v2987 = vpack.c.b16 %v2442, %v2441
        %v2988 = vpack.c.b16 %v2444, %v2443
        %v2989 = vpack.c.b16 %v2446, %v2445
        %v2990 = vpack.c.b16 %v2448, %v2447
        %v2991 = vpack.c.b16 %v2450, %v2449
        %v2992 = vpack.c.b16 %v2452, %v2451
        %v2993 = vpack.c.b16 %v2454, %v2453
        %v2994 = vpack.c.b16 %v2456, %v2455
        %v2995 = vpack.c.b16 %v2458, %v2457
        %v2996 = vpack.c.b16 %v2460, %v2459
        %v2997 = vpack.c.b16 %v2462, %v2461
        %v2998 = vpack.c.b16 %v2464, %v2463
        %v2999 = vpack.c.b16 %v2466, %v2465
        %v3000 = vpack.c.b16 %v2468, %v2467
        %v3001 = vpack.c.b16 %v2470, %v2469
        %v3002 = vpack.c.b16 %v2472, %v2471
        %v3003 = vpack.c.b16 %v2474, %v2473
        %v3004 = vpack.c.b16 %v2476, %v2475
        %v3005 = vpack.c.b16 %v2478, %v2477
        %v3006 = vpack.c.b16 %v2480, %v2479
        %v3007 = vpack.c.b16 %v2482, %v2481
        %v3008 = vpack.c.b16 %v2484, %v2483
        %v3009 = vpack.c.b16 %v2486, %v2485
        %v3010 = vpack.c.b16 %v2488, %v2487
        %v3011 = vpack.c.b16 %v2490, %v2489
        %v3012 = vpack.c.b16 %v2492, %v2491
        %v3013 = vpack.c.b16 %v2494, %v2493
        %v3014 = vpack.c.b16 %v2496, %v2495
        %v3015 = vpack.c.b16 %v2498, %v2497
        %v3016 = vpack.c.b16 %v2500, %v2499
        %v3017 = vpack.c.b16 %v2502, %v2501
        %v3018 = vpack.c.b16 %v2504, %v2503
        %v3019 = vpack.c.b16 %v2506, %v2505
        %v3020 = vpack.c.b16 %v2508, %v2507
        %v3021 = vpack.c.b16 %v2510, %v2509
        %v3022 = vpack.c.b16 %v2512, %v2511
        %v3023 = vpack.c.b16 %v2514, %v2513
        %v3024 = vpack.c.b16 %v2516, %v2515
        %v3025 = vpack.c.b16 %v2518, %v2517
        %v3026 = vpack.c.b16 %v2520, %v2519
        %v3027 = vpack.c.b16 %v2522, %v2521
        %v3028 = vpack.c.b16 %v2524, %v2523
        %v3029 = vpack.c.b16 %v2526, %v2525
        %v3030 = vpack.c.b16 %v2528, %v2527
        %v3031 = vpack.c.b16 %v2530, %v2529
        %v3032 = vpack.c.b16 %v2532, %v2531
        %v3033 = vpack.c.b16 %v2534, %v2533
        %v3034 = vpack.c.b16 %v2536, %v2535
        %v3035 = vpack.c.b16 %v2538, %v2537
        %v3036 = vpack.c.b16 %v2540, %v2539
        %v3037 = vpack.c.b16 %v2542, %v2541
        %v3038 = vpack.c.b16 %v2544, %v2543
        %v3039 = vpack.c.b16 %v2546, %v2545
        %v3040 = vpack.c.b16 %v2548, %v2547
        %v3041 = vpack.c.b16 %v2550, %v2549
        %v3042 = vpack.c.b16 %v2552, %v2551
        %v3043 = vpack.c.b16 %v2554, %v2553
        %v3044 = vpack.c.b16 %v2556, %v2555
        %v3045 = vpack.c.b16 %v2558, %v2557
        %v3046 = vpack.c.b16 %v2560, %v2559
        %v3047 = vpack.c.b16 %v2562, %v2561
        %v3048 = vpack.c.b16 %v2564, %v2563
        %v3049 = vpack.c.b16 %v2566, %v2565
        %v3050 = vpack.c.b16 %v2568, %v2567
        %v3051 = vpack.c.b16 %v2570, %v2569
        %v3052 = vpack.c.b16 %v2572, %v2571
        %v3053 = vpack.c.b16 %v2574, %v2573
        %v3054 = vpack.c.b16 %v2576, %v2575
        %v3055 = vpack.c.b16 %v2578, %v2577
        %v3056 = vpack.c.b16 %v2580, %v2579
        %v3057 = vpack.c.b16 %v2582, %v2581
        %v3058 = vpack.c.b16 %v2584, %v2583
        %v3059 = vpack.c.b16 %v2586, %v2585
        %v3060 = vpack.c.b16 %v2588, %v2587
        %v3061 = vpack.c.b16 %v2590, %v2589
        %v3062 = vpack.c.b16 %v2592, %v2591
        %v3063 = vpack.c.b16 %v2594, %v2593
        %v3064 = vpack.c.b16 %v2596, %v2595
        %v3065 = vpack.c.b16 %v2598, %v2597
        %v3066 = vpack.c.b16 %v2600, %v2599
        %v3067 = vpack.c.b16 %v2602, %v2601
        %v3068 = vpack.c.b16 %v2604, %v2603
        %v3069 = vpack.c.b16 %v2606, %v2605
        %v3070 = vpack.c.b16 %v2608, %v2607
        %v3071 = vpack.c.b16 %v2610, %v2609
        %v3072 = vpack.c.b16 %v2612, %v2611
        %v3073 = vpack.c.b16 %v2614, %v2613
        %v3074 = vpack.c.b16 %v2616, %v2615
        %v3075 = vpack.c.b16 %v2618, %v2617
        %v3076 = vpack.c.b16 %v2620, %v2619
        %v3077 = vpack.c.b16 %v2622, %v2621
        %v3078 = vpack.c.b16 %v2624, %v2623
        %v3079 = vpack.c.b16 %v2626, %v2625
        %v3080 = vpack.c.b16 %v2628, %v2627
        %v3081 = vpack.c.b16 %v2630, %v2629
        %v3082 = vpack.c.b16 %v2632, %v2631
        %v3083 = vpack.c.b16 %v2634, %v2633
        %v3084 = vpack.c.b16 %v2636, %v2635
        %v3085 = vpack.c.b16 %v2638, %v2637
        %v3086 = vpack.c.b16 %v2640, %v2639
        %v3087 = vpack.c.b16 %v2642, %v2641
        %v3088 = vpack.c.b16 %v2644, %v2643
        %v3089 = vpack.c.b16 %v2646, %v2645
        %v3090 = vpack.c.b16 %v2648, %v2647
        %v3091 = vpack.c.b16 %v2650, %v2649
        %v3092 = vpack.c.b16 %v2652, %v2651
        %v3093 = vpack.c.b16 %v2654, %v2653
        %v3094 = vpack.c.b16 %v2656, %v2655
        %v3095 = vpack.c.b16 %v2658, %v2657
        %v3096 = vpack.c.b16 %v2660, %v2659
        %v3097 = vpack.c.b16 %v2662, %v2661
        %v3098 = vpack.c.b16 %v2664, %v2663
        %v3099 = vpack.c.b16 %v2666, %v2665
        %v3100 = vpack.c.b16 %v2668, %v2667
        %v3101 = vpack.c.b16 %v2670, %v2669
        %v3102 = vpack.c.b16 %v2672, %v2671
        %v3103 = vpack.c.b16 %v2674, %v2673
        %v3104 = vpack.c.b16 %v2676, %v2675
        %v3105 = vpack.c.b16 %v2678, %v2677
        %v3106 = vpack.c.b16 %v2680, %v2679
        %v3107 = vpack.c.b16 %v2682, %v2681
        %v3108 = vpack.c.b16 %v2684, %v2683
        %v3109 = vpack.c.b16 %v2686, %v2685
        %v3110 = vpack.c.b16 %v2688, %v2687
        %v3111 = vpack.c.b16 %v2690, %v2689
        %v3112 = vpack.c.b16 %v2692, %v2691
        %v3113 = vpack.c.b16 %v2694, %v2693
        %v3114 = vpack.c.b16 %v2696, %v2695
        %v3115 = vpack.c.b16 %v2698, %v2697
        %v3116 = vpack.c.b16 %v2700, %v2699
        %v3117 = vpack.c.b16 %v2702, %v2701
        %v3118 = vpack.c.b16 %v2704, %v2703
        %v3119 = vpack.c.b16 %v2706, %v2705
        %v3120 = vpack.c.b16 %v2708, %v2707
        %v3121 = vpack.c.b16 %v2710, %v2709
        %v3122 = vpack.c.b16 %v2712, %v2711
        %v3123 = vpack.c.b16 %v2714, %v2713
        %v3124 = vpack.c.b16 %v2716, %v2715
        %v3125 = vpack.c.b16 %v2718, %v2717
        %v3126 = vpack.c.b16 %v2720, %v2719
        %v3127 = vpack.c.b16 %v2722, %v2721
        %v3128 = vpack.c.b16 %v2724, %v2723
        %v3129 = vpack.c.b16 %v2726, %v2725
        %v3130 = vpack.c.b16 %v2728, %v2727
        %v3131 = vpack.c.b16 %v2730, %v2729
        %v3132 = vpack.c.b16 %v2732, %v2731
        %v3133 = vpack.c.b16 %v2734, %v2733
        %v3134 = vpack.c.b16 %v2736, %v2735
        %v3135 = vpack.c.b16 %v2738, %v2737
        %v3136 = vpack.c.b16 %v2740, %v2739
        %v3137 = vpack.c.b16 %v2742, %v2741
        %v3138 = vpack.c.b16 %v2744, %v2743
        %v3139 = vpack.c.b16 %v2746, %v2745
        %v3140 = vpack.c.b16 %v2748, %v2747
        %v3141 = vpack.c.b16 %v2750, %v2749
        %v3142 = vpack.c.b16 %v2752, %v2751
        %v3143 = vpack.c.b16 %v2754, %v2753
        %v3144 = vpack.c.b16 %v2756, %v2755
        %v3145 = vpack.c.b16 %v2758, %v2757
        %v3146 = vpack.c.b16 %v2760, %v2759
        %v3147 = vpack.c.b16 %v2762, %v2761
        %v3148 = vpack.c.b16 %v2764, %v2763
        %v3149 = vpack.c.b16 %v2766, %v2765
        %v3150 = vpack.c.b16 %v2768, %v2767
        %v3151 = vpack.c.b16 %v2770, %v2769
        %v3152 = vpack.c.b16 %v2772, %v2771
        %v3153 = vpack.c.b16 %v2774, %v2773
        %v3154 = vpack.c.b16 %v2776, %v2775
        %v3155 = vpack.c.b16 %v2778, %v2777
        %v3156 = vpack.c.b16 %v2780, %v2779
        %v3157 = vpack.c.b16 %v2782, %v2781
        %v3158 = vpack.c.b16 %v2784, %v2783
        %v3159 = vpack.c.b16 %v2786, %v2785
        %v3160 = vpack.c.b16 %v2788, %v2787
        %v3161 = vpack.c.b16 %v2790, %v2789
        %v3162 = vpack.c.b16 %v2792, %v2791
        %v3163 = vpack.c.b16 %v2794, %v2793
        %v3164 = vpack.c.b16 %v2796, %v2795
        %v3165 = vpack.c.b16 %v2798, %v2797
        %v3166 = vpack.c.b16 %v2800, %v2799
        %v3167 = vpack.c.b16 %v2802, %v2801
        %v3168 = vpack.c.b16 %v2804, %v2803
        %v3169 = vpack.c.b16 %v2806, %v2805
        %v3170 = vpack.c.b16 %v2808, %v2807
        %v3171 = vpack.c.b16 %v2810, %v2809
        %v3172 = vpack.c.b16 %v2812, %v2811
        %v3173 = vpack.c.b16 %v2814, %v2813
        %v3174 = vpack.c.b16 %v2816, %v2815
        %v3175 = vpack.c.b16 %v2818, %v2817
        %v3176 = vpack.c.b16 %v2820, %v2819
        %v3177 = vpack.c.b16 %v2822, %v2821
        %v3178 = vpack.c.b16 %v2824, %v2823
        %v3179 = vpack.c.b16 %v2826, %v2825
        %v3180 = vpack.c.b16 %v2828, %v2827
        %v3181 = vpack.c.b16 %v2830, %v2829
        %v3182 = vpack.c.b16 %v2832, %v2831
        %v3183 = vpack.c.b16 %v2834, %v2833
        %v3184 = vpack.c.b16 %v2836, %v2835
        %v3185 = vpack.c.b16 %v2838, %v2837
        %v3186 = vpack.c.b16 %v2840, %v2839
        %v3187 = vpack.c.b16 %v2842, %v2841
        %v3188 = vpack.c.b16 %v2844, %v2843
        %v3189 = vpack.c.b16 %v2846, %v2845
        %v3190 = vpack.c.b16 %v2848, %v2847
        %v3191 = vpack.c.b16 %v2850, %v2849
        %v3192 = vpack.c.b16 %v2852, %v2851
        %v3193 = vpack.c.b16 %v2854, %v2853
        %v3194 = vpack.c.b16 %v2856, %v2855
        %v3195 = vpack.c.b16 %v2858, %v2857
        %v3196 = vpack.c.b16 %v2860, %v2859
        %v3197 = vpack.c.b16 %v2862, %v2861
        %v3198 = vpack.c.b16 %v2864, %v2863
        %v3199 = vpack.c.b16 %v2866, %v2865
        %v3200 = vpack.c.b16 %v2868, %v2867
        %v3201 = vpack.c.b16 %v2870, %v2869
        %v3202 = vpack.c.b16 %v2872, %v2871
        %v3203 = vpack.c.b16 %v2874, %v2873
        %v3204 = vpack.c.b16 %v2876, %v2875
        %v3205 = vpack.c.b16 %v2878, %v2877
        %v3206 = vpack.c.b16 %v2880, %v2879
        %v3207 = vpack.c.b16 %v2882, %v2881
        %v3208 = vpack.c.b16 %v2884, %v2883
        %v3209 = vpack.c.b16 %v2886, %v2885
        %v3210 = vpack.c.b16 %v2888, %v2887
        %v3211 = vpack.c.b16 %v2890, %v2889
        %v3212 = vpack.c.b16 %v2892, %v2891
        %v3213 = vpack.c.b16 %v2894, %v2893
        %v3214 = vpack.c.b16 %v2896, %v2895
        %v3215 = vpack.c.b16 %v2898, %v2897
        %v3216 = vpack.c.b16 %v2900, %v2899
        %v3217 = vpack.c.b16 %v2902, %v2901
        %v3218 = vpack.c.b16 %v2904, %v2903
        %v3219 = vpack.c.b16 %v2906, %v2905
        %v3220 = vpack.c.b16 %v2908, %v2907
        %v3221 = vpack.c.b16 %v2910, %v2909
        %v3222 = vpack.c.b16 %v2912, %v2911
        %v3223 = vpack.c.b16 %v2914, %v2913
        %v3224 = vpack.c.b16 %v2916, %v2915
        %v3225 = vpack.c.b16 %v2918, %v2917
        %v3226 = vpack.c.b16 %v2920, %v2919
        %v3227 = vpack.c.b16 %v2922, %v2921
        %v3228 = vpack.c.b16 %v2924, %v2923
        %v3229 = vpack.c.b16 %v2926, %v2925
        %v3230 = vpack.c.b16 %v2928, %v2927
        %v3231 = vpack.c.b16 %v2930, %v2929
        %v3232 = vpack.c.b16 %v2932, %v2931
        %v3233 = vpack.c.b16 %v2934, %v2933
        %v3234 = vpack.c.b16 %v2936, %v2935
        %v3235 = vpack.c.b16 %v2938, %v2937
        %v3236 = vpack.c.b16 %v2940, %v2939
        %v3237 = vpack.c.b16 %v2942, %v2941
        %v3238 = vpack.c.b16 %v2944, %v2943
        %v3239 = vpack.c.b16 %v2946, %v2945
        %v3240 = vpack.c.b16 %v2948, %v2947
        %v3241 = vpack.c.b16 %v2950, %v2949
        %v3242 = vpack.c.b16 %v2952, %v2951
        %v3243 = vpack.c.b16 %v2954, %v2953
        %v3244 = vpack.c.b16 %v2956, %v2955
        %3533 = vmatpush.bf16.msra.mxu0 %v2964
        %3534 = vmatpush.bf16.msra.mxu0 %v2963
        %3535 = vmatpush.bf16.msra.mxu0 %v2962
        %3536 = vmatpush.bf16.msra.mxu0 %v2961
        %3537 = vmatpush.bf16.msra.mxu0 %v2960
        %3538 = vmatpush.bf16.msra.mxu0 %v2959
        %3539 = vmatpush.bf16.msra.mxu0 %v2958
        %3540 = vmatpush.bf16.msra.mxu0 %v2957
        %3541 = vmatmul.bf16.gmra.mxu0 %v1725
        %v3542 = vpop.f32.mrf.mxu0
        %v3543 = vadd.f32 0.0, %v3542
        %v3544 = vpop.f32.mrf.mxu0
        %3545 = vdwg.mxu0
        %3546 = vmatpush.bf16.msra.mxu0 %v2972
        %3547 = vmatpush.bf16.msra.mxu0 %v2971
        %3548 = vmatpush.bf16.msra.mxu0 %v2970
        %3549 = vmatpush.bf16.msra.mxu0 %v2969
        %3550 = vmatpush.bf16.msra.mxu0 %v2968
        %3551 = vmatpush.bf16.msra.mxu0 %v2967
        %3552 = vmatpush.bf16.msra.mxu0 %v2966
        %3553 = vmatpush.bf16.msra.mxu0 %v2965
        %3554 = vmatmul.bf16.gmra.mxu0 %v1726
        %v3555 = vpop.f32.mrf.mxu0
        %v3556 = vadd.f32 %v3543, %v3555
        %v3557 = vpop.f32.mrf.mxu0
        %3558 = vdwg.mxu0
        %3559 = vmatpush.bf16.msra.mxu0 %v2980
        %3560 = vmatpush.bf16.msra.mxu0 %v2979
        %3561 = vmatpush.bf16.msra.mxu0 %v2978
        %3562 = vmatpush.bf16.msra.mxu0 %v2977
        %3563 = vmatpush.bf16.msra.mxu0 %v2976
        %3564 = vmatpush.bf16.msra.mxu0 %v2975
        %3565 = vmatpush.bf16.msra.mxu0 %v2974
        %3566 = vmatpush.bf16.msra.mxu0 %v2973
        %3567 = vmatmul.bf16.gmra.mxu0 %v1727
        %v3568 = vpop.f32.mrf.mxu0
        %v3569 = vadd.f32 %v3556, %v3568
        %v3570 = vpop.f32.mrf.mxu0
        %3571 = vdwg.mxu0
        %3572 = vmatpush.bf16.msra.mxu0 %v2988
        %3573 = vmatpush.bf16.msra.mxu0 %v2987
        %3574 = vmatpush.bf16.msra.mxu0 %v2986
        %3575 = vmatpush.bf16.msra.mxu0 %v2985
        %3576 = vmatpush.bf16.msra.mxu0 %v2984
        %3577 = vmatpush.bf16.msra.mxu0 %v2983
        %3578 = vmatpush.bf16.msra.mxu0 %v2982
        %3579 = vmatpush.bf16.msra.mxu0 %v2981
        %3580 = vmatmul.bf16.gmra.mxu0 %v1728
        %v3581 = vpop.f32.mrf.mxu0
        %v3582 = vadd.f32 %v3569, %v3581
        %v3583 = vpop.f32.mrf.mxu0
        %3584 = vdwg.mxu0
        %3585 = vmatpush.bf16.msra.mxu0 %v2996
        %3586 = vmatpush.bf16.msra.mxu0 %v2995
        %3587 = vmatpush.bf16.msra.mxu0 %v2994
        %3588 = vmatpush.bf16.msra.mxu0 %v2993
        %3589 = vmatpush.bf16.msra.mxu0 %v2992
        %3590 = vmatpush.bf16.msra.mxu0 %v2991
        %3591 = vmatpush.bf16.msra.mxu0 %v2990
        %3592 = vmatpush.bf16.msra.mxu0 %v2989
        %3593 = vmatmul.bf16.gmra.mxu0 %v1729
        %v3594 = vpop.f32.mrf.mxu0
        %v3595 = vadd.f32 %v3582, %v3594
        %v3596 = vpop.f32.mrf.mxu0
        %3597 = vdwg.mxu0
        %3598 = vmatpush.bf16.msra.mxu0 %v3004
        %3599 = vmatpush.bf16.msra.mxu0 %v3003
        %3600 = vmatpush.bf16.msra.mxu0 %v3002
        %3601 = vmatpush.bf16.msra.mxu0 %v3001
        %3602 = vmatpush.bf16.msra.mxu0 %v3000
        %3603 = vmatpush.bf16.msra.mxu0 %v2999
        %3604 = vmatpush.bf16.msra.mxu0 %v2998
        %3605 = vmatpush.bf16.msra.mxu0 %v2997
        %3606 = vmatmul.bf16.gmra.mxu0 %v1730
        %v3607 = vpop.f32.mrf.mxu0
        %v3608 = vadd.f32 %v3595, %v3607
        %v3609 = vpop.f32.mrf.mxu0
        %3610 = vdwg.mxu0
        %3611 = vmatpush.bf16.msra.mxu0 %v3012
        %3612 = vmatpush.bf16.msra.mxu0 %v3011
        %3613 = vmatpush.bf16.msra.mxu0 %v3010
        %3614 = vmatpush.bf16.msra.mxu0 %v3009
        %3615 = vmatpush.bf16.msra.mxu0 %v3008
        %3616 = vmatpush.bf16.msra.mxu0 %v3007
        %3617 = vmatpush.bf16.msra.mxu0 %v3006
        %3618 = vmatpush.bf16.msra.mxu0 %v3005
        %3619 = vmatmul.bf16.gmra.mxu0 %v1731
        %v3620 = vpop.f32.mrf.mxu0
        %v3621 = vadd.f32 %v3608, %v3620
        %v3622 = vpop.f32.mrf.mxu0
        %3623 = vdwg.mxu0
        %3624 = vmatpush.bf16.msra.mxu0 %v3020
        %3625 = vmatpush.bf16.msra.mxu0 %v3019
        %3626 = vmatpush.bf16.msra.mxu0 %v3018
        %3627 = vmatpush.bf16.msra.mxu0 %v3017
        %3628 = vmatpush.bf16.msra.mxu0 %v3016
        %3629 = vmatpush.bf16.msra.mxu0 %v3015
        %3630 = vmatpush.bf16.msra.mxu0 %v3014
        %3631 = vmatpush.bf16.msra.mxu0 %v3013
        %3632 = vmatmul.bf16.gmra.mxu0 %v1732
        %v3633 = vpop.f32.mrf.mxu0
        %v3634 = vadd.f32 %v3621, %v3633
        %v3635 = vpop.f32.mrf.mxu0
        %3636 = vdwg.mxu0
        %3637 = vmatpush.bf16.msra.mxu0 %v3028
        %3638 = vmatpush.bf16.msra.mxu0 %v3027
        %3639 = vmatpush.bf16.msra.mxu0 %v3026
        %3640 = vmatpush.bf16.msra.mxu0 %v3025
        %3641 = vmatpush.bf16.msra.mxu0 %v3024
        %3642 = vmatpush.bf16.msra.mxu0 %v3023
        %3643 = vmatpush.bf16.msra.mxu0 %v3022
        %3644 = vmatpush.bf16.msra.mxu0 %v3021
        %3645 = vmatmul.bf16.gmra.mxu0 %v1735
        %v3646 = vpop.f32.mrf.mxu0
        %v3647 = vadd.f32 %v3634, %v3646
        %v3648 = vpop.f32.mrf.mxu0
        %3649 = vdwg.mxu0
        %3650 = vmatpush.bf16.msra.mxu0 %v3036
        %3651 = vmatpush.bf16.msra.mxu0 %v3035
        %3652 = vmatpush.bf16.msra.mxu0 %v3034
        %3653 = vmatpush.bf16.msra.mxu0 %v3033
        %3654 = vmatpush.bf16.msra.mxu0 %v3032
        %3655 = vmatpush.bf16.msra.mxu0 %v3031
        %3656 = vmatpush.bf16.msra.mxu0 %v3030
        %3657 = vmatpush.bf16.msra.mxu0 %v3029
        %3658 = vmatmul.bf16.gmra.mxu0 %v1736
        %v3659 = vpop.f32.mrf.mxu0
        %v3660 = vadd.f32 %v3647, %v3659
        %v3661 = vpop.f32.mrf.mxu0
        %3662 = vdwg.mxu0
        %3663 = vmatpush.bf16.msra.mxu0 %v3044
        %3664 = vmatpush.bf16.msra.mxu0 %v3043
        %3665 = vmatpush.bf16.msra.mxu0 %v3042
        %3666 = vmatpush.bf16.msra.mxu0 %v3041
        %3667 = vmatpush.bf16.msra.mxu0 %v3040
        %3668 = vmatpush.bf16.msra.mxu0 %v3039
        %3669 = vmatpush.bf16.msra.mxu0 %v3038
        %3670 = vmatpush.bf16.msra.mxu0 %v3037
        %3671 = vmatmul.bf16.gmra.mxu0 %v1737
        %v3672 = vpop.f32.mrf.mxu0
        %v3673 = vadd.f32 %v3660, %v3672
        %v3674 = vpop.f32.mrf.mxu0
        %3675 = vdwg.mxu0
        %3676 = vmatpush.bf16.msra.mxu0 %v3052
        %3677 = vmatpush.bf16.msra.mxu0 %v3051
        %3678 = vmatpush.bf16.msra.mxu0 %v3050
        %3679 = vmatpush.bf16.msra.mxu0 %v3049
        %3680 = vmatpush.bf16.msra.mxu0 %v3048
        %3681 = vmatpush.bf16.msra.mxu0 %v3047
        %3682 = vmatpush.bf16.msra.mxu0 %v3046
        %3683 = vmatpush.bf16.msra.mxu0 %v3045
        %3684 = vmatmul.bf16.gmra.mxu0 %v1738
        %v3685 = vpop.f32.mrf.mxu0
        %v3686 = vadd.f32 %v3673, %v3685
        %v3687 = vpop.f32.mrf.mxu0
        %3688 = vdwg.mxu0
        %3689 = vmatpush.bf16.msra.mxu0 %v3060
        %3690 = vmatpush.bf16.msra.mxu0 %v3059
        %3691 = vmatpush.bf16.msra.mxu0 %v3058
        %3692 = vmatpush.bf16.msra.mxu0 %v3057
        %3693 = vmatpush.bf16.msra.mxu0 %v3056
        %3694 = vmatpush.bf16.msra.mxu0 %v3055
        %3695 = vmatpush.bf16.msra.mxu0 %v3054
        %3696 = vmatpush.bf16.msra.mxu0 %v3053
        %3697 = vmatmul.bf16.gmra.mxu0 %v1739
        %v3698 = vpop.f32.mrf.mxu0
        %v3699 = vadd.f32 %v3686, %v3698
        %v3700 = vpop.f32.mrf.mxu0
        %3701 = vdwg.mxu0
        %3702 = vmatpush.bf16.msra.mxu0 %v3068
        %3703 = vmatpush.bf16.msra.mxu0 %v3067
        %3704 = vmatpush.bf16.msra.mxu0 %v3066
        %3705 = vmatpush.bf16.msra.mxu0 %v3065
        %3706 = vmatpush.bf16.msra.mxu0 %v3064
        %3707 = vmatpush.bf16.msra.mxu0 %v3063
        %3708 = vmatpush.bf16.msra.mxu0 %v3062
        %3709 = vmatpush.bf16.msra.mxu0 %v3061
        %3710 = vmatmul.bf16.gmra.mxu0 %v1740
        %v3711 = vpop.f32.mrf.mxu0
        %v3712 = vadd.f32 %v3699, %v3711
        %v3713 = vpop.f32.mrf.mxu0
        %3714 = vdwg.mxu0
        %3715 = vmatpush.bf16.msra.mxu0 %v3076
        %3716 = vmatpush.bf16.msra.mxu0 %v3075
        %3717 = vmatpush.bf16.msra.mxu0 %v3074
        %3718 = vmatpush.bf16.msra.mxu0 %v3073
        %3719 = vmatpush.bf16.msra.mxu0 %v3072
        %3720 = vmatpush.bf16.msra.mxu0 %v3071
        %3721 = vmatpush.bf16.msra.mxu0 %v3070
        %3722 = vmatpush.bf16.msra.mxu0 %v3069
        %3723 = vmatmul.bf16.gmra.mxu0 %v1741
        %v3724 = vpop.f32.mrf.mxu0
        %v3725 = vadd.f32 %v3712, %v3724
        %v3726 = vpop.f32.mrf.mxu0
        %3727 = vdwg.mxu0
        %3728 = vmatpush.bf16.msra.mxu0 %v3084
        %3729 = vmatpush.bf16.msra.mxu0 %v3083
        %3730 = vmatpush.bf16.msra.mxu0 %v3082
        %3731 = vmatpush.bf16.msra.mxu0 %v3081
        %3732 = vmatpush.bf16.msra.mxu0 %v3080
        %3733 = vmatpush.bf16.msra.mxu0 %v3079
        %3734 = vmatpush.bf16.msra.mxu0 %v3078
        %3735 = vmatpush.bf16.msra.mxu0 %v3077
        %3736 = vmatmul.bf16.gmra.mxu0 %v1742
        %v3737 = vpop.f32.mrf.mxu0
        %v3738 = vadd.f32 %v3725, %v3737
        %v3739 = vpop.f32.mrf.mxu0
        %3740 = vdwg.mxu0
        %3741 = vmatpush.bf16.msra.mxu0 %v3092
        %3742 = vmatpush.bf16.msra.mxu0 %v3091
        %3743 = vmatpush.bf16.msra.mxu0 %v3090
        %3744 = vmatpush.bf16.msra.mxu0 %v3089
        %3745 = vmatpush.bf16.msra.mxu0 %v3088
        %3746 = vmatpush.bf16.msra.mxu0 %v3087
        %3747 = vmatpush.bf16.msra.mxu0 %v3086
        %3748 = vmatpush.bf16.msra.mxu0 %v3085
        %3749 = vmatmul.bf16.gmra.mxu0 %v1745
        %v3750 = vpop.f32.mrf.mxu0
        %v3751 = vadd.f32 %v3738, %v3750
        %v3752 = vpop.f32.mrf.mxu0
        %3753 = vdwg.mxu0
        %3754 = vmatpush.bf16.msra.mxu0 %v3100
        %3755 = vmatpush.bf16.msra.mxu0 %v3099
        %3756 = vmatpush.bf16.msra.mxu0 %v3098
        %3757 = vmatpush.bf16.msra.mxu0 %v3097
        %3758 = vmatpush.bf16.msra.mxu0 %v3096
        %3759 = vmatpush.bf16.msra.mxu0 %v3095
        %3760 = vmatpush.bf16.msra.mxu0 %v3094
        %3761 = vmatpush.bf16.msra.mxu0 %v3093
        %3762 = vmatmul.bf16.gmra.mxu0 %v1746
        %v3763 = vpop.f32.mrf.mxu0
        %v3764 = vadd.f32 %v3751, %v3763
        %v3765 = vpop.f32.mrf.mxu0
        %3766 = vdwg.mxu0
        %3767 = vmatpush.bf16.msra.mxu0 %v3108
        %3768 = vmatpush.bf16.msra.mxu0 %v3107
        %3769 = vmatpush.bf16.msra.mxu0 %v3106
        %3770 = vmatpush.bf16.msra.mxu0 %v3105
        %3771 = vmatpush.bf16.msra.mxu0 %v3104
        %3772 = vmatpush.bf16.msra.mxu0 %v3103
        %3773 = vmatpush.bf16.msra.mxu0 %v3102
        %3774 = vmatpush.bf16.msra.mxu0 %v3101
        %3775 = vmatmul.bf16.gmra.mxu0 %v1747
        %v3776 = vpop.f32.mrf.mxu0
        %v3777 = vadd.f32 %v3764, %v3776
        %v3778 = vpop.f32.mrf.mxu0
        %3779 = vdwg.mxu0
        %3780 = vmatpush.bf16.msra.mxu0 %v3116
        %3781 = vmatpush.bf16.msra.mxu0 %v3115
        %3782 = vmatpush.bf16.msra.mxu0 %v3114
        %3783 = vmatpush.bf16.msra.mxu0 %v3113
        %3784 = vmatpush.bf16.msra.mxu0 %v3112
        %3785 = vmatpush.bf16.msra.mxu0 %v3111
        %3786 = vmatpush.bf16.msra.mxu0 %v3110
        %3787 = vmatpush.bf16.msra.mxu0 %v3109
        %3788 = vmatmul.bf16.gmra.mxu0 %v1748
        %v3789 = vpop.f32.mrf.mxu0
        %v3790 = vadd.f32 %v3777, %v3789
        %v3791 = vpop.f32.mrf.mxu0
        %3792 = vdwg.mxu0
        %3793 = vmatpush.bf16.msra.mxu0 %v3124
        %3794 = vmatpush.bf16.msra.mxu0 %v3123
        %3795 = vmatpush.bf16.msra.mxu0 %v3122
        %3796 = vmatpush.bf16.msra.mxu0 %v3121
        %3797 = vmatpush.bf16.msra.mxu0 %v3120
        %3798 = vmatpush.bf16.msra.mxu0 %v3119
        %3799 = vmatpush.bf16.msra.mxu0 %v3118
        %3800 = vmatpush.bf16.msra.mxu0 %v3117
        %3801 = vmatmul.bf16.gmra.mxu0 %v1749
        %v3802 = vpop.f32.mrf.mxu0
        %v3803 = vadd.f32 %v3790, %v3802
        %v3804 = vpop.f32.mrf.mxu0
        %3805 = vdwg.mxu0
        %3806 = vmatpush.bf16.msra.mxu0 %v3132
        %3807 = vmatpush.bf16.msra.mxu0 %v3131
        %3808 = vmatpush.bf16.msra.mxu0 %v3130
        %3809 = vmatpush.bf16.msra.mxu0 %v3129
        %3810 = vmatpush.bf16.msra.mxu0 %v3128
        %3811 = vmatpush.bf16.msra.mxu0 %v3127
        %3812 = vmatpush.bf16.msra.mxu0 %v3126
        %3813 = vmatpush.bf16.msra.mxu0 %v3125
        %3814 = vmatmul.bf16.gmra.mxu0 %v1750
        %v3815 = vpop.f32.mrf.mxu0
        %v3816 = vadd.f32 %v3803, %v3815
        %v3817 = vpop.f32.mrf.mxu0
        %3818 = vdwg.mxu0
        %3819 = vmatpush.bf16.msra.mxu0 %v3140
        %3820 = vmatpush.bf16.msra.mxu0 %v3139
        %3821 = vmatpush.bf16.msra.mxu0 %v3138
        %3822 = vmatpush.bf16.msra.mxu0 %v3137
        %3823 = vmatpush.bf16.msra.mxu0 %v3136
        %3824 = vmatpush.bf16.msra.mxu0 %v3135
        %3825 = vmatpush.bf16.msra.mxu0 %v3134
        %3826 = vmatpush.bf16.msra.mxu0 %v3133
        %3827 = vmatmul.bf16.gmra.mxu0 %v1751
        %v3828 = vpop.f32.mrf.mxu0
        %v3829 = vadd.f32 %v3816, %v3828
        %v3830 = vpop.f32.mrf.mxu0
        %3831 = vdwg.mxu0
        %3832 = vmatpush.bf16.msra.mxu0 %v3148
        %3833 = vmatpush.bf16.msra.mxu0 %v3147
        %3834 = vmatpush.bf16.msra.mxu0 %v3146
        %3835 = vmatpush.bf16.msra.mxu0 %v3145
        %3836 = vmatpush.bf16.msra.mxu0 %v3144
        %3837 = vmatpush.bf16.msra.mxu0 %v3143
        %3838 = vmatpush.bf16.msra.mxu0 %v3142
        %3839 = vmatpush.bf16.msra.mxu0 %v3141
        %3840 = vmatmul.bf16.gmra.mxu0 %v1752
        %v3841 = vpop.f32.mrf.mxu0
        %v3842 = vadd.f32 %v3829, %v3841
        %v3843 = vpop.f32.mrf.mxu0
        %3844 = vdwg.mxu0
        %3845 = vmatpush.bf16.msra.mxu0 %v3156
        %3846 = vmatpush.bf16.msra.mxu0 %v3155
        %3847 = vmatpush.bf16.msra.mxu0 %v3154
        %3848 = vmatpush.bf16.msra.mxu0 %v3153
        %3849 = vmatpush.bf16.msra.mxu0 %v3152
        %3850 = vmatpush.bf16.msra.mxu0 %v3151
        %3851 = vmatpush.bf16.msra.mxu0 %v3150
        %3852 = vmatpush.bf16.msra.mxu0 %v3149
        %3853 = vmatmul.bf16.gmra.mxu0 %v1755
        %v3854 = vpop.f32.mrf.mxu0
        %v3855 = vadd.f32 %v3842, %v3854
        %v3856 = vpop.f32.mrf.mxu0
        %3857 = vdwg.mxu0
        %3858 = vmatpush.bf16.msra.mxu0 %v3164
        %3859 = vmatpush.bf16.msra.mxu0 %v3163
        %3860 = vmatpush.bf16.msra.mxu0 %v3162
        %3861 = vmatpush.bf16.msra.mxu0 %v3161
        %3862 = vmatpush.bf16.msra.mxu0 %v3160
        %3863 = vmatpush.bf16.msra.mxu0 %v3159
        %3864 = vmatpush.bf16.msra.mxu0 %v3158
        %3865 = vmatpush.bf16.msra.mxu0 %v3157
        %3866 = vmatmul.bf16.gmra.mxu0 %v1756
        %v3867 = vpop.f32.mrf.mxu0
        %v3868 = vadd.f32 %v3855, %v3867
        %v3869 = vpop.f32.mrf.mxu0
        %3870 = vdwg.mxu0
        %3871 = vmatpush.bf16.msra.mxu0 %v3172
        %3872 = vmatpush.bf16.msra.mxu0 %v3171
        %3873 = vmatpush.bf16.msra.mxu0 %v3170
        %3874 = vmatpush.bf16.msra.mxu0 %v3169
        %3875 = vmatpush.bf16.msra.mxu0 %v3168
        %3876 = vmatpush.bf16.msra.mxu0 %v3167
        %3877 = vmatpush.bf16.msra.mxu0 %v3166
        %3878 = vmatpush.bf16.msra.mxu0 %v3165
        %3879 = vmatmul.bf16.gmra.mxu0 %v1757
        %v3880 = vpop.f32.mrf.mxu0
        %v3881 = vadd.f32 %v3868, %v3880
        %v3882 = vpop.f32.mrf.mxu0
        %3883 = vdwg.mxu0
        %3884 = vmatpush.bf16.msra.mxu0 %v3180
        %3885 = vmatpush.bf16.msra.mxu0 %v3179
        %3886 = vmatpush.bf16.msra.mxu0 %v3178
        %3887 = vmatpush.bf16.msra.mxu0 %v3177
        %3888 = vmatpush.bf16.msra.mxu0 %v3176
        %3889 = vmatpush.bf16.msra.mxu0 %v3175
        %3890 = vmatpush.bf16.msra.mxu0 %v3174
        %3891 = vmatpush.bf16.msra.mxu0 %v3173
        %3892 = vmatmul.bf16.gmra.mxu0 %v1758
        %v3893 = vpop.f32.mrf.mxu0
        %v3894 = vadd.f32 %v3881, %v3893
        %v3895 = vpop.f32.mrf.mxu0
        %3896 = vdwg.mxu0
        %3897 = vmatpush.bf16.msra.mxu0 %v3188
        %3898 = vmatpush.bf16.msra.mxu0 %v3187
        %3899 = vmatpush.bf16.msra.mxu0 %v3186
        %3900 = vmatpush.bf16.msra.mxu0 %v3185
        %3901 = vmatpush.bf16.msra.mxu0 %v3184
        %3902 = vmatpush.bf16.msra.mxu0 %v3183
        %3903 = vmatpush.bf16.msra.mxu0 %v3182
        %3904 = vmatpush.bf16.msra.mxu0 %v3181
        %3905 = vmatmul.bf16.gmra.mxu0 %v1759
        %v3906 = vpop.f32.mrf.mxu0
        %v3907 = vadd.f32 %v3894, %v3906
        %v3908 = vpop.f32.mrf.mxu0
        %3909 = vdwg.mxu0
        %3910 = vmatpush.bf16.msra.mxu0 %v3196
        %3911 = vmatpush.bf16.msra.mxu0 %v3195
        %3912 = vmatpush.bf16.msra.mxu0 %v3194
        %3913 = vmatpush.bf16.msra.mxu0 %v3193
        %3914 = vmatpush.bf16.msra.mxu0 %v3192
        %3915 = vmatpush.bf16.msra.mxu0 %v3191
        %3916 = vmatpush.bf16.msra.mxu0 %v3190
        %3917 = vmatpush.bf16.msra.mxu0 %v3189
        %3918 = vmatmul.bf16.gmra.mxu0 %v1760
        %v3919 = vpop.f32.mrf.mxu0
        %v3920 = vadd.f32 %v3907, %v3919
        %v3921 = vpop.f32.mrf.mxu0
        %3922 = vdwg.mxu0
        %3923 = vmatpush.bf16.msra.mxu0 %v3204
        %3924 = vmatpush.bf16.msra.mxu0 %v3203
        %3925 = vmatpush.bf16.msra.mxu0 %v3202
        %3926 = vmatpush.bf16.msra.mxu0 %v3201
        %3927 = vmatpush.bf16.msra.mxu0 %v3200
        %3928 = vmatpush.bf16.msra.mxu0 %v3199
        %3929 = vmatpush.bf16.msra.mxu0 %v3198
        %3930 = vmatpush.bf16.msra.mxu0 %v3197
        %3931 = vmatmul.bf16.gmra.mxu0 %v1761
        %v3932 = vpop.f32.mrf.mxu0
        %v3933 = vadd.f32 %v3920, %v3932
        %v3934 = vpop.f32.mrf.mxu0
        %3935 = vdwg.mxu0
        %3936 = vmatpush.bf16.msra.mxu0 %v3212
        %3937 = vmatpush.bf16.msra.mxu0 %v3211
        %3938 = vmatpush.bf16.msra.mxu0 %v3210
        %3939 = vmatpush.bf16.msra.mxu0 %v3209
        %3940 = vmatpush.bf16.msra.mxu0 %v3208
        %3941 = vmatpush.bf16.msra.mxu0 %v3207
        %3942 = vmatpush.bf16.msra.mxu0 %v3206
        %3943 = vmatpush.bf16.msra.mxu0 %v3205
        %3944 = vmatmul.bf16.gmra.mxu0 %v1762
        %v3945 = vpop.f32.mrf.mxu0
        %v3946 = vadd.f32 %v3933, %v3945
        %v3947 = vpop.f32.mrf.mxu0
        %3948 = vdwg.mxu0
        %3949 = vmatpush.bf16.msra.mxu0 %v3220
        %3950 = vmatpush.bf16.msra.mxu0 %v3219
        %3951 = vmatpush.bf16.msra.mxu0 %v3218
        %3952 = vmatpush.bf16.msra.mxu0 %v3217
        %3953 = vmatpush.bf16.msra.mxu0 %v3216
        %3954 = vmatpush.bf16.msra.mxu0 %v3215
        %3955 = vmatpush.bf16.msra.mxu0 %v3214
        %3956 = vmatpush.bf16.msra.mxu0 %v3213
        %3957 = vmatmul.bf16.gmra.mxu0 %v1765
        %v3958 = vpop.f32.mrf.mxu0
        %v3959 = vadd.f32 %v3946, %v3958
        %v3960 = vpop.f32.mrf.mxu0
        %3961 = vdwg.mxu0
        %3962 = vmatpush.bf16.msra.mxu0 %v3228
        %3963 = vmatpush.bf16.msra.mxu0 %v3227
        %3964 = vmatpush.bf16.msra.mxu0 %v3226
        %3965 = vmatpush.bf16.msra.mxu0 %v3225
        %3966 = vmatpush.bf16.msra.mxu0 %v3224
        %3967 = vmatpush.bf16.msra.mxu0 %v3223
        %3968 = vmatpush.bf16.msra.mxu0 %v3222
        %3969 = vmatpush.bf16.msra.mxu0 %v3221
        %3970 = vmatmul.bf16.gmra.mxu0 %v1766
        %v3971 = vpop.f32.mrf.mxu0
        %v3972 = vadd.f32 %v3959, %v3971
        %v3973 = vpop.f32.mrf.mxu0
        %3974 = vdwg.mxu0
        %3975 = vmatpush.bf16.msra.mxu0 %v3236
        %3976 = vmatpush.bf16.msra.mxu0 %v3235
        %3977 = vmatpush.bf16.msra.mxu0 %v3234
        %3978 = vmatpush.bf16.msra.mxu0 %v3233
        %3979 = vmatpush.bf16.msra.mxu0 %v3232
        %3980 = vmatpush.bf16.msra.mxu0 %v3231
        %3981 = vmatpush.bf16.msra.mxu0 %v3230
        %3982 = vmatpush.bf16.msra.mxu0 %v3229
        %3983 = vmatmul.bf16.gmra.mxu0 %v1767
        %v3984 = vpop.f32.mrf.mxu0
        %v3985 = vadd.f32 %v3972, %v3984
        %v3986 = vpop.f32.mrf.mxu0
        %3987 = vdwg.mxu0
        %3988 = vmatpush.bf16.msra.mxu0 %v3244
        %3989 = vmatpush.bf16.msra.mxu0 %v3243
        %3990 = vmatpush.bf16.msra.mxu0 %v3242
        %3991 = vmatpush.bf16.msra.mxu0 %v3241
        %3992 = vmatpush.bf16.msra.mxu0 %v3240
        %3993 = vmatpush.bf16.msra.mxu0 %v3239
        %3994 = vmatpush.bf16.msra.mxu0 %v3238
        %3995 = vmatpush.bf16.msra.mxu0 %v3237
        %3996 = vmatmul.bf16.gmra.mxu0 %v1768
        %v3997 = vpop.f32.mrf.mxu0
        %v3998 = vadd.f32 %v3985, %v3997
        %v3999 = vpop.f32.mrf.mxu0
        %4000 = vdwg.mxu0
        %v4001 = vld [vmem:[#allocation8] sm:$0x1]
        %v4003 = vperm.slane %v4001, 0
        %v4005 = vmul.f32 %v3998, %v4003
        %v4006 = vld [vmem:[#allocation10] sm:$0x1]
        %v4008 = vperm.slane %v4006, 0
        %v4010 = vadd.f32 %v4005, %v4008
        %v4011 = vmax.f32 %v4010, 0.0
        %v4012 = vpack.c.bf16 %v4011, %v4011
        %v4013 = vld [vmem:[#allocation11] sm:$0xf]
        %v4014 = vld [vmem:[#allocation11 + $0x4] sm:$0xf]
        %v4015 = vld [vmem:[#allocation11 + $0x8] sm:$0xf]
        %v4016 = vld [vmem:[#allocation11 + $0xc] sm:$0xf]
        %v4017 = vld [vmem:[#allocation11 + $0x10] sm:$0xf]
        %v4018 = vld [vmem:[#allocation11 + $0x14] sm:$0xf]
        %v4019 = vld [vmem:[#allocation11 + $0x18] sm:$0xf]
        %v4020 = vld [vmem:[#allocation11 + $0x1c] sm:$0xf]
        %v4021 = vld [vmem:[#allocation11 + $0x20] sm:$0xf]
        %v4022 = vld [vmem:[#allocation11 + $0x24] sm:$0xf]
        %v4023 = vld [vmem:[#allocation11 + $0x28] sm:$0xf]
        %v4024 = vld [vmem:[#allocation11 + $0x2c] sm:$0xf]
        %v4025 = vld [vmem:[#allocation11 + $0x30] sm:$0xf]
        %v4026 = vld [vmem:[#allocation11 + $0x34] sm:$0xf]
        %v4027 = vld [vmem:[#allocation11 + $0x38] sm:$0xf]
        %v4028 = vld [vmem:[#allocation11 + $0x3c] sm:$0xf]
        %v4029 = vld [vmem:[#allocation2] sm:$0x1]
        %v4031 = vperm.slane %v4029, 0
        %v4049 = vunpack.c.l.b16 %v4013
        %v4050 = vunpack.c.l.b16 %v4014
        %v4051 = vunpack.c.l.b16 %v4015
        %v4052 = vunpack.c.l.b16 %v4016
        %v4053 = vunpack.c.l.b16 %v4017
        %v4054 = vunpack.c.l.b16 %v4018
        %v4055 = vunpack.c.l.b16 %v4019
        %v4056 = vunpack.c.l.b16 %v4020
        %v4057 = vunpack.c.l.b16 %v4021
        %v4058 = vunpack.c.l.b16 %v4022
        %v4059 = vunpack.c.l.b16 %v4023
        %v4060 = vunpack.c.l.b16 %v4024
        %v4061 = vunpack.c.l.b16 %v4025
        %v4062 = vunpack.c.l.b16 %v4026
        %v4063 = vunpack.c.l.b16 %v4027
        %v4064 = vunpack.c.l.b16 %v4028
        %v4065 = vpack.c.b16 %v4050, %v4049
        %v4066 = vpack.c.b16 %v4052, %v4051
        %v4067 = vpack.c.b16 %v4054, %v4053
        %v4068 = vpack.c.b16 %v4056, %v4055
        %v4069 = vpack.c.b16 %v4058, %v4057
        %v4070 = vpack.c.b16 %v4060, %v4059
        %v4071 = vpack.c.b16 %v4062, %v4061
        %v4072 = vpack.c.b16 %v4064, %v4063
        %4081 = vmatpush.bf16.msra.mxu0 %v4072
        %4082 = vmatpush.bf16.msra.mxu0 %v4071
        %4083 = vmatpush.bf16.msra.mxu0 %v4070
        %4084 = vmatpush.bf16.msra.mxu0 %v4069
        %4085 = vmatpush.bf16.msra.mxu0 %v4068
        %4086 = vmatpush.bf16.msra.mxu0 %v4067
        %4087 = vmatpush.bf16.msra.mxu0 %v4066
        %4088 = vmatpush.bf16.msra.mxu0 %v4065
        %4089 = vmatmul.bf16.gmra.mxu0 %v4012
        %v4090 = vpop.f32.mrf.mxu0
        %v4091 = vadd.f32 %v4031, %v4090
        %v4092 = vpop.f32.mrf.mxu0
        %4093 = vdwg.mxu0
        %v4094 = vld [vmem:[%s710] sm:$0xff]
        %v4095 = vld [vmem:[%s710 + $0x8] sm:$0xff]
        %v4096 = vld [vmem:[%s710 + $0x10] sm:$0xff]
        %v4097 = vld [vmem:[%s710 + $0x18] sm:$0xff]
        %v4098 = vld [vmem:[#allocation13] sm:$0xf]
        %v4099 = vld [vmem:[#allocation13 + $0x4] sm:$0xf]
        %v4100 = vld [vmem:[#allocation13 + $0x8] sm:$0xf]
        %v4101 = vld [vmem:[#allocation13 + $0xc] sm:$0xf]
        %v4102 = vld [vmem:[#allocation13 + $0x10] sm:$0xf]
        %v4103 = vld [vmem:[#allocation13 + $0x14] sm:$0xf]
        %v4104 = vld [vmem:[#allocation13 + $0x18] sm:$0xf]
        %v4105 = vld [vmem:[#allocation13 + $0x1c] sm:$0xf]
        %v4106 = vld [vmem:[#allocation13 + $0x20] sm:$0xf]
        %v4107 = vld [vmem:[#allocation13 + $0x24] sm:$0xf]
        %v4108 = vld [vmem:[#allocation13 + $0x28] sm:$0xf]
        %v4109 = vld [vmem:[#allocation13 + $0x2c] sm:$0xf]
        %v4110 = vld [vmem:[#allocation13 + $0x30] sm:$0xf]
        %v4111 = vld [vmem:[#allocation13 + $0x34] sm:$0xf]
        %v4112 = vld [vmem:[#allocation13 + $0x38] sm:$0xf]
        %v4113 = vld [vmem:[#allocation13 + $0x3c] sm:$0xf]
        %v4114 = vld [vmem:[#allocation13 + $0x40] sm:$0xf]
        %v4115 = vld [vmem:[#allocation13 + $0x44] sm:$0xf]
        %v4116 = vld [vmem:[#allocation13 + $0x48] sm:$0xf]
        %v4117 = vld [vmem:[#allocation13 + $0x4c] sm:$0xf]
        %v4118 = vld [vmem:[#allocation13 + $0x50] sm:$0xf]
        %v4119 = vld [vmem:[#allocation13 + $0x54] sm:$0xf]
        %v4120 = vld [vmem:[#allocation13 + $0x58] sm:$0xf]
        %v4121 = vld [vmem:[#allocation13 + $0x5c] sm:$0xf]
        %v4122 = vld [vmem:[#allocation13 + $0x60] sm:$0xf]
        %v4123 = vld [vmem:[#allocation13 + $0x64] sm:$0xf]
        %v4124 = vld [vmem:[#allocation13 + $0x68] sm:$0xf]
        %v4125 = vld [vmem:[#allocation13 + $0x6c] sm:$0xf]
        %v4126 = vld [vmem:[#allocation13 + $0x70] sm:$0xf]
        %v4127 = vld [vmem:[#allocation13 + $0x74] sm:$0xf]
        %v4128 = vld [vmem:[#allocation13 + $0x78] sm:$0xf]
        %v4129 = vld [vmem:[#allocation13 + $0x7c] sm:$0xf]
        %v4130 = vld [vmem:[#allocation13 + $0x80] sm:$0xf]
        %v4131 = vld [vmem:[#allocation13 + $0x84] sm:$0xf]
        %v4132 = vld [vmem:[#allocation13 + $0x88] sm:$0xf]
        %v4133 = vld [vmem:[#allocation13 + $0x8c] sm:$0xf]
        %v4134 = vld [vmem:[#allocation13 + $0x90] sm:$0xf]
        %v4135 = vld [vmem:[#allocation13 + $0x94] sm:$0xf]
        %v4136 = vld [vmem:[#allocation13 + $0x98] sm:$0xf]
        %v4137 = vld [vmem:[#allocation13 + $0x9c] sm:$0xf]
        %v4138 = vld [vmem:[#allocation13 + $0xa0] sm:$0xf]
        %v4139 = vld [vmem:[#allocation13 + $0xa4] sm:$0xf]
        %v4140 = vld [vmem:[#allocation13 + $0xa8] sm:$0xf]
        %v4141 = vld [vmem:[#allocation13 + $0xac] sm:$0xf]
        %v4142 = vld [vmem:[#allocation13 + $0xb0] sm:$0xf]
        %v4143 = vld [vmem:[#allocation13 + $0xb4] sm:$0xf]
        %v4144 = vld [vmem:[#allocation13 + $0xb8] sm:$0xf]
        %v4145 = vld [vmem:[#allocation13 + $0xbc] sm:$0xf]
        %v4146 = vld [vmem:[#allocation13 + $0xc0] sm:$0xf]
        %v4147 = vld [vmem:[#allocation13 + $0xc4] sm:$0xf]
        %v4148 = vld [vmem:[#allocation13 + $0xc8] sm:$0xf]
        %v4149 = vld [vmem:[#allocation13 + $0xcc] sm:$0xf]
        %v4150 = vld [vmem:[#allocation13 + $0xd0] sm:$0xf]
        %v4151 = vld [vmem:[#allocation13 + $0xd4] sm:$0xf]
        %v4152 = vld [vmem:[#allocation13 + $0xd8] sm:$0xf]
        %v4153 = vld [vmem:[#allocation13 + $0xdc] sm:$0xf]
        %v4154 = vld [vmem:[#allocation13 + $0xe0] sm:$0xf]
        %v4155 = vld [vmem:[#allocation13 + $0xe4] sm:$0xf]
        %v4156 = vld [vmem:[#allocation13 + $0xe8] sm:$0xf]
        %v4157 = vld [vmem:[#allocation13 + $0xec] sm:$0xf]
        %v4158 = vld [vmem:[#allocation13 + $0xf0] sm:$0xf]
        %v4159 = vld [vmem:[#allocation13 + $0xf4] sm:$0xf]
        %v4160 = vld [vmem:[#allocation13 + $0xf8] sm:$0xf]
        %v4161 = vld [vmem:[#allocation13 + $0xfc] sm:$0xf]
        %v4162 = vld [vmem:[#allocation3] sm:$0x1]
        %v4164 = vperm.slane %v4162, 0
        %4167 = vst [vmem:[#allocation1] ss:$4 sm:$0xff] %v4094
        %s4169 = scalar_lea.vmem [#allocation1], 1
        %4170 = vst [vmem:[%s4169] ss:$4 sm:$0xff] %v4095
        %s4172 = scalar_lea.vmem [#allocation1], 2
        %4173 = vst [vmem:[%s4172] ss:$4 sm:$0xff] %v4096
        %s4175 = scalar_lea.vmem [#allocation1], 3
        %4176 = vst [vmem:[%s4175] ss:$4 sm:$0xff] %v4097
        %v4177 = vld.sshfl [vmem:[#allocation1] sm:$0xff pattern:$0x73625140]
        %v4178 = vld.sshfl [vmem:[#allocation1 + $0x8] sm:$0xff pattern:$0x73625140]
        %v4179 = vld.sshfl [vmem:[#allocation1 + $0x10] sm:$0xff pattern:$0x73625140]
        %v4180 = vld.sshfl [vmem:[#allocation1 + $0x18] sm:$0xff pattern:$0x73625140]
        %v4249 = vunpack.c.l.b16 %v4098
        %v4250 = vunpack.c.l.b16 %v4099
        %v4251 = vunpack.c.l.b16 %v4100
        %v4252 = vunpack.c.l.b16 %v4101
        %v4253 = vunpack.c.l.b16 %v4102
        %v4254 = vunpack.c.l.b16 %v4103
        %v4255 = vunpack.c.l.b16 %v4104
        %v4256 = vunpack.c.l.b16 %v4105
        %v4257 = vunpack.c.l.b16 %v4106
        %v4258 = vunpack.c.l.b16 %v4107
        %v4259 = vunpack.c.l.b16 %v4108
        %v4260 = vunpack.c.l.b16 %v4109
        %v4261 = vunpack.c.l.b16 %v4110
        %v4262 = vunpack.c.l.b16 %v4111
        %v4263 = vunpack.c.l.b16 %v4112
        %v4264 = vunpack.c.l.b16 %v4113
        %v4265 = vunpack.c.l.b16 %v4114
        %v4266 = vunpack.c.l.b16 %v4115
        %v4267 = vunpack.c.l.b16 %v4116
        %v4268 = vunpack.c.l.b16 %v4117
        %v4269 = vunpack.c.l.b16 %v4118
        %v4270 = vunpack.c.l.b16 %v4119
        %v4271 = vunpack.c.l.b16 %v4120
        %v4272 = vunpack.c.l.b16 %v4121
        %v4273 = vunpack.c.l.b16 %v4122
        %v4274 = vunpack.c.l.b16 %v4123
        %v4275 = vunpack.c.l.b16 %v4124
        %v4276 = vunpack.c.l.b16 %v4125
        %v4277 = vunpack.c.l.b16 %v4126
        %v4278 = vunpack.c.l.b16 %v4127
        %v4279 = vunpack.c.l.b16 %v4128
        %v4280 = vunpack.c.l.b16 %v4129
        %v4281 = vunpack.c.l.b16 %v4130
        %v4282 = vunpack.c.l.b16 %v4131
        %v4283 = vunpack.c.l.b16 %v4132
        %v4284 = vunpack.c.l.b16 %v4133
        %v4285 = vunpack.c.l.b16 %v4134
        %v4286 = vunpack.c.l.b16 %v4135
        %v4287 = vunpack.c.l.b16 %v4136
        %v4288 = vunpack.c.l.b16 %v4137
        %v4289 = vunpack.c.l.b16 %v4138
        %v4290 = vunpack.c.l.b16 %v4139
        %v4291 = vunpack.c.l.b16 %v4140
        %v4292 = vunpack.c.l.b16 %v4141
        %v4293 = vunpack.c.l.b16 %v4142
        %v4294 = vunpack.c.l.b16 %v4143
        %v4295 = vunpack.c.l.b16 %v4144
        %v4296 = vunpack.c.l.b16 %v4145
        %v4297 = vunpack.c.l.b16 %v4146
        %v4298 = vunpack.c.l.b16 %v4147
        %v4299 = vunpack.c.l.b16 %v4148
        %v4300 = vunpack.c.l.b16 %v4149
        %v4301 = vunpack.c.l.b16 %v4150
        %v4302 = vunpack.c.l.b16 %v4151
        %v4303 = vunpack.c.l.b16 %v4152
        %v4304 = vunpack.c.l.b16 %v4153
        %v4305 = vunpack.c.l.b16 %v4154
        %v4306 = vunpack.c.l.b16 %v4155
        %v4307 = vunpack.c.l.b16 %v4156
        %v4308 = vunpack.c.l.b16 %v4157
        %v4309 = vunpack.c.l.b16 %v4158
        %v4310 = vunpack.c.l.b16 %v4159
        %v4311 = vunpack.c.l.b16 %v4160
        %v4312 = vunpack.c.l.b16 %v4161
        %v4313 = vpack.c.b16 %v4250, %v4249
        %v4314 = vpack.c.b16 %v4252, %v4251
        %v4315 = vpack.c.b16 %v4254, %v4253
        %v4316 = vpack.c.b16 %v4256, %v4255
        %v4317 = vpack.c.b16 %v4258, %v4257
        %v4318 = vpack.c.b16 %v4260, %v4259
        %v4319 = vpack.c.b16 %v4262, %v4261
        %v4320 = vpack.c.b16 %v4264, %v4263
        %v4321 = vpack.c.b16 %v4266, %v4265
        %v4322 = vpack.c.b16 %v4268, %v4267
        %v4323 = vpack.c.b16 %v4270, %v4269
        %v4324 = vpack.c.b16 %v4272, %v4271
        %v4325 = vpack.c.b16 %v4274, %v4273
        %v4326 = vpack.c.b16 %v4276, %v4275
        %v4327 = vpack.c.b16 %v4278, %v4277
        %v4328 = vpack.c.b16 %v4280, %v4279
        %v4329 = vpack.c.b16 %v4282, %v4281
        %v4330 = vpack.c.b16 %v4284, %v4283
        %v4331 = vpack.c.b16 %v4286, %v4285
        %v4332 = vpack.c.b16 %v4288, %v4287
        %v4333 = vpack.c.b16 %v4290, %v4289
        %v4334 = vpack.c.b16 %v4292, %v4291
        %v4335 = vpack.c.b16 %v4294, %v4293
        %v4336 = vpack.c.b16 %v4296, %v4295
        %v4337 = vpack.c.b16 %v4298, %v4297
        %v4338 = vpack.c.b16 %v4300, %v4299
        %v4339 = vpack.c.b16 %v4302, %v4301
        %v4340 = vpack.c.b16 %v4304, %v4303
        %v4341 = vpack.c.b16 %v4306, %v4305
        %v4342 = vpack.c.b16 %v4308, %v4307
        %v4343 = vpack.c.b16 %v4310, %v4309
        %v4344 = vpack.c.b16 %v4312, %v4311
        %4377 = vmatpush.bf16.msra.mxu0 %v4320
        %4378 = vmatpush.bf16.msra.mxu0 %v4319
        %4379 = vmatpush.bf16.msra.mxu0 %v4318
        %4380 = vmatpush.bf16.msra.mxu0 %v4317
        %4381 = vmatpush.bf16.msra.mxu0 %v4316
        %4382 = vmatpush.bf16.msra.mxu0 %v4315
        %4383 = vmatpush.bf16.msra.mxu0 %v4314
        %4384 = vmatpush.bf16.msra.mxu0 %v4313
        %4385 = vmatmul.bf16.gmra.mxu0 %v4177
        %v4386 = vpop.f32.mrf.mxu0
        %v4387 = vadd.f32 %v4164, %v4386
        %v4388 = vpop.f32.mrf.mxu0
        %v4389 = vadd.f32 %v4164, %v4388
        %4390 = vdwg.mxu0
        %4391 = vmatpush.bf16.msra.mxu0 %v4328
        %4392 = vmatpush.bf16.msra.mxu0 %v4327
        %4393 = vmatpush.bf16.msra.mxu0 %v4326
        %4394 = vmatpush.bf16.msra.mxu0 %v4325
        %4395 = vmatpush.bf16.msra.mxu0 %v4324
        %4396 = vmatpush.bf16.msra.mxu0 %v4323
        %4397 = vmatpush.bf16.msra.mxu0 %v4322
        %4398 = vmatpush.bf16.msra.mxu0 %v4321
        %4399 = vmatmul.bf16.gmra.mxu0 %v4178
        %v4400 = vpop.f32.mrf.mxu0
        %v4401 = vadd.f32 %v4387, %v4400
        %v4402 = vpop.f32.mrf.mxu0
        %v4403 = vadd.f32 %v4389, %v4402
        %4404 = vdwg.mxu0
        %4405 = vmatpush.bf16.msra.mxu0 %v4336
        %4406 = vmatpush.bf16.msra.mxu0 %v4335
        %4407 = vmatpush.bf16.msra.mxu0 %v4334
        %4408 = vmatpush.bf16.msra.mxu0 %v4333
        %4409 = vmatpush.bf16.msra.mxu0 %v4332
        %4410 = vmatpush.bf16.msra.mxu0 %v4331
        %4411 = vmatpush.bf16.msra.mxu0 %v4330
        %4412 = vmatpush.bf16.msra.mxu0 %v4329
        %4413 = vmatmul.bf16.gmra.mxu0 %v4179
        %v4414 = vpop.f32.mrf.mxu0
        %v4415 = vadd.f32 %v4401, %v4414
        %v4416 = vpop.f32.mrf.mxu0
        %v4417 = vadd.f32 %v4403, %v4416
        %4418 = vdwg.mxu0
        %4419 = vmatpush.bf16.msra.mxu0 %v4344
        %4420 = vmatpush.bf16.msra.mxu0 %v4343
        %4421 = vmatpush.bf16.msra.mxu0 %v4342
        %4422 = vmatpush.bf16.msra.mxu0 %v4341
        %4423 = vmatpush.bf16.msra.mxu0 %v4340
        %4424 = vmatpush.bf16.msra.mxu0 %v4339
        %4425 = vmatpush.bf16.msra.mxu0 %v4338
        %4426 = vmatpush.bf16.msra.mxu0 %v4337
        %4427 = vmatmul.bf16.gmra.mxu0 %v4180
        %v4428 = vpop.f32.mrf.mxu0
        %v4429 = vadd.f32 %v4415, %v4428
        %v4430 = vpop.f32.mrf.mxu0
        %v4431 = vadd.f32 %v4417, %v4430
        %4432 = vdwg.mxu0
        %v4433 = vld [vmem:[%s715] sm:$0xff]
        %v4434 = vld [vmem:[%s715 + $0x8] sm:$0xff]
        %v4435 = vld [vmem:[%s715 + $0x10] sm:$0xff]
        %v4436 = vld [vmem:[%s715 + $0x18] sm:$0xff]
        %v4437 = vld [vmem:[%s715 + $0x20] sm:$0xff]
        %v4438 = vld [vmem:[%s715 + $0x28] sm:$0xff]
        %v4439 = vld [vmem:[%s715 + $0x30] sm:$0xff]
        %v4440 = vld [vmem:[%s715 + $0x38] sm:$0xff]
        %v4441 = vld [vmem:[#allocation14] sm:$0xf]
        %v4442 = vld [vmem:[#allocation14 + $0x4] sm:$0xf]
        %v4443 = vld [vmem:[#allocation14 + $0x8] sm:$0xf]
        %v4444 = vld [vmem:[#allocation14 + $0xc] sm:$0xf]
        %v4445 = vld [vmem:[#allocation14 + $0x10] sm:$0xf]
        %v4446 = vld [vmem:[#allocation14 + $0x14] sm:$0xf]
        %v4447 = vld [vmem:[#allocation14 + $0x18] sm:$0xf]
        %v4448 = vld [vmem:[#allocation14 + $0x1c] sm:$0xf]
        %v4449 = vld [vmem:[#allocation14 + $0x20] sm:$0xf]
        %v4450 = vld [vmem:[#allocation14 + $0x24] sm:$0xf]
        %v4451 = vld [vmem:[#allocation14 + $0x28] sm:$0xf]
        %v4452 = vld [vmem:[#allocation14 + $0x2c] sm:$0xf]
        %v4453 = vld [vmem:[#allocation14 + $0x30] sm:$0xf]
        %v4454 = vld [vmem:[#allocation14 + $0x34] sm:$0xf]
        %v4455 = vld [vmem:[#allocation14 + $0x38] sm:$0xf]
        %v4456 = vld [vmem:[#allocation14 + $0x3c] sm:$0xf]
        %v4457 = vld [vmem:[#allocation14 + $0x40] sm:$0xf]
        %v4458 = vld [vmem:[#allocation14 + $0x44] sm:$0xf]
        %v4459 = vld [vmem:[#allocation14 + $0x48] sm:$0xf]
        %v4460 = vld [vmem:[#allocation14 + $0x4c] sm:$0xf]
        %v4461 = vld [vmem:[#allocation14 + $0x50] sm:$0xf]
        %v4462 = vld [vmem:[#allocation14 + $0x54] sm:$0xf]
        %v4463 = vld [vmem:[#allocation14 + $0x58] sm:$0xf]
        %v4464 = vld [vmem:[#allocation14 + $0x5c] sm:$0xf]
        %v4465 = vld [vmem:[#allocation14 + $0x60] sm:$0xf]
        %v4466 = vld [vmem:[#allocation14 + $0x64] sm:$0xf]
        %v4467 = vld [vmem:[#allocation14 + $0x68] sm:$0xf]
        %v4468 = vld [vmem:[#allocation14 + $0x6c] sm:$0xf]
        %v4469 = vld [vmem:[#allocation14 + $0x70] sm:$0xf]
        %v4470 = vld [vmem:[#allocation14 + $0x74] sm:$0xf]
        %v4471 = vld [vmem:[#allocation14 + $0x78] sm:$0xf]
        %v4472 = vld [vmem:[#allocation14 + $0x7c] sm:$0xf]
        %v4473 = vld [vmem:[#allocation4] sm:$0x1]
        %v4475 = vperm.slane %v4473, 0
        %v4485 = vunpack.c.l.b16 %v4433
        %v4486 = vunpack.c.h.b16 %v4433
        %v4487 = vunpack.c.l.b16 %v4434
        %v4488 = vunpack.c.h.b16 %v4434
        %v4489 = vunpack.c.l.b16 %v4435
        %v4490 = vunpack.c.h.b16 %v4435
        %v4491 = vunpack.c.l.b16 %v4436
        %v4492 = vunpack.c.h.b16 %v4436
        %v4493 = vunpack.c.l.b16 %v4437
        %v4494 = vunpack.c.h.b16 %v4437
        %v4495 = vunpack.c.l.b16 %v4438
        %v4496 = vunpack.c.h.b16 %v4438
        %v4497 = vunpack.c.l.b16 %v4439
        %v4498 = vunpack.c.h.b16 %v4439
        %v4499 = vunpack.c.l.b16 %v4440
        %v4500 = vunpack.c.h.b16 %v4440
        %v4501 = vpack.c.b16 %v4487, %v4485
        %v4502 = vpack.c.b16 %v4488, %v4486
        %v4503 = vpack.c.b16 %v4491, %v4489
        %v4504 = vpack.c.b16 %v4492, %v4490
        %v4505 = vpack.c.b16 %v4495, %v4493
        %v4506 = vpack.c.b16 %v4496, %v4494
        %v4507 = vpack.c.b16 %v4499, %v4497
        %v4508 = vpack.c.b16 %v4500, %v4498
        %v4549 = vunpack.c.l.b16 %v4441
        %v4550 = vunpack.c.l.b16 %v4442
        %v4551 = vunpack.c.l.b16 %v4443
        %v4552 = vunpack.c.l.b16 %v4444
        %v4553 = vunpack.c.l.b16 %v4445
        %v4554 = vunpack.c.l.b16 %v4446
        %v4555 = vunpack.c.l.b16 %v4447
        %v4556 = vunpack.c.l.b16 %v4448
        %v4557 = vunpack.c.l.b16 %v4449
        %v4558 = vunpack.c.l.b16 %v4450
        %v4559 = vunpack.c.l.b16 %v4451
        %v4560 = vunpack.c.l.b16 %v4452
        %v4561 = vunpack.c.l.b16 %v4453
        %v4562 = vunpack.c.l.b16 %v4454
        %v4563 = vunpack.c.l.b16 %v4455
        %v4564 = vunpack.c.l.b16 %v4456
        %v4565 = vunpack.c.l.b16 %v4457
        %v4566 = vunpack.c.l.b16 %v4458
        %v4567 = vunpack.c.l.b16 %v4459
        %v4568 = vunpack.c.l.b16 %v4460
        %v4569 = vunpack.c.l.b16 %v4461
        %v4570 = vunpack.c.l.b16 %v4462
        %v4571 = vunpack.c.l.b16 %v4463
        %v4572 = vunpack.c.l.b16 %v4464
        %v4573 = vunpack.c.l.b16 %v4465
        %v4574 = vunpack.c.l.b16 %v4466
        %v4575 = vunpack.c.l.b16 %v4467
        %v4576 = vunpack.c.l.b16 %v4468
        %v4577 = vunpack.c.l.b16 %v4469
        %v4578 = vunpack.c.l.b16 %v4470
        %v4579 = vunpack.c.l.b16 %v4471
        %v4580 = vunpack.c.l.b16 %v4472
        %v4581 = vpack.c.b16 %v4550, %v4549
        %v4582 = vpack.c.b16 %v4552, %v4551
        %v4583 = vpack.c.b16 %v4554, %v4553
        %v4584 = vpack.c.b16 %v4556, %v4555
        %v4585 = vpack.c.b16 %v4558, %v4557
        %v4586 = vpack.c.b16 %v4560, %v4559
        %v4587 = vpack.c.b16 %v4562, %v4561
        %v4588 = vpack.c.b16 %v4564, %v4563
        %v4589 = vpack.c.b16 %v4566, %v4565
        %v4590 = vpack.c.b16 %v4568, %v4567
        %v4591 = vpack.c.b16 %v4570, %v4569
        %v4592 = vpack.c.b16 %v4572, %v4571
        %v4593 = vpack.c.b16 %v4574, %v4573
        %v4594 = vpack.c.b16 %v4576, %v4575
        %v4595 = vpack.c.b16 %v4578, %v4577
        %v4596 = vpack.c.b16 %v4580, %v4579
        %4613 = vmatpush.bf16.msra.mxu0 %v4588
        %4614 = vmatpush.bf16.msra.mxu0 %v4587
        %4615 = vmatpush.bf16.msra.mxu0 %v4586
        %4616 = vmatpush.bf16.msra.mxu0 %v4585
        %4617 = vmatpush.bf16.msra.mxu0 %v4584
        %4618 = vmatpush.bf16.msra.mxu0 %v4583
        %4619 = vmatpush.bf16.msra.mxu0 %v4582
        %4620 = vmatpush.bf16.msra.mxu0 %v4581
        %4621 = vmatmul.bf16.gmra.mxu0 %v4501
        %v4622 = vpop.f32.mrf.mxu0
        %v4623 = vadd.f32 %v4475, %v4622
        %v4624 = vpop.f32.mrf.mxu0
        %v4625 = vadd.f32 %v4475, %v4624
        %4626 = vmatmul.bf16.gmra.mxu0 %v4503
        %v4627 = vpop.f32.mrf.mxu0
        %v4628 = vadd.f32 %v4475, %v4627
        %v4629 = vpop.f32.mrf.mxu0
        %v4630 = vadd.f32 %v4475, %v4629
        %4631 = vmatmul.bf16.gmra.mxu0 %v4505
        %v4632 = vpop.f32.mrf.mxu0
        %v4633 = vadd.f32 %v4475, %v4632
        %v4634 = vpop.f32.mrf.mxu0
        %v4635 = vadd.f32 %v4475, %v4634
        %4636 = vmatmul.bf16.gmra.mxu0 %v4507
        %v4637 = vpop.f32.mrf.mxu0
        %v4638 = vadd.f32 %v4475, %v4637
        %v4639 = vpop.f32.mrf.mxu0
        %v4640 = vadd.f32 %v4475, %v4639
        %4641 = vdwg.mxu0
        %4642 = vmatpush.bf16.msra.mxu0 %v4596
        %4643 = vmatpush.bf16.msra.mxu0 %v4595
        %4644 = vmatpush.bf16.msra.mxu0 %v4594
        %4645 = vmatpush.bf16.msra.mxu0 %v4593
        %4646 = vmatpush.bf16.msra.mxu0 %v4592
        %4647 = vmatpush.bf16.msra.mxu0 %v4591
        %4648 = vmatpush.bf16.msra.mxu0 %v4590
        %4649 = vmatpush.bf16.msra.mxu0 %v4589
        %4650 = vmatmul.bf16.gmra.mxu0 %v4502
        %v4651 = vpop.f32.mrf.mxu0
        %v4652 = vadd.f32 %v4623, %v4651
        %v4653 = vpop.f32.mrf.mxu0
        %v4654 = vadd.f32 %v4625, %v4653
        %4655 = vmatmul.bf16.gmra.mxu0 %v4504
        %v4656 = vpop.f32.mrf.mxu0
        %v4657 = vadd.f32 %v4628, %v4656
        %v4658 = vpop.f32.mrf.mxu0
        %v4659 = vadd.f32 %v4630, %v4658
        %4660 = vmatmul.bf16.gmra.mxu0 %v4506
        %v4661 = vpop.f32.mrf.mxu0
        %v4662 = vadd.f32 %v4633, %v4661
        %v4663 = vpop.f32.mrf.mxu0
        %v4664 = vadd.f32 %v4635, %v4663
        %4665 = vmatmul.bf16.gmra.mxu0 %v4508
        %v4666 = vpop.f32.mrf.mxu0
        %v4667 = vadd.f32 %v4638, %v4666
        %v4668 = vpop.f32.mrf.mxu0
        %v4669 = vadd.f32 %v4640, %v4668
        %4670 = vdwg.mxu0
        %v4672 = vrot.slane %v4091, 2
        %v4673 = vld [vmem:[%s12] sm:$0xf]
        %v4674 = vld [vmem:[%s13] sm:$0x3]
        %4675 = vst [vmem:[#allocation1] ss:$4 sm:$0xff] %v4091
        %v4676 = vld.sshfl [vmem:[#allocation1] sm:$0xff pattern:$0x73625140]
        %s4677 = scalar_lea.vmem [#allocation1], 32
        %4678 = vst [vmem:[%s4677] ss:$4 sm:$0xff] %v4672
        %v4679 = vld.sshfl [vmem:[#allocation1 + $0x20] sm:$0xff pattern:$0x73625140]
        %4680 = vset.pattern.permute.xlu0 0
        %4681 = vperm.xlu0 %4680, %v4676
        %v4682 = vpop.permute.xlu0 %4681
        %4683 = vset.pattern.permute.xlu0 0
        %4684 = vperm.xlu0 %4683, %v4679
        %v4685 = vpop.permute.xlu0 %4684
        %v4686 = vlaneseq
        %v4687 = vand.u32 %v4686, 127
        %v4688 = vperm.slane %v4682, %v4687
        %v4689 = vperm.slane %v4685, %v4687
        %vm4690 = vcmask 1041409
        %v4691 = vsel %vm4690, %v4689, %v4688
        %vm4692 = vcmask 15360
        %v4694 = vsel %vm4692, %v4673, 0
        %v4696 = vsel %vm1016, %v4691, 0
        %4698 = vmatpush.msra.mxu0 0.0
        %4699 = vmatpush.msra.mxu0 0.0
        %4700 = vmatpush.msra.mxu0 0.0
        %4701 = vmatpush.msra.mxu0 0.0
        %4702 = vmatpush.msra.mxu0 0.0
        %4703 = vmatpush.msra.mxu0 0.0
        %4704 = vmatpush.msra.mxu0 0.0
        %4705 = vmatpush.msra.mxu0 0.0
        %4706 = vmatpush.msra.mxu0 0.0
        %4707 = vmatpush.msra.mxu0 0.0
        %4708 = vmatpush.msra.mxu0 0.0
        %4709 = vmatpush.msra.mxu0 0.0
        %4710 = vmatpush.msra.mxu0 0.0
        %4711 = vmatpush.msra.mxu0 0.0
        %4712 = vmatpush.msra.mxu0 0.0
        %4713 = vmatpush.msra.mxu0 %v4696
        %4714 = vmatmul.f32.gmra.mxu0 %v4694
        %v4715 = vpop.f32.mrf.mxu0
        %v4716 = vadd.f32 0.0, %v4715
        %4717 = vdwg.mxu0
        %v4720 = vrot.slane %v4429, 4
        %v4721 = vrot.slane %v4431, 4
        %4722 = vst [vmem:[#allocation1] ss:$2 sm:$0xff] %v4429
        %v4723 = vld.sshfl [vmem:[#allocation1] sm:$0xff pattern:$0x75316420]
        %s4724 = scalar_lea.vmem [#allocation1], 16
        %4725 = vst [vmem:[%s4724] ss:$2 sm:$0xff] %v4720
        %v4726 = vld.sshfl [vmem:[#allocation1 + $0x10] sm:$0xff pattern:$0x75316420]
        %s4727 = scalar_lea.vmem [#allocation1], 32
        %4728 = vst [vmem:[%s4727] ss:$2 sm:$0xff] %v4431
        %v4729 = vld.sshfl [vmem:[#allocation1 + $0x20] sm:$0xff pattern:$0x75316420]
        %s4730 = scalar_lea.vmem [#allocation1], 48
        %4731 = vst [vmem:[%s4730] ss:$2 sm:$0xff] %v4721
        %v4732 = vld.sshfl [vmem:[#allocation1 + $0x30] sm:$0xff pattern:$0x75316420]
        %4733 = vset.pattern.permute.xlu0 0
        %4734 = vperm.xlu0 %4733, %v4723
        %v4735 = vpop.permute.xlu0 %4734
        %4736 = vset.pattern.permute.xlu0 0
        %4737 = vperm.xlu0 %4736, %v4726
        %v4738 = vpop.permute.xlu0 %4737
        %4739 = vset.pattern.permute.xlu0 0
        %4740 = vperm.xlu0 %4739, %v4729
        %v4741 = vpop.permute.xlu0 %4740
        %4742 = vset.pattern.permute.xlu0 0
        %4743 = vperm.xlu0 %4742, %v4732
        %v4744 = vpop.permute.xlu0 %4743
        %v4745 = vperm.slane %v4735, %v4687
        %v4746 = vperm.slane %v4738, %v4687
        %v4747 = vperm.slane %v4741, %v4687
        %v4748 = vperm.slane %v4744, %v4687
        %v4749 = vsel %vm4690, %v4746, %v4745
        %v4750 = vsel %vm1012, %v4747, %v4749
        %vm4751 = vcmask 1043459
        %v4752 = vsel %vm4751, %v4748, %v4750
        %v4755 = vsel %vm4692, %v4716, 0
        %v4758 = vsel %vm1016, %v4674, 0
        %4760 = vmatpush.msra.mxu0 0.0
        %4761 = vmatpush.msra.mxu0 0.0
        %4762 = vmatpush.msra.mxu0 0.0
        %4763 = vmatpush.msra.mxu0 0.0
        %4764 = vmatpush.msra.mxu0 0.0
        %4765 = vmatpush.msra.mxu0 0.0
        %4766 = vmatpush.msra.mxu0 0.0
        %4767 = vmatpush.msra.mxu0 0.0
        %4768 = vmatpush.msra.mxu0 0.0
        %4769 = vmatpush.msra.mxu0 0.0
        %4770 = vmatpush.msra.mxu0 0.0
        %4771 = vmatpush.msra.mxu0 0.0
        %4772 = vmatpush.msra.mxu0 0.0
        %4773 = vmatpush.msra.mxu0 0.0
        %4774 = vmatpush.msra.mxu0 0.0
        %4775 = vmatpush.msra.mxu0 %v4758
        %4776 = vmatmul.f32.gmra.mxu0 %v4755
        %v4777 = vpop.f32.mrf.mxu0
        %v4778 = vadd.f32 %v4752, %v4777
        %4779 = vdwg.mxu0
        %v4780 = vld [vmem:[%s14] sm:$0xff]
        %v4781 = vld [vmem:[%s15] sm:$0xf]
        %vm4782 = vcmask 31744
        %v4784 = vsel %vm4782, %v4780, 0
        %v4787 = vsel %vm1028, %v4778, 0
        %4789 = vmatpush.msra.mxu0 0.0
        %4790 = vmatpush.msra.mxu0 0.0
        %4791 = vmatpush.msra.mxu0 0.0
        %4792 = vmatpush.msra.mxu0 0.0
        %4793 = vmatpush.msra.mxu0 0.0
        %4794 = vmatpush.msra.mxu0 0.0
        %4795 = vmatpush.msra.mxu0 0.0
        %4796 = vmatpush.msra.mxu0 0.0
        %4797 = vmatpush.msra.mxu0 0.0
        %4798 = vmatpush.msra.mxu0 0.0
        %4799 = vmatpush.msra.mxu0 0.0
        %4800 = vmatpush.msra.mxu0 0.0
        %4801 = vmatpush.msra.mxu0 0.0
        %4802 = vmatpush.msra.mxu0 0.0
        %4803 = vmatpush.msra.mxu0 0.0
        %4804 = vmatpush.msra.mxu0 %v4787
        %4805 = vmatmul.f32.gmra.mxu0 %v4784
        %v4806 = vpop.f32.mrf.mxu0
        %v4807 = vadd.f32 0.0, %v4806
        %4808 = vdwg.mxu0
        %4817 = vset.pattern.permute.xlu0 0
        %4818 = vperm.xlu0 %4817, %v4652
        %v4819 = vpop.permute.xlu0 %4818
        %4820 = vset.pattern.permute.xlu0 0
        %4821 = vperm.xlu0 %4820, %v4654
        %v4822 = vpop.permute.xlu0 %4821
        %4823 = vset.pattern.permute.xlu0 0
        %4824 = vperm.xlu0 %4823, %v4657
        %v4825 = vpop.permute.xlu0 %4824
        %4826 = vset.pattern.permute.xlu0 0
        %4827 = vperm.xlu0 %4826, %v4659
        %v4828 = vpop.permute.xlu0 %4827
        %4829 = vset.pattern.permute.xlu0 0
        %4830 = vperm.xlu0 %4829, %v4662
        %v4831 = vpop.permute.xlu0 %4830
        %4832 = vset.pattern.permute.xlu0 0
        %4833 = vperm.xlu0 %4832, %v4664
        %v4834 = vpop.permute.xlu0 %4833
        %4835 = vset.pattern.permute.xlu0 0
        %4836 = vperm.xlu0 %4835, %v4667
        %v4837 = vpop.permute.xlu0 %4836
        %4838 = vset.pattern.permute.xlu0 0
        %4839 = vperm.xlu0 %4838, %v4669
        %v4840 = vpop.permute.xlu0 %4839
        %v4841 = vperm.slane %v4819, %v4687
        %v4842 = vperm.slane %v4822, %v4687
        %v4843 = vperm.slane %v4825, %v4687
        %v4844 = vperm.slane %v4828, %v4687
        %v4845 = vperm.slane %v4831, %v4687
        %v4846 = vperm.slane %v4834, %v4687
        %v4847 = vperm.slane %v4837, %v4687
        %v4848 = vperm.slane %v4840, %v4687
        %v4849 = vsel %vm4690, %v4842, %v4841
        %v4850 = vsel %vm1012, %v4843, %v4849
        %v4851 = vsel %vm4751, %v4844, %v4850
        %v4852 = vsel %vm1018, %v4845, %v4851
        %vm4853 = vcmask 1045509
        %v4854 = vsel %vm4853, %v4846, %v4852
        %v4855 = vsel %vm1022, %v4847, %v4854
        %vm4856 = vcmask 1047559
        %v4857 = vsel %vm4856, %v4848, %v4855
        %v4860 = vsel %vm4782, %v4807, 0
        %v4863 = vsel %vm1028, %v4781, 0
        %4865 = vmatpush.msra.mxu0 0.0
        %4866 = vmatpush.msra.mxu0 0.0
        %4867 = vmatpush.msra.mxu0 0.0
        %4868 = vmatpush.msra.mxu0 0.0
        %4869 = vmatpush.msra.mxu0 0.0
        %4870 = vmatpush.msra.mxu0 0.0
        %4871 = vmatpush.msra.mxu0 0.0
        %4872 = vmatpush.msra.mxu0 0.0
        %4873 = vmatpush.msra.mxu0 0.0
        %4874 = vmatpush.msra.mxu0 0.0
        %4875 = vmatpush.msra.mxu0 0.0
        %4876 = vmatpush.msra.mxu0 0.0
        %4877 = vmatpush.msra.mxu0 0.0
        %4878 = vmatpush.msra.mxu0 0.0
        %4879 = vmatpush.msra.mxu0 0.0
        %4880 = vmatpush.msra.mxu0 %v4863
        %4881 = vmatmul.f32.gmra.mxu0 %v4860
        %v4882 = vpop.f32.mrf.mxu0
        %v4883 = vadd.f32 %v4857, %v4882
        %4884 = vdwg.mxu0
        %v4885 = vld [vmem:[%s16] sm:$0xff]
        %v4886 = vld [vmem:[%s16 + $0x8] sm:$0xff]
        %v4887 = vld [vmem:[%s17] sm:$0xff]
        %vm4888 = vcmask 64512
        %v4890 = vsel %vm4888, %v4885, 0
        %v4893 = vsel %vm4888, %v4886, 0
        %4895 = vmatpush.msra.mxu0 0.0
        %4896 = vmatpush.msra.mxu0 0.0
        %4897 = vmatpush.msra.mxu0 0.0
        %4898 = vmatpush.msra.mxu0 0.0
        %4899 = vmatpush.msra.mxu0 0.0
        %4900 = vmatpush.msra.mxu0 0.0
        %4901 = vmatpush.msra.mxu0 0.0
        %4902 = vmatpush.msra.mxu0 0.0
        %4903 = vmatpush.msra.mxu0 0.0
        %4904 = vmatpush.msra.mxu0 0.0
        %4905 = vmatpush.msra.mxu0 0.0
        %4906 = vmatpush.msra.mxu0 0.0
        %4907 = vmatpush.msra.mxu0 0.0
        %4908 = vmatpush.msra.mxu0 0.0
        %4909 = vmatpush.msra.mxu0 0.0
        %4910 = vmatpush.msra.mxu0 %v4883
        %4911 = vmatmul.f32.gmra.mxu0 %v4890
        %v4912 = vpop.f32.mrf.mxu0
        %v4913 = vadd.f32 0.0, %v4912
        %4914 = vmatmul.f32.gmra.mxu0 %v4893
        %v4915 = vpop.f32.mrf.mxu0
        %v4916 = vadd.f32 0.0, %v4915
        %4917 = vdwg.mxu0
        %v4919 = vsel %vm4888, %v4913, 0
        %v4922 = vsel %vm4888, %v4916, 0
        %4924 = vmatpush.msra.mxu0 0.0
        %4925 = vmatpush.msra.mxu0 0.0
        %4926 = vmatpush.msra.mxu0 0.0
        %4927 = vmatpush.msra.mxu0 0.0
        %4928 = vmatpush.msra.mxu0 0.0
        %4929 = vmatpush.msra.mxu0 0.0
        %4930 = vmatpush.msra.mxu0 0.0
        %4931 = vmatpush.msra.mxu0 0.0
        %4932 = vmatpush.msra.mxu0 0.0
        %4933 = vmatpush.msra.mxu0 0.0
        %4934 = vmatpush.msra.mxu0 0.0
        %4935 = vmatpush.msra.mxu0 0.0
        %4936 = vmatpush.msra.mxu0 0.0
        %4937 = vmatpush.msra.mxu0 0.0
        %4938 = vmatpush.msra.mxu0 0.0
        %4939 = vmatpush.msra.mxu0 %v4887
        %4940 = vmatmul.f32.gmra.mxu0 %v4919
        %v4941 = vpop.f32.mrf.mxu0
        %v4942 = vadd.f32 0.0, %v4941
        %4943 = vmatmul.f32.gmra.mxu0 %v4922
        %v4944 = vpop.f32.mrf.mxu0
        %v4945 = vadd.f32 0.0, %v4944
        %4946 = vdwg.mxu0
        %vm4947 = vcmask 130048
        %4948 = vst.msk [vmem:[%s700] sm:$0xff] %vm4947, %v4942
        %4949 = vst.msk [vmem:[%s700 + $0x8] sm:$0xff] %vm4947, %v4945
        %s4950 = sand.u32 %s443, 1
        %s4951 = scalar_lea.sflag [#allocation7], %s4950
        %s4952 = sand.u32 %s443, 1
        %s4953 = smul.addr %s4952, 16
        %s4954 = scalar_lea.vmem [#allocation16], %s4953
        // Predicated region
        $region117: #{dec_fcn_forward.1} parent=91 // pred_check
          %p4955 = pneg %p453
        $region118: #{dec_fcn_forward.1} parent=91 // pred_check_branch
          %4957 = sbr.rel (%p4955) target = $region120
        $region119: #{dec_fcn_forward.1} parent=91 // pred_region
          %4959 = vsyncadd %s4951, 0
          %s4960 = smul.addr %s42, 2
          %s4961 = smul.addr %s4960, 8
          %s4962 = scalar_lea.hbm %s18, %s4961
          %s4963 = sshll.u32 %s4954, 4
          %s4964 = int_to_ptr.vmem [resolvable:$true] %s4963
          %s4965 = sshll.u32 %s4962, 4
          %s4966 = int_to_ptr.hbm [resolvable:$true] %s4965
          %4971 = dma.vmem_to_hbm [thread:$0]  %s4964, 256, %s4966, %s4951, 128, 128, 8
        $region120: #{dec_fcn_forward.1} parent=91 // pred_fallthru
          _
      $region92: #{dec_fcn_forward.1} parent=5 // pred_fallthru
        _
      %p4972 = scmp.le.s32.totalorder 2, %s37
      // Predicated region
      $region121: #{dec_fcn_forward.1} parent=5 // pred_check
        %p4973 = pneg %p4972
      $region122: #{dec_fcn_forward.1} parent=5 // pred_check_branch
        %4975 = sbr.rel (%p4973) target = $region124
      $region123: #{dec_fcn_forward.1} parent=5 // pred_region
        %s4976 = ssub.s32 %s37, 2
        // Predicated region
        $region125: #{dec_fcn_forward.1} parent=123 // pred_check
          %p4977 = pneg %p459
        $region126: #{dec_fcn_forward.1} parent=123 // pred_check_branch
          %4979 = sbr.rel (%p4977) target = $region128
        $region127: #{dec_fcn_forward.1} parent=123 // pred_region
          %s4980 = sand.u32 %s444, 1
          %s4981 = scalar_lea.sflag [#allocation7], %s4980
          %s4982 = sand.u32 %s444, 1
          %s4983 = smul.addr %s4982, 16
          %s4984 = scalar_lea.vmem [#allocation16], %s4983
          %4986 = dma.done %s4981, 256
        $region128: #{dec_fcn_forward.1} parent=123 // pred_fallthru
          _
      $region124: #{dec_fcn_forward.1} parent=5 // pred_fallthru
        _
    $region6: #{dec_fcn_forward.1} parent=1 // loop_footer
      %s41 = sadd.s32 1, %s37
    $region7: #{dec_fcn_forward.1} parent=1 // loop_footer_branch
      %36 = sbr.rel target = $region3
    $region8: #{dec_fcn_forward.1} parent=1 // loop_exit
      _
    %4987 = vsyncpa [#allocation6], 1
    %s4988 = scalar_lea.sflag [#allocation6], 1
    %4989 = vsyncpa %s4988, 1
    %4990 = vsyncpa [#allocation9], 1
    %4991 = vsyncpa [#allocation12], 1
    %4992 = vsyncpa [#allocation15], 1
    %4993 = vsyncpa [#allocation7], 1
    %s4994 = scalar_lea.sflag [#allocation7], 1
    %4995 = vsyncpa %s4994, 1

</llo_original>
